<compile_context>
chip_gen: v7x
topology: tpu7x:2x2x1
jax: 0.10.0
libtpu: 0.0.40
codegen_flags: <defaults>
</compile_context>

<pallas_src>
import functools

import jax
import jax.numpy as jnp
from jax import lax
from jax.experimental import pallas as pl
from jax.experimental.pallas import tpu as pltpu


def _round_up(x, m):
    return ((x + m - 1) // m) * m


def _im2col_t(x_nchw, k=3, stride=2, pad=1):
    """im2col, transposed layout: (B, C, H, W) -> ((C*k*k, B*Ho*Wo), Ho, Wo).

    Lane (minor) dim is the patch index P, so the streamed HBM array has long
    contiguous rows and the VMEM tiles are not lane-padded CK -> 128.
    """
    # TODO(synk): form the 3x3 patches in-kernel from NHWC / space-to-depth
    # tiles (shifted sublane slices) to remove the im2col HBM expansion and
    # the extra patch-matrix write+read entirely (biggest remaining win).
    B, C, H, W = x_nchw.shape
    patches = lax.conv_general_dilated_patches(
        x_nchw, filter_shape=(k, k), window_strides=(stride, stride),
        padding=((pad, pad), (pad, pad)))              # (B, C*k*k, Ho, Wo)
    ck, Ho, Wo = patches.shape[1], patches.shape[2], patches.shape[3]
    patches_t = jnp.transpose(patches, (1, 0, 2, 3)).reshape(ck, B * Ho * Wo)
    return patches_t, Ho, Wo


def _stable_sigmoid(x, approx=False):
    """Numerically-stable sigmoid (only exponentiates non-positive args)."""
    z = jnp.exp(-jnp.abs(x))                           # exp(-|x|) in (0, 1]
    denom = 1.0 + z
    if approx and denom.dtype == jnp.float32:
        inv = pl.reciprocal(denom, approx=True)        # EUP slot (~free)
    else:
        inv = (1.0 / denom).astype(x.dtype)
    return jnp.where(x >= 0.0, inv, z * inv)


# ----------------------------------------------------------------------------
# Single fused kernel, grid over patch-column tiles (transposed layout):
#   per tile : inner unrolled loop over 512-col chunks:
#              stem matmul (Csp,CK)@(CK,chunk) bf16->f32 + bias + swish,
#              segment-sum via (Csp,chunk)@(chunk,Bp) one-hot matmul into a
#              resident (Csp, Bp) f32 accumulator.
#   last tile: mean -> FC(Csp->1024pad) -> ReLU -> Linear(1024pad->128pad)
#              -> sigmoid, written once to the (Lp, Bp) output block.
# ----------------------------------------------------------------------------
def fused_stem_gap_head_kernel(p_ref, w_ref, b_ref, fcw_ref, fcb_ref,
                               ow_ref, ob_ref, o_ref, acc_ref,
                               *, n_valid_cols, hw, tile_cols, chunk_cols,
                               epilogue_dtype):
    pid = pl.program_id(0)

    @pl.when(pid == 0)
    def _init():
        acc_ref[...] = jnp.zeros_like(acc_ref)

    w = w_ref[...]                                     # (Csp, CK) bf16, resident
    b = b_ref[...]                                     # (Csp, 1)  f32
    bp = acc_ref.shape[1]
    base_col = pid * tile_cols
    n_chunks = tile_cols // chunk_cols

    def chunk_body(c, carry):
        start = pl.multiple_of(c * chunk_cols, 128)
        p_chunk = p_ref[:, pl.ds(start, chunk_cols)]   # (CK, chunk) bf16
        # Stem conv chunk on the MXU, f32 accumulation, bias epilogue.
        x = jnp.dot(w, p_chunk, preferred_element_type=jnp.float32) + b
        # Swish / SiLU.  epilogue_dtype=bf16 halves VPU/EUP work on v6e/v7x;
        # default f32 is safe on every generation (v5e has no bf16 VPU/EUP).
        x = x.astype(epilogue_dtype)
        act = (x * _stable_sigmoid(x, approx=True)).astype(jnp.bfloat16)

        # Fused global-average-pool: column p belongs to batch p // HW.  Build
        # a (chunk, Bp) one-hot selector with range checks (no integer div),
        # mask padded columns, reduce with one small bf16 MXU matmul (f32 acc).
        col = base_col + start + lax.broadcasted_iota(
            jnp.int32, (chunk_cols, bp), 0)
        bidx = lax.broadcasted_iota(jnp.int32, (chunk_cols, bp), 1)
        sel = (col >= bidx * hw) & (col < (bidx + 1) * hw) & (col < n_valid_cols)
        onehot = sel.astype(jnp.bfloat16)
        acc_ref[...] += jnp.dot(act, onehot, preferred_element_type=jnp.float32)
        return carry

    lax.fori_loop(0, n_chunks, chunk_body, 0, unroll=True)

    @pl.when(pid == pl.num_programs(0) - 1)
    def _finalize():
        pooled = acc_ref[...] * (1.0 / float(hw))                    # (Csp, Bp)
        feats = jnp.dot(fcw_ref[...], pooled,
                        preferred_element_type=jnp.float32) + fcb_ref[...]
        h = jnp.maximum(feats, 0.0)                                  # F.relu
        logits = jnp.dot(ow_ref[...], h,
                         preferred_element_type=jnp.float32) + ob_ref[...]
        o_ref[...] = _stable_sigmoid(logits)                         # torch.sigmoid


def efficientnet_multilabel_forward(x_nchw, params, *, n_labels=26,
                                    max_tile_cols=4096, inner_chunk=512,
                                    epilogue_dtype=jnp.float32):
    """Forward pass. x_nchw: (B, C, H, W) float32 -> (B, n_labels) float32.

    epilogue_dtype: set to jnp.bfloat16 on v6e/v7x (bf16 VPU/EUP) to double
    the swish-epilogue throughput; keep f32 (default) on v5e / unknown HW.
    """
    B = x_nchw.shape[0]
    assert B >= 1
    Bp = _round_up(B, 8)                         # sublane-aligned batch (any B)

    # bf16-cast the small NCHW input so the im2col producer emits bf16 patches
    # directly (no separate cast of the big patch matrix; pad fuses under jit).
    patches_t, Ho, Wo = _im2col_t(x_nchw.astype(jnp.bfloat16))   # (CK, P) bf16
    CK, P = patches_t.shape
    HW = Ho * Wo

    Csp = params["stem_w_t"].shape[0]            # 128 (padded stem channels)
    FDp = params["fc_w_t"].shape[0]              # 1024 (padded 1000)
    Lp = params["out_w_t"].shape[0]              # 128 (padded 26)

    # Column-tile size: large (amortize per-grid-step overhead), multiple of
    # the inner chunk; pad the patch matrix with zero columns to cover it.
    tm = min(max_tile_cols, _round_up(P, 128))
    chunk = min(inner_chunk, tm)
    tm = _round_up(tm, chunk)
    p_pad = _round_up(P, tm)
    if p_pad > P:
        patches_t = jnp.pad(patches_t, ((0, 0), (0, p_pad - P)))
    n_tiles = p_pad // tm

    kernel = functools.partial(
        fused_stem_gap_head_kernel, n_valid_cols=P, hw=HW,
        tile_cols=tm, chunk_cols=chunk, epilogue_dtype=epilogue_dtype)

    out_t = pl.pallas_call(
        kernel,
        out_shape=jax.ShapeDtypeStruct((Lp, Bp), jnp.float32),
        grid_spec=pltpu.PrefetchScalarGridSpec(
            num_scalar_prefetch=0,
            grid=(n_tiles,),
            in_specs=[
                # streamed transposed patch tiles (double-buffered by BlockSpec)
                pl.BlockSpec((CK, tm), lambda i: (0, i)),
                # weights / biases stay resident (constant block index => the
                # pipeline does not re-DMA them; extra buffer cost is ~1 MiB)
                pl.BlockSpec((Csp, CK), lambda i: (0, 0)),
                pl.BlockSpec((Csp, 1), lambda i: (0, 0)),
                pl.BlockSpec((FDp, Csp), lambda i: (0, 0)),
                pl.BlockSpec((FDp, 1), lambda i: (0, 0)),
                pl.BlockSpec((Lp, FDp), lambda i: (0, 0)),
                pl.BlockSpec((Lp, 1), lambda i: (0, 0)),
            ],
            out_specs=pl.BlockSpec((Lp, Bp), lambda i: (0, 0)),
            scratch_shapes=[pltpu.VMEM((Csp, Bp), jnp.float32)],
        ),
        compiler_params=pltpu.CompilerParams(
            # Single resident accumulator across the column axis => reduction.
            # TODO(synk): v7x dual-TensorCore split (per-core partial
            # accumulators + tiny combine) to unpin the stream from one TC.
            dimension_semantics=("arbitrary",),
            vmem_limit_bytes=32 * 1024 * 1024,   # explicit for v5e's 16MiB default
        ),
    )(patches_t, params["stem_w_t"], params["stem_b_t"],
      params["fc_w_t"], params["fc_b_t"], params["out_w_t"], params["out_b_t"])

    # (Lp, Bp) -> (B, n_labels): one tiny transpose + slice in the wrapper.
    return out_t.T[:B, :n_labels]


def init_params(key, in_channels, stem_channels=32, feat_dim=1000, n_labels=26):
    k1, k2, k3, k4, k5 = jax.random.split(key, 5)
    ck = in_channels * 3 * 3
    csp = _round_up(stem_channels, 128)          # sublane-dense stem channels
    fdp = _round_up(feat_dim, 128)               # 1000 -> 1024
    lp = _round_up(n_labels, 128)                # 26 -> 128

    stem_w = 0.05 * jax.random.normal(k1, (ck, stem_channels), jnp.float32)
    stem_b = 0.05 * jax.random.normal(k2, (stem_channels, 1), jnp.float32)
    fc_w = 0.05 * jax.random.normal(k3, (stem_channels, feat_dim), jnp.float32)
    fc_b = 0.05 * jax.random.normal(k4, (feat_dim, 1), jnp.float32)
    out_w = 0.05 * jax.random.normal(k5, (feat_dim, n_labels), jnp.float32)
    out_b = jnp.zeros((n_labels, 1), jnp.float32)

    return {
        # Stem conv weight stored transposed (Csp, CK) for the (Csp,CK)@(CK,TM)
        # matmul.  CK is deliberately left unpadded: padding it to 128 would
        # inflate the dominant streamed HBM array ~3.5x on a memory-bound stem.
        "stem_w_t": jnp.pad(stem_w.T, ((0, csp - stem_channels), (0, 0))
                            ).astype(jnp.bfloat16),
        "stem_b_t": jnp.pad(stem_b, ((0, csp - stem_channels), (0, 0))),
        "fc_w_t": jnp.pad(fc_w.T, ((0, fdp - feat_dim),
                                   (0, csp - stem_channels))),
        "fc_b_t": jnp.pad(fc_b, ((0, fdp - feat_dim), (0, 0))),
        # self.output_layer = nn.Linear(1000, 26), stored transposed + padded.
        "out_w_t": jnp.pad(out_w.T, ((0, lp - n_labels), (0, fdp - feat_dim))),
        "out_b_t": jnp.pad(out_b, ((0, lp - n_labels), (0, 0))),
    }


def reference_forward(x_nchw, params, n_labels=26):
    """Pure-JAX f32 reference of the same surrogate forward (transposed math)."""
    B = x_nchw.shape[0]
    patches_t, Ho, Wo = _im2col_t(x_nchw)                     # (CK, P) f32
    w = params["stem_w_t"].astype(jnp.float32)                # (Csp, CK)
    pre = w @ patches_t + params["stem_b_t"]                  # (Csp, P)
    act = pre * jax.nn.sigmoid(pre)
    pooled = act.reshape(act.shape[0], B, Ho * Wo).mean(axis=2)   # (Csp, B)
    feats = params["fc_w_t"] @ pooled + params["fc_b_t"]      # (FDp, B)
    h = jnp.maximum(feats, 0.0)
    logits = params["out_w_t"] @ h + params["out_b_t"]        # (Lp, B)
    return jax.nn.sigmoid(logits).T[:, :n_labels]


if __name__ == "__main__":
    key = jax.random.PRNGKey(0)
    kx, kp = jax.random.split(key)

    B, C, H, W = 2, 4, 16, 16          # small shapes; module allows any in_channels
    x = jax.random.normal(kx, (B, C, H, W), jnp.float32)
    params = init_params(kp, in_channels=C)

    y = jax.jit(efficientnet_multilabel_forward)(x, params)
    y = jax.block_until_ready(y)

    assert y.shape == (B, 26), y.shape
    assert y.dtype == jnp.float32
    assert bool(jnp.all((y >= 0.0) & (y <= 1.0)))      # sigmoid output range

    # Correctness vs pure-JAX f32 reference (tolerance covers bf16 patches,
    # bf16 GAP-matmul inputs and the EUP approx-reciprocal swish).
    y_ref = reference_forward(x, params)
    assert bool(jnp.allclose(y, y_ref, atol=5e-3, rtol=5e-3)), \
        float(jnp.max(jnp.abs(y - y_ref)))

    print("KERNEL_OK")
</pallas_src>

<mosaic_0001>
module attributes {stable_mosaic.version = 11 : i64} {
  func.func @fused_stem_gap_head_kernel(%arg0: i32, %arg1: memref<36x128xbf16, #tpu.memory_space<vmem>>, %arg2: memref<128x36xbf16, #tpu.memory_space<vmem>>, %arg3: memref<128x1xf32, #tpu.memory_space<vmem>>, %arg4: memref<1024x128xf32, #tpu.memory_space<vmem>>, %arg5: memref<1024x1xf32, #tpu.memory_space<vmem>>, %arg6: memref<128x1024xf32, #tpu.memory_space<vmem>>, %arg7: memref<128x1xf32, #tpu.memory_space<vmem>>, %arg8: memref<128x8xf32, #tpu.memory_space<vmem>>, %arg9: memref<128x8xf32, #tpu.memory_space<vmem>>) attributes {dimension_semantics = [#tpu.dimension_semantics<arbitrary>], iteration_bounds = array<i64: 1>, scalar_prefetch = 0 : i64, scratch_operands = 1 : i64, tpu.core_type = #tpu.core_type<tc>, window_params = [{transform_indices = @transform_0, window_bounds = array<i64: 36, 128>}, {pipeline_mode = #tpu.pipeline_mode<synchronous>, transform_indices = @transform_1, window_bounds = array<i64: 128, 36>}, {pipeline_mode = #tpu.pipeline_mode<synchronous>, transform_indices = @transform_2, window_bounds = array<i64: 128, 1>}, {pipeline_mode = #tpu.pipeline_mode<synchronous>, transform_indices = @transform_3, window_bounds = array<i64: 1024, 128>}, {pipeline_mode = #tpu.pipeline_mode<synchronous>, transform_indices = @transform_4, window_bounds = array<i64: 1024, 1>}, {pipeline_mode = #tpu.pipeline_mode<synchronous>, transform_indices = @transform_5, window_bounds = array<i64: 128, 1024>}, {pipeline_mode = #tpu.pipeline_mode<synchronous>, transform_indices = @transform_6, window_bounds = array<i64: 128, 1>}, {pipeline_mode = #tpu.pipeline_mode<synchronous>, transform_indices = @transform_7, window_bounds = array<i64: 128, 8>}]} {
    %c0_i32 = arith.constant 0 : i32
    %0 = arith.cmpi eq, %arg0, %c0_i32 : i32
    %1 = arith.extui %0 : i1 to i32
    %c0_i32_0 = arith.constant 0 : i32
    %2 = arith.cmpi ne, %1, %c0_i32_0 : i32
    scf.if %2 {
      %cst_20 = arith.constant 0.000000e+00 : f32
      %53 = vector.broadcast %cst_20 : f32 to vector<128x8xf32>
      %c0_21 = arith.constant 0 : index
      %c0_22 = arith.constant 0 : index
      %54 = vector.load %arg9[%c0_21, %c0_22] : memref<128x8xf32, #tpu.memory_space<vmem>>, vector<128x8xf32>
      tpu.vector_store %arg9[%c0_21, %c0_22], %53 {strides = array<i32>} : memref<128x8xf32, #tpu.memory_space<vmem>>, vector<128x8xf32>,
    } else {
    }
    %c0 = arith.constant 0 : index
    %c0_1 = arith.constant 0 : index
    %3 = vector.load %arg2[%c0, %c0_1] : memref<128x36xbf16, #tpu.memory_space<vmem>>, vector<128x36xbf16>
    %c0_2 = arith.constant 0 : index
    %c0_3 = arith.constant 0 : index
    %4 = vector.load %arg3[%c0_2, %c0_3] : memref<128x1xf32, #tpu.memory_space<vmem>>, vector<128x1xf32>
    %c128_i32 = arith.constant 128 : i32
    %5 = arith.muli %arg0, %c128_i32 : i32
    %c0_i32_4 = arith.constant 0 : i32
    %c128_i32_5 = arith.constant 128 : i32
    %6 = arith.muli %c0_i32_4, %c128_i32_5 : i32
    %7 = tpu.assume_multiple %6, 128 : i32
    %c0_6 = arith.constant 0 : index
    %8 = arith.index_cast %7 : i32 to index
    %9 = vector.load %arg1[%c0_6, %8] : memref<36x128xbf16, #tpu.memory_space<vmem>>, vector<36x128xbf16>
    %cst = arith.constant dense<0.000000e+00> : vector<128x128xf32>
    %10 = tpu.matmul %3, %9, %cst {dimension_numbers = #tpu.dot_dimension_numbers<[1], [0], [0], [1], [0, 0, 1, 1], [], []>} : vector<128x36xbf16>, vector<36x128xbf16>, vector<128x128xf32> -> vector<128x128xf32>
    %11 = vector.broadcast %4 : vector<128x1xf32> to vector<128x128xf32>
    %12 = arith.addf %10, %11 : vector<128x128xf32>
    %13 = math.absf %12 : vector<128x128xf32>
    %cst_7 = arith.constant 0.000000e+00 : f32
    %14 = vector.broadcast %cst_7 : f32 to vector<128x128xf32>
    %15 = arith.subf %14, %13 : vector<128x128xf32>
    %16 = math.exp %15 : vector<128x128xf32>
    %cst_8 = arith.constant 1.000000e+00 : f32
    %17 = vector.broadcast %cst_8 : f32 to vector<128x128xf32>
    %18 = arith.addf %17, %16 : vector<128x128xf32>
    %19 = tpu.reciprocal %18 {approx = true} : vector<128x128xf32> -> vector<128x128xf32>
    %cst_9 = arith.constant 0.000000e+00 : f32
    %20 = vector.broadcast %cst_9 : f32 to vector<128x128xf32>
    %21 = arith.cmpf oge, %12, %20 : vector<128x128xf32>
    %22 = arith.mulf %16, %19 : vector<128x128xf32>
    %23 = arith.select %21, %19, %22 : vector<128x128xi1>, vector<128x128xf32>
    %24 = arith.mulf %12, %23 : vector<128x128xf32>
    %25 = arith.truncf %24 : vector<128x128xf32> to vector<128x128xbf16>
    %26 = arith.addi %5, %7 : i32
    %27 = tpu.iota {dimensions = array<i32: 0>} : vector<128x8xi32>
    %28 = vector.broadcast %26 : i32 to vector<128x8xi32>
    %29 = arith.addi %28, %27 : vector<128x8xi32>
    %30 = tpu.iota {dimensions = array<i32: 1>} : vector<128x8xi32>
    %c64_i32 = arith.constant 64 : i32
    %31 = vector.broadcast %c64_i32 : i32 to vector<128x8xi32>
    %32 = arith.muli %30, %31 : vector<128x8xi32>
    %33 = arith.cmpi sge, %29, %32 : vector<128x8xi32>
    %c1_i32 = arith.constant 1 : i32
    %34 = vector.broadcast %c1_i32 : i32 to vector<128x8xi32>
    %35 = arith.addi %30, %34 : vector<128x8xi32>
    %c64_i32_10 = arith.constant 64 : i32
    %36 = vector.broadcast %c64_i32_10 : i32 to vector<128x8xi32>
    %37 = arith.muli %35, %36 : vector<128x8xi32>
    %38 = arith.cmpi slt, %29, %37 : vector<128x8xi32>
    %39 = arith.andi %33, %38 : vector<128x8xi1>
    %c128_i32_11 = arith.constant 128 : i32
    %40 = vector.broadcast %c128_i32_11 : i32 to vector<128x8xi32>
    %41 = arith.cmpi slt, %29, %40 : vector<128x8xi32>
    %42 = arith.andi %39, %41 : vector<128x8xi1>
    %43 = arith.extui %42 : vector<128x8xi1> to vector<128x8xi32>
    %44 = arith.sitofp %43 : vector<128x8xi32> to vector<128x8xf32>
    %45 = arith.truncf %44 : vector<128x8xf32> to vector<128x8xbf16>
    %c0_12 = arith.constant 0 : index
    %c0_13 = arith.constant 0 : index
    %46 = vector.load %arg9[%c0_12, %c0_13] : memref<128x8xf32, #tpu.memory_space<vmem>>, vector<128x8xf32>
    %cst_14 = arith.constant dense<0.000000e+00> : vector<128x8xf32>
    %47 = tpu.matmul %25, %45, %cst_14 {dimension_numbers = #tpu.dot_dimension_numbers<[1], [0], [0], [1], [0, 0, 1, 1], [], []>} : vector<128x128xbf16>, vector<128x8xbf16>, vector<128x8xf32> -> vector<128x8xf32>
    %48 = arith.addf %46, %47 : vector<128x8xf32>
    %c0_15 = arith.constant 0 : index
    %c0_16 = arith.constant 0 : index
    %49 = vector.load %arg9[%c0_15, %c0_16] : memref<128x8xf32, #tpu.memory_space<vmem>>, vector<128x8xf32>
    tpu.vector_store %arg9[%c0_15, %c0_16], %48 {strides = array<i32>} : memref<128x8xf32, #tpu.memory_space<vmem>>, vector<128x8xf32>,
    %c1_i32_17 = arith.constant 1 : i32
    %c0_i32_18 = arith.constant 0 : i32
    %50 = arith.cmpi eq, %arg0, %c0_i32_18 : i32
    %51 = arith.extui %50 : i1 to i32
    %c0_i32_19 = arith.constant 0 : i32
    %52 = arith.cmpi ne, %51, %c0_i32_19 : i32
    scf.if %52 {
      %c0_20 = arith.constant 0 : index
      %c0_21 = arith.constant 0 : index
      %53 = vector.load %arg9[%c0_20, %c0_21] : memref<128x8xf32, #tpu.memory_space<vmem>>, vector<128x8xf32>
      %cst_22 = arith.constant 1.562500e-02 : f32
      %54 = vector.broadcast %cst_22 : f32 to vector<128x8xf32>
      %55 = arith.mulf %53, %54 : vector<128x8xf32>
      %c0_23 = arith.constant 0 : index
      %c0_24 = arith.constant 0 : index
      %56 = vector.load %arg4[%c0_23, %c0_24] : memref<1024x128xf32, #tpu.memory_space<vmem>>, vector<1024x128xf32>
      %cst_25 = arith.constant dense<0.000000e+00> : vector<1024x8xf32>
      %57 = tpu.matmul %56, %55, %cst_25 {dimension_numbers = #tpu.dot_dimension_numbers<[1], [0], [0], [1], [0, 0, 1, 1], [], []>} : vector<1024x128xf32>, vector<128x8xf32>, vector<1024x8xf32> -> vector<1024x8xf32>
      %c0_26 = arith.constant 0 : index
      %c0_27 = arith.constant 0 : index
      %58 = vector.load %arg5[%c0_26, %c0_27] : memref<1024x1xf32, #tpu.memory_space<vmem>>, vector<1024x1xf32>
      %59 = vector.broadcast %58 : vector<1024x1xf32> to vector<1024x8xf32>
      %60 = arith.addf %57, %59 : vector<1024x8xf32>
      %cst_28 = arith.constant 0.000000e+00 : f32
      %61 = vector.broadcast %cst_28 : f32 to vector<1024x8xf32>
      %62 = arith.maximumf %60, %61 : vector<1024x8xf32>
      %c0_29 = arith.constant 0 : index
      %c0_30 = arith.constant 0 : index
      %63 = vector.load %arg6[%c0_29, %c0_30] : memref<128x1024xf32, #tpu.memory_space<vmem>>, vector<128x1024xf32>
      %cst_31 = arith.constant dense<0.000000e+00> : vector<128x8xf32>
      %64 = tpu.matmul %63, %62, %cst_31 {dimension_numbers = #tpu.dot_dimension_numbers<[1], [0], [0], [1], [0, 0, 1, 1], [], []>} : vector<128x1024xf32>, vector<1024x8xf32>, vector<128x8xf32> -> vector<128x8xf32>
      %c0_32 = arith.constant 0 : index
      %c0_33 = arith.constant 0 : index
      %65 = vector.load %arg7[%c0_32, %c0_33] : memref<128x1xf32, #tpu.memory_space<vmem>>, vector<128x1xf32>
      %66 = vector.broadcast %65 : vector<128x1xf32> to vector<128x8xf32>
      %67 = arith.addf %64, %66 : vector<128x8xf32>
      %68 = math.absf %67 : vector<128x8xf32>
      %cst_34 = arith.constant 0.000000e+00 : f32
      %69 = vector.broadcast %cst_34 : f32 to vector<128x8xf32>
      %70 = arith.subf %69, %68 : vector<128x8xf32>
      %71 = math.exp %70 : vector<128x8xf32>
      %cst_35 = arith.constant 1.000000e+00 : f32
      %72 = vector.broadcast %cst_35 : f32 to vector<128x8xf32>
      %73 = arith.addf %72, %71 : vector<128x8xf32>
      %cst_36 = arith.constant 1.000000e+00 : f32
      %74 = vector.broadcast %cst_36 : f32 to vector<128x8xf32>
      %75 = arith.divf %74, %73 : vector<128x8xf32>
      %cst_37 = arith.constant 0.000000e+00 : f32
      %76 = vector.broadcast %cst_37 : f32 to vector<128x8xf32>
      %77 = arith.cmpf oge, %67, %76 : vector<128x8xf32>
      %78 = arith.mulf %71, %75 : vector<128x8xf32>
      %79 = arith.select %77, %75, %78 : vector<128x8xi1>, vector<128x8xf32>
      %c0_38 = arith.constant 0 : index
      %c0_39 = arith.constant 0 : index
      %80 = vector.load %arg8[%c0_38, %c0_39] : memref<128x8xf32, #tpu.memory_space<vmem>>, vector<128x8xf32>
      tpu.vector_store %arg8[%c0_38, %c0_39], %79 {strides = array<i32>} : memref<128x8xf32, #tpu.memory_space<vmem>>, vector<128x8xf32>,
    } else {
    }
    return
  }
  func.func @transform_0(%arg0: i32) -> (i32, i32) {
    %c0_i32 = arith.constant 0 : i32
    %c0_i32_0 = arith.constant 0 : i32
    return %c0_i32, %arg0 : i32, i32
  }
  func.func @transform_1(%arg0: i32) -> (i32, i32) {
    %c0_i32 = arith.constant 0 : i32
    %c0_i32_0 = arith.constant 0 : i32
    %c0_i32_1 = arith.constant 0 : i32
    return %c0_i32, %c0_i32_0 : i32, i32
  }
  func.func @transform_2(%arg0: i32) -> (i32, i32) {
    %c0_i32 = arith.constant 0 : i32
    %c0_i32_0 = arith.constant 0 : i32
    %c0_i32_1 = arith.constant 0 : i32
    return %c0_i32, %c0_i32_0 : i32, i32
  }
  func.func @transform_3(%arg0: i32) -> (i32, i32) {
    %c0_i32 = arith.constant 0 : i32
    %c0_i32_0 = arith.constant 0 : i32
    %c0_i32_1 = arith.constant 0 : i32
    return %c0_i32, %c0_i32_0 : i32, i32
  }
  func.func @transform_4(%arg0: i32) -> (i32, i32) {
    %c0_i32 = arith.constant 0 : i32
    %c0_i32_0 = arith.constant 0 : i32
    %c0_i32_1 = arith.constant 0 : i32
    return %c0_i32, %c0_i32_0 : i32, i32
  }
  func.func @transform_5(%arg0: i32) -> (i32, i32) {
    %c0_i32 = arith.constant 0 : i32
    %c0_i32_0 = arith.constant 0 : i32
    %c0_i32_1 = arith.constant 0 : i32
    return %c0_i32, %c0_i32_0 : i32, i32
  }
  func.func @transform_6(%arg0: i32) -> (i32, i32) {
    %c0_i32 = arith.constant 0 : i32
    %c0_i32_0 = arith.constant 0 : i32
    %c0_i32_1 = arith.constant 0 : i32
    return %c0_i32, %c0_i32_0 : i32, i32
  }
  func.func @transform_7(%arg0: i32) -> (i32, i32) {
    %c0_i32 = arith.constant 0 : i32
    %c0_i32_0 = arith.constant 0 : i32
    %c0_i32_1 = arith.constant 0 : i32
    return %c0_i32, %c0_i32_0 : i32, i32
  }
}

</mosaic_0001>

<llo_original>
// kernel: efficientnet_multilabel_forward.1
$region0: #{efficientnet_multilabel_forward.1}
  #allocation0 [shape = 'u32[]', space=smem, size = 0x4, offset = 0x4, fixed_abs, tag = 'smem constant byte address 0x4 - core index']
  #allocation1 [shape = 'u32[144,128]{1,0:T(1,128)}', space=vmem, size = 0x12000, scoped, tag = 'internal scratch']
  #allocation2 [shape = 'f32[128,8]{1,0:T(8,128)}', space=vmem, size = 0x10000, scoped, tag = 'scratch operand']
  %s0 = inlined_call_operand.vmem [shape: bf16[36,128], index: 0, kind: input, shape index: {}]
  %s1 = inlined_call_operand.vmem [shape: bf16[128,36], index: 1, kind: input, shape index: {}]
  %s2 = inlined_call_operand.vmem [shape: f32[128,1], index: 2, kind: input, shape index: {}]
  %s3 = inlined_call_operand.vmem [shape: f32[1024,128], index: 3, kind: input, shape index: {}]
  %s4 = inlined_call_operand.vmem [shape: f32[1024,1], index: 4, kind: input, shape index: {}]
  %s5 = inlined_call_operand.vmem [shape: f32[128,1024], index: 5, kind: input, shape index: {}]
  %s6 = inlined_call_operand.vmem [shape: f32[128,1], index: 6, kind: input, shape index: {}]
  %s7 = inlined_call_operand.vmem [shape: f32[128,8], index: 7, kind: output, shape index: {}]
  %s8 = sld [smem:[#allocation0]]
  $region46: #{efficientnet_multilabel_forward.1} parent=0
    _
  %s10 = ssub.s32 1, %s8
  %s11 = scalar_select 0, %s10, %s8
  // Predicated region
  $region2: #{efficientnet_multilabel_forward.1} parent=0 // pred_check
    _
  $region3: #{efficientnet_multilabel_forward.1} parent=0 // pred_check_branch
    %13 = sbr.rel (0) target = $region5
  $region4: #{efficientnet_multilabel_forward.1} parent=0 // pred_region
    _
  $region5: #{efficientnet_multilabel_forward.1} parent=0 // pred_fallthru
    _
  // Predicated region
  $region6: #{efficientnet_multilabel_forward.1} parent=0 // pred_check
    _
  $region7: #{efficientnet_multilabel_forward.1} parent=0 // pred_check_branch
    %15 = sbr.rel (0) target = $region9
  $region8: #{efficientnet_multilabel_forward.1} parent=0 // pred_region
    _
  $region9: #{efficientnet_multilabel_forward.1} parent=0 // pred_fallthru
    _
  // Predicated region
  $region10: #{efficientnet_multilabel_forward.1} parent=0 // pred_check
    _
  $region11: #{efficientnet_multilabel_forward.1} parent=0 // pred_check_branch
    %17 = sbr.rel (0) target = $region13
  $region12: #{efficientnet_multilabel_forward.1} parent=0 // pred_region
    _
  $region13: #{efficientnet_multilabel_forward.1} parent=0 // pred_fallthru
    _
  // Predicated region
  $region14: #{efficientnet_multilabel_forward.1} parent=0 // pred_check
    _
  $region15: #{efficientnet_multilabel_forward.1} parent=0 // pred_check_branch
    %19 = sbr.rel (0) target = $region17
  $region16: #{efficientnet_multilabel_forward.1} parent=0 // pred_region
    _
  $region17: #{efficientnet_multilabel_forward.1} parent=0 // pred_fallthru
    _
  // Predicated region
  $region18: #{efficientnet_multilabel_forward.1} parent=0 // pred_check
    _
  $region19: #{efficientnet_multilabel_forward.1} parent=0 // pred_check_branch
    %21 = sbr.rel (0) target = $region21
  $region20: #{efficientnet_multilabel_forward.1} parent=0 // pred_region
    _
  $region21: #{efficientnet_multilabel_forward.1} parent=0 // pred_fallthru
    _
  // Predicated region
  $region22: #{efficientnet_multilabel_forward.1} parent=0 // pred_check
    _
  $region23: #{efficientnet_multilabel_forward.1} parent=0 // pred_check_branch
    %23 = sbr.rel (0) target = $region25
  $region24: #{efficientnet_multilabel_forward.1} parent=0 // pred_region
    _
  $region25: #{efficientnet_multilabel_forward.1} parent=0 // pred_fallthru
    _
  // Predicated region
  $region26: #{efficientnet_multilabel_forward.1} parent=0 // pred_check
    _
  $region27: #{efficientnet_multilabel_forward.1} parent=0 // pred_check_branch
    %25 = sbr.rel (0) target = $region29
  $region28: #{efficientnet_multilabel_forward.1} parent=0 // pred_region
    _
  $region29: #{efficientnet_multilabel_forward.1} parent=0 // pred_fallthru
    _
  %p27 = scmp.eq.s32.totalorder 0, 0
  // Predicated region
  $region30: #{efficientnet_multilabel_forward.1} parent=0 // pred_check
    %p28 = pneg %p27
  $region31: #{efficientnet_multilabel_forward.1} parent=0 // pred_check_branch
    %30 = sbr.rel (%p28) target = $region33
  $region32: #{efficientnet_multilabel_forward.1} parent=0 // pred_region
    %vm31 = vcmask 64512
    %32 = vst.msk [vmem:[#allocation2] sm:$0xff] %vm31, 0.0
    %33 = vst.msk [vmem:[#allocation2 + $0x8] sm:$0xff] %vm31, 0.0
    %34 = vst.msk [vmem:[#allocation2 + $0x10] sm:$0xff] %vm31, 0.0
    %35 = vst.msk [vmem:[#allocation2 + $0x18] sm:$0xff] %vm31, 0.0
    %36 = vst.msk [vmem:[#allocation2 + $0x20] sm:$0xff] %vm31, 0.0
    %37 = vst.msk [vmem:[#allocation2 + $0x28] sm:$0xff] %vm31, 0.0
    %38 = vst.msk [vmem:[#allocation2 + $0x30] sm:$0xff] %vm31, 0.0
    %39 = vst.msk [vmem:[#allocation2 + $0x38] sm:$0xff] %vm31, 0.0
    %40 = vst.msk [vmem:[#allocation2 + $0x40] sm:$0xff] %vm31, 0.0
    %41 = vst.msk [vmem:[#allocation2 + $0x48] sm:$0xff] %vm31, 0.0
    %42 = vst.msk [vmem:[#allocation2 + $0x50] sm:$0xff] %vm31, 0.0
    %43 = vst.msk [vmem:[#allocation2 + $0x58] sm:$0xff] %vm31, 0.0
    %44 = vst.msk [vmem:[#allocation2 + $0x60] sm:$0xff] %vm31, 0.0
    %45 = vst.msk [vmem:[#allocation2 + $0x68] sm:$0xff] %vm31, 0.0
    %46 = vst.msk [vmem:[#allocation2 + $0x70] sm:$0xff] %vm31, 0.0
    %47 = vst.msk [vmem:[#allocation2 + $0x78] sm:$0xff] %vm31, 0.0
  $region33: #{efficientnet_multilabel_forward.1} parent=0 // pred_fallthru
    _
  %v48 = vld [vmem:[%s1] sm:$0xf]
  %v49 = vld [vmem:[%s1 + $0x4] sm:$0xf]
  %v50 = vld [vmem:[%s1 + $0x8] sm:$0xf]
  %v51 = vld [vmem:[%s1 + $0xc] sm:$0xf]
  %v52 = vld [vmem:[%s1 + $0x10] sm:$0xf]
  %v53 = vld [vmem:[%s1 + $0x14] sm:$0xf]
  %v54 = vld [vmem:[%s1 + $0x18] sm:$0xf]
  %v55 = vld [vmem:[%s1 + $0x1c] sm:$0xf]
  %v56 = vld [vmem:[%s1 + $0x20] sm:$0xf]
  %v57 = vld [vmem:[%s1 + $0x24] sm:$0xf]
  %v58 = vld [vmem:[%s1 + $0x28] sm:$0xf]
  %v59 = vld [vmem:[%s1 + $0x2c] sm:$0xf]
  %v60 = vld [vmem:[%s1 + $0x30] sm:$0xf]
  %v61 = vld [vmem:[%s1 + $0x34] sm:$0xf]
  %v62 = vld [vmem:[%s1 + $0x38] sm:$0xf]
  %v63 = vld [vmem:[%s1 + $0x3c] sm:$0xf]
  %v64 = vld [vmem:[%s2] sm:$0xff]
  %v65 = vld [vmem:[%s2 + $0x8] sm:$0xff]
  %v66 = vld [vmem:[%s2 + $0x10] sm:$0xff]
  %v67 = vld [vmem:[%s2 + $0x18] sm:$0xff]
  %v68 = vld [vmem:[%s2 + $0x20] sm:$0xff]
  %v69 = vld [vmem:[%s2 + $0x28] sm:$0xff]
  %v70 = vld [vmem:[%s2 + $0x30] sm:$0xff]
  %v71 = vld [vmem:[%s2 + $0x38] sm:$0xff]
  %v72 = vld [vmem:[%s2 + $0x40] sm:$0xff]
  %v73 = vld [vmem:[%s2 + $0x48] sm:$0xff]
  %v74 = vld [vmem:[%s2 + $0x50] sm:$0xff]
  %v75 = vld [vmem:[%s2 + $0x58] sm:$0xff]
  %v76 = vld [vmem:[%s2 + $0x60] sm:$0xff]
  %v77 = vld [vmem:[%s2 + $0x68] sm:$0xff]
  %v78 = vld [vmem:[%s2 + $0x70] sm:$0xff]
  %v79 = vld [vmem:[%s2 + $0x78] sm:$0xff]
  %s80 = smul.u32 0, 128
  %v81 = vld [vmem:[%s0] sm:$0xf]
  %v82 = vld [vmem:[%s0 + $0x4] sm:$0xf]
  %v83 = vld [vmem:[%s0 + $0x8] sm:$0xf]
  %v84 = vld [vmem:[%s0 + $0xc] sm:$0xf]
  %v85 = vld [vmem:[%s0 + $0x10] sm:$0x3]
  %87 = vset.pattern.permute.xlu0 0
  %88 = vperm.xlu0 %87, %v64
  %v89 = vpop.permute.xlu0 %88
  %92 = vset.pattern.permute.xlu0 0
  %93 = vperm.xlu0 %92, %v65
  %v94 = vpop.permute.xlu0 %93
  %97 = vset.pattern.permute.xlu0 0
  %98 = vperm.xlu0 %97, %v66
  %v99 = vpop.permute.xlu0 %98
  %102 = vset.pattern.permute.xlu0 0
  %103 = vperm.xlu0 %102, %v67
  %v104 = vpop.permute.xlu0 %103
  %107 = vset.pattern.permute.xlu0 0
  %108 = vperm.xlu0 %107, %v68
  %v109 = vpop.permute.xlu0 %108
  %112 = vset.pattern.permute.xlu0 0
  %113 = vperm.xlu0 %112, %v69
  %v114 = vpop.permute.xlu0 %113
  %117 = vset.pattern.permute.xlu0 0
  %118 = vperm.xlu0 %117, %v70
  %v119 = vpop.permute.xlu0 %118
  %122 = vset.pattern.permute.xlu0 0
  %123 = vperm.xlu0 %122, %v71
  %v124 = vpop.permute.xlu0 %123
  %127 = vset.pattern.permute.xlu0 0
  %128 = vperm.xlu0 %127, %v72
  %v129 = vpop.permute.xlu0 %128
  %132 = vset.pattern.permute.xlu0 0
  %133 = vperm.xlu0 %132, %v73
  %v134 = vpop.permute.xlu0 %133
  %137 = vset.pattern.permute.xlu0 0
  %138 = vperm.xlu0 %137, %v74
  %v139 = vpop.permute.xlu0 %138
  %142 = vset.pattern.permute.xlu0 0
  %143 = vperm.xlu0 %142, %v75
  %v144 = vpop.permute.xlu0 %143
  %147 = vset.pattern.permute.xlu0 0
  %148 = vperm.xlu0 %147, %v76
  %v149 = vpop.permute.xlu0 %148
  %152 = vset.pattern.permute.xlu0 0
  %153 = vperm.xlu0 %152, %v77
  %v154 = vpop.permute.xlu0 %153
  %157 = vset.pattern.permute.xlu0 0
  %158 = vperm.xlu0 %157, %v78
  %v159 = vpop.permute.xlu0 %158
  %162 = vset.pattern.permute.xlu0 0
  %163 = vperm.xlu0 %162, %v79
  %v164 = vpop.permute.xlu0 %163
  %v182 = vunpack.c.l.b16 %v48
  %v183 = vunpack.c.l.b16 %v49
  %v184 = vunpack.c.l.b16 %v50
  %v185 = vunpack.c.l.b16 %v51
  %v186 = vunpack.c.l.b16 %v52
  %v187 = vunpack.c.l.b16 %v53
  %v188 = vunpack.c.l.b16 %v54
  %v189 = vunpack.c.l.b16 %v55
  %v190 = vunpack.c.l.b16 %v56
  %v191 = vunpack.c.l.b16 %v57
  %v192 = vunpack.c.l.b16 %v58
  %v193 = vunpack.c.l.b16 %v59
  %v194 = vunpack.c.l.b16 %v60
  %v195 = vunpack.c.l.b16 %v61
  %v196 = vunpack.c.l.b16 %v62
  %v197 = vunpack.c.l.b16 %v63
  %v198 = vpack.c.b16 %v183, %v182
  %v199 = vpack.c.b16 %v185, %v184
  %v200 = vpack.c.b16 %v187, %v186
  %v201 = vpack.c.b16 %v189, %v188
  %v202 = vpack.c.b16 %v191, %v190
  %v203 = vpack.c.b16 %v193, %v192
  %v204 = vpack.c.b16 %v195, %v194
  %v205 = vpack.c.b16 %v197, %v196
  %v211 = vunpack.c.l.b16 %v81
  %v212 = vunpack.c.l.b16 %v82
  %v213 = vunpack.c.l.b16 %v83
  %v214 = vunpack.c.l.b16 %v84
  %v215 = vunpack.c.l.b16 %v85
  %v216 = vpack.c.b16 %v212, %v211
  %v217 = vpack.c.b16 %v214, %v213
  %v218 = vpack.c.b16 %v215, %v215
  %vm221 = vcmask 293888
  %v223 = vsel %vm221, %v198, 0
  %v226 = vsel %vm221, %v199, 0
  %v229 = vsel %vm221, %v200, 0
  %v232 = vsel %vm221, %v201, 0
  %v235 = vsel %vm221, %v202, 0
  %v238 = vsel %vm221, %v203, 0
  %v241 = vsel %vm221, %v204, 0
  %v244 = vsel %vm221, %v205, 0
  %vm246 = vcmask 1041408
  %v248 = vsel %vm246, %v218, 0
  %250 = vmatprep.subr.bf16.mxu0 0
  %251 = vmatpush1.bf16.msra.mxu0 %v216
  %252 = vmatprep.subr.bf16.mxu0 0
  %253 = vmatpush1.bf16.msra.mxu0 %v217
  %254 = vmatprep.subr.bf16.mxu0 0
  %255 = vmatpush1.bf16.msra.mxu0 %v248
  %256 = vmatprep.subr.bf16.mxu0 0
  %257 = vmatpush1.bf16.msra.mxu0 0
  %258 = vmatprep.subr.bf16.mxu0 0
  %259 = vmatpush1.bf16.msra.mxu0 0
  %260 = vmatprep.subr.bf16.mxu0 0
  %261 = vmatpush1.bf16.msra.mxu0 0
  %262 = vmatprep.subr.bf16.mxu0 0
  %263 = vmatpush1.bf16.msra.mxu0 0
  %264 = vmatprep.subr.bf16.mxu0 0
  %265 = vmatpush1.bf16.msra.mxu0 0
  %266 = vmatprep.subr.bf16.mxu0 0
  %267 = vmatpush1.bf16.msra.mxu0 0
  %268 = vmatprep.subr.bf16.mxu0 0
  %269 = vmatpush1.bf16.msra.mxu0 0
  %270 = vmatprep.subr.bf16.mxu0 0
  %271 = vmatpush1.bf16.msra.mxu0 0
  %272 = vmatprep.subr.bf16.mxu0 0
  %273 = vmatpush1.bf16.msra.mxu0 0
  %274 = vmatprep.subr.bf16.mxu0 0
  %275 = vmatpush1.bf16.msra.mxu0 0
  %276 = vmatprep.subr.bf16.mxu0 0
  %277 = vmatpush1.bf16.msra.mxu0 0
  %278 = vmatprep.subr.bf16.mxu0 0
  %279 = vmatpush1.bf16.msra.mxu0 0
  %280 = vmatprep.subr.bf16.mxu0 0
  %281 = vmatpush1.bf16.msra.mxu0 0
  %282 = vmatprep.mubr.bf16.mxu0 0
  %283 = vmatmul.mubr.bf16.gmra.mrb[0].mxu0 %v223
  %v284 = vpop.f32.mrb[0].mxu0
  %v285 = vadd.f32 %v89, %v284
  %v286 = vpop.f32.mrb[0].mxu0
  %v287 = vpop.f32.mrb[0].mxu0
  %v288 = vadd.f32 %v94, %v287
  %v289 = vpop.f32.mrb[0].mxu0
  %290 = vmatprep.mubr.bf16.mxu0 0
  %291 = vmatmul.mubr.bf16.gmra.mrb[0].mxu0 %v226
  %v292 = vpop.f32.mrb[0].mxu0
  %v293 = vadd.f32 %v99, %v292
  %v294 = vpop.f32.mrb[0].mxu0
  %v295 = vpop.f32.mrb[0].mxu0
  %v296 = vadd.f32 %v104, %v295
  %v297 = vpop.f32.mrb[0].mxu0
  %298 = vmatprep.mubr.bf16.mxu0 0
  %299 = vmatmul.mubr.bf16.gmra.mrb[0].mxu0 %v229
  %v300 = vpop.f32.mrb[0].mxu0
  %v301 = vadd.f32 %v109, %v300
  %v302 = vpop.f32.mrb[0].mxu0
  %v303 = vpop.f32.mrb[0].mxu0
  %v304 = vadd.f32 %v114, %v303
  %v305 = vpop.f32.mrb[0].mxu0
  %306 = vmatprep.mubr.bf16.mxu0 0
  %307 = vmatmul.mubr.bf16.gmra.mrb[0].mxu0 %v232
  %v308 = vpop.f32.mrb[0].mxu0
  %v309 = vadd.f32 %v119, %v308
  %v310 = vpop.f32.mrb[0].mxu0
  %v311 = vpop.f32.mrb[0].mxu0
  %v312 = vadd.f32 %v124, %v311
  %v313 = vpop.f32.mrb[0].mxu0
  %314 = vmatprep.mubr.bf16.mxu0 0
  %315 = vmatmul.mubr.bf16.gmra.mrb[0].mxu0 %v235
  %v316 = vpop.f32.mrb[0].mxu0
  %v317 = vadd.f32 %v129, %v316
  %v318 = vpop.f32.mrb[0].mxu0
  %v319 = vpop.f32.mrb[0].mxu0
  %v320 = vadd.f32 %v134, %v319
  %v321 = vpop.f32.mrb[0].mxu0
  %322 = vmatprep.mubr.bf16.mxu0 0
  %323 = vmatmul.mubr.bf16.gmra.mrb[0].mxu0 %v238
  %v324 = vpop.f32.mrb[0].mxu0
  %v325 = vadd.f32 %v139, %v324
  %v326 = vpop.f32.mrb[0].mxu0
  %v327 = vpop.f32.mrb[0].mxu0
  %v328 = vadd.f32 %v144, %v327
  %v329 = vpop.f32.mrb[0].mxu0
  %330 = vmatprep.mubr.bf16.mxu0 0
  %331 = vmatmul.mubr.bf16.gmra.mrb[0].mxu0 %v241
  %v332 = vpop.f32.mrb[0].mxu0
  %v333 = vadd.f32 %v149, %v332
  %v334 = vpop.f32.mrb[0].mxu0
  %v335 = vpop.f32.mrb[0].mxu0
  %v336 = vadd.f32 %v154, %v335
  %v337 = vpop.f32.mrb[0].mxu0
  %338 = vmatprep.mubr.bf16.mxu0 0
  %339 = vmatmul.mubr.bf16.gmra.mrb[0].mxu0 %v244
  %v340 = vpop.f32.mrb[0].mxu0
  %v341 = vadd.f32 %v159, %v340
  %v342 = vpop.f32.mrb[0].mxu0
  %v343 = vpop.f32.mrb[0].mxu0
  %v344 = vadd.f32 %v164, %v343
  %v345 = vpop.f32.mrb[0].mxu0
  %346 = vdwg.mxu0
  %v347 = vand.u32 2147483647, %v285
  %v348 = vand.u32 2147483647, %v288
  %v349 = vand.u32 2147483647, %v293
  %v350 = vand.u32 2147483647, %v296
  %v351 = vand.u32 2147483647, %v301
  %v352 = vand.u32 2147483647, %v304
  %v353 = vand.u32 2147483647, %v309
  %v354 = vand.u32 2147483647, %v312
  %v355 = vand.u32 2147483647, %v317
  %v356 = vand.u32 2147483647, %v320
  %v357 = vand.u32 2147483647, %v325
  %v358 = vand.u32 2147483647, %v328
  %v359 = vand.u32 2147483647, %v333
  %v360 = vand.u32 2147483647, %v336
  %v361 = vand.u32 2147483647, %v341
  %v362 = vand.u32 2147483647, %v344
  %v363 = vsub.f32 0.0, %v347
  %v364 = vsub.f32 0.0, %v348
  %v365 = vsub.f32 0.0, %v349
  %v366 = vsub.f32 0.0, %v350
  %v367 = vsub.f32 0.0, %v351
  %v368 = vsub.f32 0.0, %v352
  %v369 = vsub.f32 0.0, %v353
  %v370 = vsub.f32 0.0, %v354
  %v371 = vsub.f32 0.0, %v355
  %v372 = vsub.f32 0.0, %v356
  %v373 = vsub.f32 0.0, %v357
  %v374 = vsub.f32 0.0, %v358
  %v375 = vsub.f32 0.0, %v359
  %v376 = vsub.f32 0.0, %v360
  %v377 = vsub.f32 0.0, %v361
  %v378 = vsub.f32 0.0, %v362
  %v379 = vmul.f32 %v363, 1.442695
  %v380 = vpow.pop %v379
  %v381 = vmul.f32 %v364, 1.442695
  %v382 = vpow.pop %v381
  %v383 = vmul.f32 %v365, 1.442695
  %v384 = vpow.pop %v383
  %v385 = vmul.f32 %v366, 1.442695
  %v386 = vpow.pop %v385
  %v387 = vmul.f32 %v367, 1.442695
  %v388 = vpow.pop %v387
  %v389 = vmul.f32 %v368, 1.442695
  %v390 = vpow.pop %v389
  %v391 = vmul.f32 %v369, 1.442695
  %v392 = vpow.pop %v391
  %v393 = vmul.f32 %v370, 1.442695
  %v394 = vpow.pop %v393
  %v395 = vmul.f32 %v371, 1.442695
  %v396 = vpow.pop %v395
  %v397 = vmul.f32 %v372, 1.442695
  %v398 = vpow.pop %v397
  %v399 = vmul.f32 %v373, 1.442695
  %v400 = vpow.pop %v399
  %v401 = vmul.f32 %v374, 1.442695
  %v402 = vpow.pop %v401
  %v403 = vmul.f32 %v375, 1.442695
  %v404 = vpow.pop %v403
  %v405 = vmul.f32 %v376, 1.442695
  %v406 = vpow.pop %v405
  %v407 = vmul.f32 %v377, 1.442695
  %v408 = vpow.pop %v407
  %v409 = vmul.f32 %v378, 1.442695
  %v410 = vpow.pop %v409
  %v411 = vadd.f32 %v380, 1.0
  %v412 = vadd.f32 %v382, 1.0
  %v413 = vadd.f32 %v384, 1.0
  %v414 = vadd.f32 %v386, 1.0
  %v415 = vadd.f32 %v388, 1.0
  %v416 = vadd.f32 %v390, 1.0
  %v417 = vadd.f32 %v392, 1.0
  %v418 = vadd.f32 %v394, 1.0
  %v419 = vadd.f32 %v396, 1.0
  %v420 = vadd.f32 %v398, 1.0
  %v421 = vadd.f32 %v400, 1.0
  %v422 = vadd.f32 %v402, 1.0
  %v423 = vadd.f32 %v404, 1.0
  %v424 = vadd.f32 %v406, 1.0
  %v425 = vadd.f32 %v408, 1.0
  %v426 = vadd.f32 %v410, 1.0
  %v427 = vrcp.pop %v411
  %v428 = vrcp.pop %v412
  %v429 = vrcp.pop %v413
  %v430 = vrcp.pop %v414
  %v431 = vrcp.pop %v415
  %v432 = vrcp.pop %v416
  %v433 = vrcp.pop %v417
  %v434 = vrcp.pop %v418
  %v435 = vrcp.pop %v419
  %v436 = vrcp.pop %v420
  %v437 = vrcp.pop %v421
  %v438 = vrcp.pop %v422
  %v439 = vrcp.pop %v423
  %v440 = vrcp.pop %v424
  %v441 = vrcp.pop %v425
  %v442 = vrcp.pop %v426
  %vm443 = vcmp.ge.f32.partialorder %v285, 0.0
  %vm444 = vcmp.ge.f32.partialorder %v288, 0.0
  %vm445 = vcmp.ge.f32.partialorder %v293, 0.0
  %vm446 = vcmp.ge.f32.partialorder %v296, 0.0
  %vm447 = vcmp.ge.f32.partialorder %v301, 0.0
  %vm448 = vcmp.ge.f32.partialorder %v304, 0.0
  %vm449 = vcmp.ge.f32.partialorder %v309, 0.0
  %vm450 = vcmp.ge.f32.partialorder %v312, 0.0
  %vm451 = vcmp.ge.f32.partialorder %v317, 0.0
  %vm452 = vcmp.ge.f32.partialorder %v320, 0.0
  %vm453 = vcmp.ge.f32.partialorder %v325, 0.0
  %vm454 = vcmp.ge.f32.partialorder %v328, 0.0
  %vm455 = vcmp.ge.f32.partialorder %v333, 0.0
  %vm456 = vcmp.ge.f32.partialorder %v336, 0.0
  %vm457 = vcmp.ge.f32.partialorder %v341, 0.0
  %vm458 = vcmp.ge.f32.partialorder %v344, 0.0
  %v459 = vmul.f32 %v380, %v427
  %v460 = vmul.f32 %v382, %v428
  %v461 = vmul.f32 %v384, %v429
  %v462 = vmul.f32 %v386, %v430
  %v463 = vmul.f32 %v388, %v431
  %v464 = vmul.f32 %v390, %v432
  %v465 = vmul.f32 %v392, %v433
  %v466 = vmul.f32 %v394, %v434
  %v467 = vmul.f32 %v396, %v435
  %v468 = vmul.f32 %v398, %v436
  %v469 = vmul.f32 %v400, %v437
  %v470 = vmul.f32 %v402, %v438
  %v471 = vmul.f32 %v404, %v439
  %v472 = vmul.f32 %v406, %v440
  %v473 = vmul.f32 %v408, %v441
  %v474 = vmul.f32 %v410, %v442
  %v475 = vsel %vm443, %v427, %v459
  %v476 = vsel %vm444, %v428, %v460
  %v477 = vsel %vm445, %v429, %v461
  %v478 = vsel %vm446, %v430, %v462
  %v479 = vsel %vm447, %v431, %v463
  %v480 = vsel %vm448, %v432, %v464
  %v481 = vsel %vm449, %v433, %v465
  %v482 = vsel %vm450, %v434, %v466
  %v483 = vsel %vm451, %v435, %v467
  %v484 = vsel %vm452, %v436, %v468
  %v485 = vsel %vm453, %v437, %v469
  %v486 = vsel %vm454, %v438, %v470
  %v487 = vsel %vm455, %v439, %v471
  %v488 = vsel %vm456, %v440, %v472
  %v489 = vsel %vm457, %v441, %v473
  %v490 = vsel %vm458, %v442, %v474
  %v491 = vmul.f32 %v285, %v475
  %v492 = vmul.f32 %v288, %v476
  %v493 = vmul.f32 %v293, %v477
  %v494 = vmul.f32 %v296, %v478
  %v495 = vmul.f32 %v301, %v479
  %v496 = vmul.f32 %v304, %v480
  %v497 = vmul.f32 %v309, %v481
  %v498 = vmul.f32 %v312, %v482
  %v499 = vmul.f32 %v317, %v483
  %v500 = vmul.f32 %v320, %v484
  %v501 = vmul.f32 %v325, %v485
  %v502 = vmul.f32 %v328, %v486
  %v503 = vmul.f32 %v333, %v487
  %v504 = vmul.f32 %v336, %v488
  %v505 = vmul.f32 %v341, %v489
  %v506 = vmul.f32 %v344, %v490
  %v507 = vpack.c.bf16 %v492, %v491
  %v508 = vpack.c.bf16 %v494, %v493
  %v509 = vpack.c.bf16 %v496, %v495
  %v510 = vpack.c.bf16 %v498, %v497
  %v511 = vpack.c.bf16 %v500, %v499
  %v512 = vpack.c.bf16 %v502, %v501
  %v513 = vpack.c.bf16 %v504, %v503
  %v514 = vpack.c.bf16 %v506, %v505
  %s515 = sadd.s32 %s80, 0
  %v516 = vlaneseq
  %v517 = vshrl.u32 %v516, 7
  %v518 = vadd.s32 %v517, 8
  %v519 = vadd.s32 %v517, 16
  %v520 = vadd.s32 %v517, 24
  %v521 = vadd.s32 %v517, 32
  %v522 = vadd.s32 %v517, 40
  %v523 = vadd.s32 %v517, 48
  %v524 = vadd.s32 %v517, 56
  %v525 = vadd.s32 %v517, 64
  %v526 = vadd.s32 %v517, 72
  %v527 = vadd.s32 %v517, 80
  %v528 = vadd.s32 %v517, 88
  %v529 = vadd.s32 %v517, 96
  %v530 = vadd.s32 %v517, 104
  %v531 = vadd.s32 %v517, 112
  %v532 = vadd.s32 %v517, 120
  %v533 = vstv %s515
  %v534 = vadd.s32 %v533, %v517
  %v535 = vadd.s32 %v533, %v518
  %v536 = vadd.s32 %v533, %v519
  %v537 = vadd.s32 %v533, %v520
  %v538 = vadd.s32 %v533, %v521
  %v539 = vadd.s32 %v533, %v522
  %v540 = vadd.s32 %v533, %v523
  %v541 = vadd.s32 %v533, %v524
  %v542 = vadd.s32 %v533, %v525
  %v543 = vadd.s32 %v533, %v526
  %v544 = vadd.s32 %v533, %v527
  %v545 = vadd.s32 %v533, %v528
  %v546 = vadd.s32 %v533, %v529
  %v547 = vadd.s32 %v533, %v530
  %v548 = vadd.s32 %v533, %v531
  %v549 = vadd.s32 %v533, %v532
  %v550 = vlaneseq
  %v551 = vand.u32 %v550, 127
  %v552 = vmul.u32 %v551, 64
  %vm553 = vcmp.ge.s32.totalorder %v534, %v552
  %vm554 = vcmp.ge.s32.totalorder %v535, %v552
  %vm555 = vcmp.ge.s32.totalorder %v536, %v552
  %vm556 = vcmp.ge.s32.totalorder %v537, %v552
  %vm557 = vcmp.ge.s32.totalorder %v538, %v552
  %vm558 = vcmp.ge.s32.totalorder %v539, %v552
  %vm559 = vcmp.ge.s32.totalorder %v540, %v552
  %vm560 = vcmp.ge.s32.totalorder %v541, %v552
  %vm561 = vcmp.ge.s32.totalorder %v542, %v552
  %vm562 = vcmp.ge.s32.totalorder %v543, %v552
  %vm563 = vcmp.ge.s32.totalorder %v544, %v552
  %vm564 = vcmp.ge.s32.totalorder %v545, %v552
  %vm565 = vcmp.ge.s32.totalorder %v546, %v552
  %vm566 = vcmp.ge.s32.totalorder %v547, %v552
  %vm567 = vcmp.ge.s32.totalorder %v548, %v552
  %vm568 = vcmp.ge.s32.totalorder %v549, %v552
  %v569 = vadd.s32 %v551, 1
  %v570 = vmul.u32 %v569, 64
  %vm571 = vcmp.lt.s32.totalorder %v534, %v570
  %vm572 = vcmp.lt.s32.totalorder %v535, %v570
  %vm573 = vcmp.lt.s32.totalorder %v536, %v570
  %vm574 = vcmp.lt.s32.totalorder %v537, %v570
  %vm575 = vcmp.lt.s32.totalorder %v538, %v570
  %vm576 = vcmp.lt.s32.totalorder %v539, %v570
  %vm577 = vcmp.lt.s32.totalorder %v540, %v570
  %vm578 = vcmp.lt.s32.totalorder %v541, %v570
  %vm579 = vcmp.lt.s32.totalorder %v542, %v570
  %vm580 = vcmp.lt.s32.totalorder %v543, %v570
  %vm581 = vcmp.lt.s32.totalorder %v544, %v570
  %vm582 = vcmp.lt.s32.totalorder %v545, %v570
  %vm583 = vcmp.lt.s32.totalorder %v546, %v570
  %vm584 = vcmp.lt.s32.totalorder %v547, %v570
  %vm585 = vcmp.lt.s32.totalorder %v548, %v570
  %vm586 = vcmp.lt.s32.totalorder %v549, %v570
  %vm587 = vmand %vm553, %vm571
  %vm588 = vmand %vm554, %vm572
  %vm589 = vmand %vm555, %vm573
  %vm590 = vmand %vm556, %vm574
  %vm591 = vmand %vm557, %vm575
  %vm592 = vmand %vm558, %vm576
  %vm593 = vmand %vm559, %vm577
  %vm594 = vmand %vm560, %vm578
  %vm595 = vmand %vm561, %vm579
  %vm596 = vmand %vm562, %vm580
  %vm597 = vmand %vm563, %vm581
  %vm598 = vmand %vm564, %vm582
  %vm599 = vmand %vm565, %vm583
  %vm600 = vmand %vm566, %vm584
  %vm601 = vmand %vm567, %vm585
  %vm602 = vmand %vm568, %vm586
  %vm603 = vcmp.lt.s32.totalorder %v534, 128
  %vm604 = vcmp.lt.s32.totalorder %v535, 128
  %vm605 = vcmp.lt.s32.totalorder %v536, 128
  %vm606 = vcmp.lt.s32.totalorder %v537, 128
  %vm607 = vcmp.lt.s32.totalorder %v538, 128
  %vm608 = vcmp.lt.s32.totalorder %v539, 128
  %vm609 = vcmp.lt.s32.totalorder %v540, 128
  %vm610 = vcmp.lt.s32.totalorder %v541, 128
  %vm611 = vcmp.lt.s32.totalorder %v542, 128
  %vm612 = vcmp.lt.s32.totalorder %v543, 128
  %vm613 = vcmp.lt.s32.totalorder %v544, 128
  %vm614 = vcmp.lt.s32.totalorder %v545, 128
  %vm615 = vcmp.lt.s32.totalorder %v546, 128
  %vm616 = vcmp.lt.s32.totalorder %v547, 128
  %vm617 = vcmp.lt.s32.totalorder %v548, 128
  %vm618 = vcmp.lt.s32.totalorder %v549, 128
  %vm619 = vmand %vm587, %vm603
  %vm620 = vmand %vm588, %vm604
  %vm621 = vmand %vm589, %vm605
  %vm622 = vmand %vm590, %vm606
  %vm623 = vmand %vm591, %vm607
  %vm624 = vmand %vm592, %vm608
  %vm625 = vmand %vm593, %vm609
  %vm626 = vmand %vm594, %vm610
  %vm627 = vmand %vm595, %vm611
  %vm628 = vmand %vm596, %vm612
  %vm629 = vmand %vm597, %vm613
  %vm630 = vmand %vm598, %vm614
  %vm631 = vmand %vm599, %vm615
  %vm632 = vmand %vm600, %vm616
  %vm633 = vmand %vm601, %vm617
  %vm634 = vmand %vm602, %vm618
  %v635 = vsel %vm619, 1, 0
  %v636 = vsel %vm620, 1, 0
  %v637 = vsel %vm621, 1, 0
  %v638 = vsel %vm622, 1, 0
  %v639 = vsel %vm623, 1, 0
  %v640 = vsel %vm624, 1, 0
  %v641 = vsel %vm625, 1, 0
  %v642 = vsel %vm626, 1, 0
  %v643 = vsel %vm627, 1, 0
  %v644 = vsel %vm628, 1, 0
  %v645 = vsel %vm629, 1, 0
  %v646 = vsel %vm630, 1, 0
  %v647 = vsel %vm631, 1, 0
  %v648 = vsel %vm632, 1, 0
  %v649 = vsel %vm633, 1, 0
  %v650 = vsel %vm634, 1, 0
  %v651 = vcvt.s32.f32 %v635
  %v652 = vcvt.s32.f32 %v636
  %v653 = vcvt.s32.f32 %v637
  %v654 = vcvt.s32.f32 %v638
  %v655 = vcvt.s32.f32 %v639
  %v656 = vcvt.s32.f32 %v640
  %v657 = vcvt.s32.f32 %v641
  %v658 = vcvt.s32.f32 %v642
  %v659 = vcvt.s32.f32 %v643
  %v660 = vcvt.s32.f32 %v644
  %v661 = vcvt.s32.f32 %v645
  %v662 = vcvt.s32.f32 %v646
  %v663 = vcvt.s32.f32 %v647
  %v664 = vcvt.s32.f32 %v648
  %v665 = vcvt.s32.f32 %v649
  %v666 = vcvt.s32.f32 %v650
  %v667 = vpack.c.bf16 %v652, %v651
  %v668 = vpack.c.bf16 %v654, %v653
  %v669 = vpack.c.bf16 %v656, %v655
  %v670 = vpack.c.bf16 %v658, %v657
  %v671 = vpack.c.bf16 %v660, %v659
  %v672 = vpack.c.bf16 %v662, %v661
  %v673 = vpack.c.bf16 %v664, %v663
  %v674 = vpack.c.bf16 %v666, %v665
  %v675 = vld [vmem:[#allocation2] sm:$0xff]
  %v676 = vld [vmem:[#allocation2 + $0x8] sm:$0xff]
  %v677 = vld [vmem:[#allocation2 + $0x10] sm:$0xff]
  %v678 = vld [vmem:[#allocation2 + $0x18] sm:$0xff]
  %v679 = vld [vmem:[#allocation2 + $0x20] sm:$0xff]
  %v680 = vld [vmem:[#allocation2 + $0x28] sm:$0xff]
  %v681 = vld [vmem:[#allocation2 + $0x30] sm:$0xff]
  %v682 = vld [vmem:[#allocation2 + $0x38] sm:$0xff]
  %v683 = vld [vmem:[#allocation2 + $0x40] sm:$0xff]
  %v684 = vld [vmem:[#allocation2 + $0x48] sm:$0xff]
  %v685 = vld [vmem:[#allocation2 + $0x50] sm:$0xff]
  %v686 = vld [vmem:[#allocation2 + $0x58] sm:$0xff]
  %v687 = vld [vmem:[#allocation2 + $0x60] sm:$0xff]
  %v688 = vld [vmem:[#allocation2 + $0x68] sm:$0xff]
  %v689 = vld [vmem:[#allocation2 + $0x70] sm:$0xff]
  %v690 = vld [vmem:[#allocation2 + $0x78] sm:$0xff]
  %691 = vmatprep.subr.bf16.mxu0 0
  %692 = vmatpush1.bf16.msra.mxu0 %v667
  %693 = vmatprep.subr.bf16.mxu0 0
  %694 = vmatpush1.bf16.msra.mxu0 %v668
  %695 = vmatprep.subr.bf16.mxu0 0
  %696 = vmatpush1.bf16.msra.mxu0 %v669
  %697 = vmatprep.subr.bf16.mxu0 0
  %698 = vmatpush1.bf16.msra.mxu0 %v670
  %699 = vmatprep.subr.bf16.mxu0 0
  %700 = vmatpush1.bf16.msra.mxu0 %v671
  %701 = vmatprep.subr.bf16.mxu0 0
  %702 = vmatpush1.bf16.msra.mxu0 %v672
  %703 = vmatprep.subr.bf16.mxu0 0
  %704 = vmatpush1.bf16.msra.mxu0 %v673
  %705 = vmatprep.subr.bf16.mxu0 0
  %706 = vmatpush1.bf16.msra.mxu0 %v674
  %707 = vmatprep.subr.bf16.mxu0 0
  %708 = vmatpush1.bf16.msra.mxu0 0
  %709 = vmatprep.subr.bf16.mxu0 0
  %710 = vmatpush1.bf16.msra.mxu0 0
  %711 = vmatprep.subr.bf16.mxu0 0
  %712 = vmatpush1.bf16.msra.mxu0 0
  %713 = vmatprep.subr.bf16.mxu0 0
  %714 = vmatpush1.bf16.msra.mxu0 0
  %715 = vmatprep.subr.bf16.mxu0 0
  %716 = vmatpush1.bf16.msra.mxu0 0
  %717 = vmatprep.subr.bf16.mxu0 0
  %718 = vmatpush1.bf16.msra.mxu0 0
  %719 = vmatprep.subr.bf16.mxu0 0
  %720 = vmatpush1.bf16.msra.mxu0 0
  %721 = vmatprep.subr.bf16.mxu0 0
  %722 = vmatpush1.bf16.msra.mxu0 0
  %723 = vmatprep.mubr.bf16.mxu0 0
  %724 = vmatmul.mubr.bf16.gmra.mrb[0].mxu0 %v507
  %v725 = vpop.f32.mrb[0].mxu0
  %v726 = vadd.f32 0.0, %v725
  %v727 = vpop.f32.mrb[0].mxu0
  %v728 = vpop.f32.mrb[0].mxu0
  %v729 = vadd.f32 0.0, %v728
  %v730 = vpop.f32.mrb[0].mxu0
  %731 = vmatprep.mubr.bf16.mxu0 0
  %732 = vmatmul.mubr.bf16.gmra.mrb[0].mxu0 %v508
  %v733 = vpop.f32.mrb[0].mxu0
  %v734 = vadd.f32 0.0, %v733
  %v735 = vpop.f32.mrb[0].mxu0
  %v736 = vpop.f32.mrb[0].mxu0
  %v737 = vadd.f32 0.0, %v736
  %v738 = vpop.f32.mrb[0].mxu0
  %739 = vmatprep.mubr.bf16.mxu0 0
  %740 = vmatmul.mubr.bf16.gmra.mrb[0].mxu0 %v509
  %v741 = vpop.f32.mrb[0].mxu0
  %v742 = vadd.f32 0.0, %v741
  %v743 = vpop.f32.mrb[0].mxu0
  %v744 = vpop.f32.mrb[0].mxu0
  %v745 = vadd.f32 0.0, %v744
  %v746 = vpop.f32.mrb[0].mxu0
  %747 = vmatprep.mubr.bf16.mxu0 0
  %748 = vmatmul.mubr.bf16.gmra.mrb[0].mxu0 %v510
  %v749 = vpop.f32.mrb[0].mxu0
  %v750 = vadd.f32 0.0, %v749
  %v751 = vpop.f32.mrb[0].mxu0
  %v752 = vpop.f32.mrb[0].mxu0
  %v753 = vadd.f32 0.0, %v752
  %v754 = vpop.f32.mrb[0].mxu0
  %755 = vmatprep.mubr.bf16.mxu0 0
  %756 = vmatmul.mubr.bf16.gmra.mrb[0].mxu0 %v511
  %v757 = vpop.f32.mrb[0].mxu0
  %v758 = vadd.f32 0.0, %v757
  %v759 = vpop.f32.mrb[0].mxu0
  %v760 = vpop.f32.mrb[0].mxu0
  %v761 = vadd.f32 0.0, %v760
  %v762 = vpop.f32.mrb[0].mxu0
  %763 = vmatprep.mubr.bf16.mxu0 0
  %764 = vmatmul.mubr.bf16.gmra.mrb[0].mxu0 %v512
  %v765 = vpop.f32.mrb[0].mxu0
  %v766 = vadd.f32 0.0, %v765
  %v767 = vpop.f32.mrb[0].mxu0
  %v768 = vpop.f32.mrb[0].mxu0
  %v769 = vadd.f32 0.0, %v768
  %v770 = vpop.f32.mrb[0].mxu0
  %771 = vmatprep.mubr.bf16.mxu0 0
  %772 = vmatmul.mubr.bf16.gmra.mrb[0].mxu0 %v513
  %v773 = vpop.f32.mrb[0].mxu0
  %v774 = vadd.f32 0.0, %v773
  %v775 = vpop.f32.mrb[0].mxu0
  %v776 = vpop.f32.mrb[0].mxu0
  %v777 = vadd.f32 0.0, %v776
  %v778 = vpop.f32.mrb[0].mxu0
  %779 = vmatprep.mubr.bf16.mxu0 0
  %780 = vmatmul.mubr.bf16.gmra.mrb[0].mxu0 %v514
  %v781 = vpop.f32.mrb[0].mxu0
  %v782 = vadd.f32 0.0, %v781
  %v783 = vpop.f32.mrb[0].mxu0
  %v784 = vpop.f32.mrb[0].mxu0
  %v785 = vadd.f32 0.0, %v784
  %v786 = vpop.f32.mrb[0].mxu0
  %787 = vdwg.mxu0
  %v788 = vadd.f32 %v675, %v726
  %v789 = vadd.f32 %v676, %v729
  %v790 = vadd.f32 %v677, %v734
  %v791 = vadd.f32 %v678, %v737
  %v792 = vadd.f32 %v679, %v742
  %v793 = vadd.f32 %v680, %v745
  %v794 = vadd.f32 %v681, %v750
  %v795 = vadd.f32 %v682, %v753
  %v796 = vadd.f32 %v683, %v758
  %v797 = vadd.f32 %v684, %v761
  %v798 = vadd.f32 %v685, %v766
  %v799 = vadd.f32 %v686, %v769
  %v800 = vadd.f32 %v687, %v774
  %v801 = vadd.f32 %v688, %v777
  %v802 = vadd.f32 %v689, %v782
  %v803 = vadd.f32 %v690, %v785
  %vm804 = vcmask 64512
  %805 = vst.msk [vmem:[#allocation2] sm:$0xff] %vm804, %v788
  %806 = vst.msk [vmem:[#allocation2 + $0x8] sm:$0xff] %vm804, %v789
  %807 = vst.msk [vmem:[#allocation2 + $0x10] sm:$0xff] %vm804, %v790
  %808 = vst.msk [vmem:[#allocation2 + $0x18] sm:$0xff] %vm804, %v791
  %809 = vst.msk [vmem:[#allocation2 + $0x20] sm:$0xff] %vm804, %v792
  %810 = vst.msk [vmem:[#allocation2 + $0x28] sm:$0xff] %vm804, %v793
  %811 = vst.msk [vmem:[#allocation2 + $0x30] sm:$0xff] %vm804, %v794
  %812 = vst.msk [vmem:[#allocation2 + $0x38] sm:$0xff] %vm804, %v795
  %813 = vst.msk [vmem:[#allocation2 + $0x40] sm:$0xff] %vm804, %v796
  %814 = vst.msk [vmem:[#allocation2 + $0x48] sm:$0xff] %vm804, %v797
  %815 = vst.msk [vmem:[#allocation2 + $0x50] sm:$0xff] %vm804, %v798
  %816 = vst.msk [vmem:[#allocation2 + $0x58] sm:$0xff] %vm804, %v799
  %817 = vst.msk [vmem:[#allocation2 + $0x60] sm:$0xff] %vm804, %v800
  %818 = vst.msk [vmem:[#allocation2 + $0x68] sm:$0xff] %vm804, %v801
  %819 = vst.msk [vmem:[#allocation2 + $0x70] sm:$0xff] %vm804, %v802
  %820 = vst.msk [vmem:[#allocation2 + $0x78] sm:$0xff] %vm804, %v803
  // Predicated region
  $region34: #{efficientnet_multilabel_forward.1} parent=0 // pred_check
    %p821 = pneg %p27
  $region35: #{efficientnet_multilabel_forward.1} parent=0 // pred_check_branch
    %823 = sbr.rel (%p821) target = $region37
  $region36: #{efficientnet_multilabel_forward.1} parent=0 // pred_region
    %v824 = vld [vmem:[#allocation2] sm:$0xff]
    %v825 = vld [vmem:[#allocation2 + $0x8] sm:$0xff]
    %v826 = vld [vmem:[#allocation2 + $0x10] sm:$0xff]
    %v827 = vld [vmem:[#allocation2 + $0x18] sm:$0xff]
    %v828 = vld [vmem:[#allocation2 + $0x20] sm:$0xff]
    %v829 = vld [vmem:[#allocation2 + $0x28] sm:$0xff]
    %v830 = vld [vmem:[#allocation2 + $0x30] sm:$0xff]
    %v831 = vld [vmem:[#allocation2 + $0x38] sm:$0xff]
    %v832 = vld [vmem:[#allocation2 + $0x40] sm:$0xff]
    %v833 = vld [vmem:[#allocation2 + $0x48] sm:$0xff]
    %v834 = vld [vmem:[#allocation2 + $0x50] sm:$0xff]
    %v835 = vld [vmem:[#allocation2 + $0x58] sm:$0xff]
    %v836 = vld [vmem:[#allocation2 + $0x60] sm:$0xff]
    %v837 = vld [vmem:[#allocation2 + $0x68] sm:$0xff]
    %v838 = vld [vmem:[#allocation2 + $0x70] sm:$0xff]
    %v839 = vld [vmem:[#allocation2 + $0x78] sm:$0xff]
    %v840 = vmul.f32 %v824, 0.015625
    %v841 = vmul.f32 %v825, 0.015625
    %v842 = vmul.f32 %v826, 0.015625
    %v843 = vmul.f32 %v827, 0.015625
    %v844 = vmul.f32 %v828, 0.015625
    %v845 = vmul.f32 %v829, 0.015625
    %v846 = vmul.f32 %v830, 0.015625
    %v847 = vmul.f32 %v831, 0.015625
    %v848 = vmul.f32 %v832, 0.015625
    %v849 = vmul.f32 %v833, 0.015625
    %v850 = vmul.f32 %v834, 0.015625
    %v851 = vmul.f32 %v835, 0.015625
    %v852 = vmul.f32 %v836, 0.015625
    %v853 = vmul.f32 %v837, 0.015625
    %v854 = vmul.f32 %v838, 0.015625
    %v855 = vmul.f32 %v839, 0.015625
    %v856 = vld [vmem:[%s3] sm:$0xff]
    %v857 = vld [vmem:[%s3 + $0x8] sm:$0xff]
    %v858 = vld [vmem:[%s3 + $0x10] sm:$0xff]
    %v859 = vld [vmem:[%s3 + $0x18] sm:$0xff]
    %v860 = vld [vmem:[%s3 + $0x20] sm:$0xff]
    %v861 = vld [vmem:[%s3 + $0x28] sm:$0xff]
    %v862 = vld [vmem:[%s3 + $0x30] sm:$0xff]
    %v863 = vld [vmem:[%s3 + $0x38] sm:$0xff]
    %v864 = vld [vmem:[%s3 + $0x40] sm:$0xff]
    %v865 = vld [vmem:[%s3 + $0x48] sm:$0xff]
    %v866 = vld [vmem:[%s3 + $0x50] sm:$0xff]
    %v867 = vld [vmem:[%s3 + $0x58] sm:$0xff]
    %v868 = vld [vmem:[%s3 + $0x60] sm:$0xff]
    %v869 = vld [vmem:[%s3 + $0x68] sm:$0xff]
    %v870 = vld [vmem:[%s3 + $0x70] sm:$0xff]
    %v871 = vld [vmem:[%s3 + $0x78] sm:$0xff]
    %v872 = vld [vmem:[%s3 + $0x80] sm:$0xff]
    %v873 = vld [vmem:[%s3 + $0x88] sm:$0xff]
    %v874 = vld [vmem:[%s3 + $0x90] sm:$0xff]
    %v875 = vld [vmem:[%s3 + $0x98] sm:$0xff]
    %v876 = vld [vmem:[%s3 + $0xa0] sm:$0xff]
    %v877 = vld [vmem:[%s3 + $0xa8] sm:$0xff]
    %v878 = vld [vmem:[%s3 + $0xb0] sm:$0xff]
    %v879 = vld [vmem:[%s3 + $0xb8] sm:$0xff]
    %v880 = vld [vmem:[%s3 + $0xc0] sm:$0xff]
    %v881 = vld [vmem:[%s3 + $0xc8] sm:$0xff]
    %v882 = vld [vmem:[%s3 + $0xd0] sm:$0xff]
    %v883 = vld [vmem:[%s3 + $0xd8] sm:$0xff]
    %v884 = vld [vmem:[%s3 + $0xe0] sm:$0xff]
    %v885 = vld [vmem:[%s3 + $0xe8] sm:$0xff]
    %v886 = vld [vmem:[%s3 + $0xf0] sm:$0xff]
    %v887 = vld [vmem:[%s3 + $0xf8] sm:$0xff]
    %v888 = vld [vmem:[%s3 + $0x100] sm:$0xff]
    %v889 = vld [vmem:[%s3 + $0x108] sm:$0xff]
    %v890 = vld [vmem:[%s3 + $0x110] sm:$0xff]
    %v891 = vld [vmem:[%s3 + $0x118] sm:$0xff]
    %v892 = vld [vmem:[%s3 + $0x120] sm:$0xff]
    %v893 = vld [vmem:[%s3 + $0x128] sm:$0xff]
    %v894 = vld [vmem:[%s3 + $0x130] sm:$0xff]
    %v895 = vld [vmem:[%s3 + $0x138] sm:$0xff]
    %v896 = vld [vmem:[%s3 + $0x140] sm:$0xff]
    %v897 = vld [vmem:[%s3 + $0x148] sm:$0xff]
    %v898 = vld [vmem:[%s3 + $0x150] sm:$0xff]
    %v899 = vld [vmem:[%s3 + $0x158] sm:$0xff]
    %v900 = vld [vmem:[%s3 + $0x160] sm:$0xff]
    %v901 = vld [vmem:[%s3 + $0x168] sm:$0xff]
    %v902 = vld [vmem:[%s3 + $0x170] sm:$0xff]
    %v903 = vld [vmem:[%s3 + $0x178] sm:$0xff]
    %v904 = vld [vmem:[%s3 + $0x180] sm:$0xff]
    %v905 = vld [vmem:[%s3 + $0x188] sm:$0xff]
    %v906 = vld [vmem:[%s3 + $0x190] sm:$0xff]
    %v907 = vld [vmem:[%s3 + $0x198] sm:$0xff]
    %v908 = vld [vmem:[%s3 + $0x1a0] sm:$0xff]
    %v909 = vld [vmem:[%s3 + $0x1a8] sm:$0xff]
    %v910 = vld [vmem:[%s3 + $0x1b0] sm:$0xff]
    %v911 = vld [vmem:[%s3 + $0x1b8] sm:$0xff]
    %v912 = vld [vmem:[%s3 + $0x1c0] sm:$0xff]
    %v913 = vld [vmem:[%s3 + $0x1c8] sm:$0xff]
    %v914 = vld [vmem:[%s3 + $0x1d0] sm:$0xff]
    %v915 = vld [vmem:[%s3 + $0x1d8] sm:$0xff]
    %v916 = vld [vmem:[%s3 + $0x1e0] sm:$0xff]
    %v917 = vld [vmem:[%s3 + $0x1e8] sm:$0xff]
    %v918 = vld [vmem:[%s3 + $0x1f0] sm:$0xff]
    %v919 = vld [vmem:[%s3 + $0x1f8] sm:$0xff]
    %v920 = vld [vmem:[%s3 + $0x200] sm:$0xff]
    %v921 = vld [vmem:[%s3 + $0x208] sm:$0xff]
    %v922 = vld [vmem:[%s3 + $0x210] sm:$0xff]
    %v923 = vld [vmem:[%s3 + $0x218] sm:$0xff]
    %v924 = vld [vmem:[%s3 + $0x220] sm:$0xff]
    %v925 = vld [vmem:[%s3 + $0x228] sm:$0xff]
    %v926 = vld [vmem:[%s3 + $0x230] sm:$0xff]
    %v927 = vld [vmem:[%s3 + $0x238] sm:$0xff]
    %v928 = vld [vmem:[%s3 + $0x240] sm:$0xff]
    %v929 = vld [vmem:[%s3 + $0x248] sm:$0xff]
    %v930 = vld [vmem:[%s3 + $0x250] sm:$0xff]
    %v931 = vld [vmem:[%s3 + $0x258] sm:$0xff]
    %v932 = vld [vmem:[%s3 + $0x260] sm:$0xff]
    %v933 = vld [vmem:[%s3 + $0x268] sm:$0xff]
    %v934 = vld [vmem:[%s3 + $0x270] sm:$0xff]
    %v935 = vld [vmem:[%s3 + $0x278] sm:$0xff]
    %v936 = vld [vmem:[%s3 + $0x280] sm:$0xff]
    %v937 = vld [vmem:[%s3 + $0x288] sm:$0xff]
    %v938 = vld [vmem:[%s3 + $0x290] sm:$0xff]
    %v939 = vld [vmem:[%s3 + $0x298] sm:$0xff]
    %v940 = vld [vmem:[%s3 + $0x2a0] sm:$0xff]
    %v941 = vld [vmem:[%s3 + $0x2a8] sm:$0xff]
    %v942 = vld [vmem:[%s3 + $0x2b0] sm:$0xff]
    %v943 = vld [vmem:[%s3 + $0x2b8] sm:$0xff]
    %v944 = vld [vmem:[%s3 + $0x2c0] sm:$0xff]
    %v945 = vld [vmem:[%s3 + $0x2c8] sm:$0xff]
    %v946 = vld [vmem:[%s3 + $0x2d0] sm:$0xff]
    %v947 = vld [vmem:[%s3 + $0x2d8] sm:$0xff]
    %v948 = vld [vmem:[%s3 + $0x2e0] sm:$0xff]
    %v949 = vld [vmem:[%s3 + $0x2e8] sm:$0xff]
    %v950 = vld [vmem:[%s3 + $0x2f0] sm:$0xff]
    %v951 = vld [vmem:[%s3 + $0x2f8] sm:$0xff]
    %v952 = vld [vmem:[%s3 + $0x300] sm:$0xff]
    %v953 = vld [vmem:[%s3 + $0x308] sm:$0xff]
    %v954 = vld [vmem:[%s3 + $0x310] sm:$0xff]
    %v955 = vld [vmem:[%s3 + $0x318] sm:$0xff]
    %v956 = vld [vmem:[%s3 + $0x320] sm:$0xff]
    %v957 = vld [vmem:[%s3 + $0x328] sm:$0xff]
    %v958 = vld [vmem:[%s3 + $0x330] sm:$0xff]
    %v959 = vld [vmem:[%s3 + $0x338] sm:$0xff]
    %v960 = vld [vmem:[%s3 + $0x340] sm:$0xff]
    %v961 = vld [vmem:[%s3 + $0x348] sm:$0xff]
    %v962 = vld [vmem:[%s3 + $0x350] sm:$0xff]
    %v963 = vld [vmem:[%s3 + $0x358] sm:$0xff]
    %v964 = vld [vmem:[%s3 + $0x360] sm:$0xff]
    %v965 = vld [vmem:[%s3 + $0x368] sm:$0xff]
    %v966 = vld [vmem:[%s3 + $0x370] sm:$0xff]
    %v967 = vld [vmem:[%s3 + $0x378] sm:$0xff]
    %v968 = vld [vmem:[%s3 + $0x380] sm:$0xff]
    %v969 = vld [vmem:[%s3 + $0x388] sm:$0xff]
    %v970 = vld [vmem:[%s3 + $0x390] sm:$0xff]
    %v971 = vld [vmem:[%s3 + $0x398] sm:$0xff]
    %v972 = vld [vmem:[%s3 + $0x3a0] sm:$0xff]
    %v973 = vld [vmem:[%s3 + $0x3a8] sm:$0xff]
    %v974 = vld [vmem:[%s3 + $0x3b0] sm:$0xff]
    %v975 = vld [vmem:[%s3 + $0x3b8] sm:$0xff]
    %v976 = vld [vmem:[%s3 + $0x3c0] sm:$0xff]
    %v977 = vld [vmem:[%s3 + $0x3c8] sm:$0xff]
    %v978 = vld [vmem:[%s3 + $0x3d0] sm:$0xff]
    %v979 = vld [vmem:[%s3 + $0x3d8] sm:$0xff]
    %v980 = vld [vmem:[%s3 + $0x3e0] sm:$0xff]
    %v981 = vld [vmem:[%s3 + $0x3e8] sm:$0xff]
    %v982 = vld [vmem:[%s3 + $0x3f0] sm:$0xff]
    %v983 = vld [vmem:[%s3 + $0x3f8] sm:$0xff]
    %v984 = vld [vmem:[%s4] sm:$0xff]
    %v985 = vld [vmem:[%s4 + $0x8] sm:$0xff]
    %v986 = vld [vmem:[%s4 + $0x10] sm:$0xff]
    %v987 = vld [vmem:[%s4 + $0x18] sm:$0xff]
    %v988 = vld [vmem:[%s4 + $0x20] sm:$0xff]
    %v989 = vld [vmem:[%s4 + $0x28] sm:$0xff]
    %v990 = vld [vmem:[%s4 + $0x30] sm:$0xff]
    %v991 = vld [vmem:[%s4 + $0x38] sm:$0xff]
    %v992 = vld [vmem:[%s4 + $0x40] sm:$0xff]
    %v993 = vld [vmem:[%s4 + $0x48] sm:$0xff]
    %v994 = vld [vmem:[%s4 + $0x50] sm:$0xff]
    %v995 = vld [vmem:[%s4 + $0x58] sm:$0xff]
    %v996 = vld [vmem:[%s4 + $0x60] sm:$0xff]
    %v997 = vld [vmem:[%s4 + $0x68] sm:$0xff]
    %v998 = vld [vmem:[%s4 + $0x70] sm:$0xff]
    %v999 = vld [vmem:[%s4 + $0x78] sm:$0xff]
    %v1000 = vld [vmem:[%s4 + $0x80] sm:$0xff]
    %v1001 = vld [vmem:[%s4 + $0x88] sm:$0xff]
    %v1002 = vld [vmem:[%s4 + $0x90] sm:$0xff]
    %v1003 = vld [vmem:[%s4 + $0x98] sm:$0xff]
    %v1004 = vld [vmem:[%s4 + $0xa0] sm:$0xff]
    %v1005 = vld [vmem:[%s4 + $0xa8] sm:$0xff]
    %v1006 = vld [vmem:[%s4 + $0xb0] sm:$0xff]
    %v1007 = vld [vmem:[%s4 + $0xb8] sm:$0xff]
    %v1008 = vld [vmem:[%s4 + $0xc0] sm:$0xff]
    %v1009 = vld [vmem:[%s4 + $0xc8] sm:$0xff]
    %v1010 = vld [vmem:[%s4 + $0xd0] sm:$0xff]
    %v1011 = vld [vmem:[%s4 + $0xd8] sm:$0xff]
    %v1012 = vld [vmem:[%s4 + $0xe0] sm:$0xff]
    %v1013 = vld [vmem:[%s4 + $0xe8] sm:$0xff]
    %v1014 = vld [vmem:[%s4 + $0xf0] sm:$0xff]
    %v1015 = vld [vmem:[%s4 + $0xf8] sm:$0xff]
    %v1016 = vld [vmem:[%s4 + $0x100] sm:$0xff]
    %v1017 = vld [vmem:[%s4 + $0x108] sm:$0xff]
    %v1018 = vld [vmem:[%s4 + $0x110] sm:$0xff]
    %v1019 = vld [vmem:[%s4 + $0x118] sm:$0xff]
    %v1020 = vld [vmem:[%s4 + $0x120] sm:$0xff]
    %v1021 = vld [vmem:[%s4 + $0x128] sm:$0xff]
    %v1022 = vld [vmem:[%s4 + $0x130] sm:$0xff]
    %v1023 = vld [vmem:[%s4 + $0x138] sm:$0xff]
    %v1024 = vld [vmem:[%s4 + $0x140] sm:$0xff]
    %v1025 = vld [vmem:[%s4 + $0x148] sm:$0xff]
    %v1026 = vld [vmem:[%s4 + $0x150] sm:$0xff]
    %v1027 = vld [vmem:[%s4 + $0x158] sm:$0xff]
    %v1028 = vld [vmem:[%s4 + $0x160] sm:$0xff]
    %v1029 = vld [vmem:[%s4 + $0x168] sm:$0xff]
    %v1030 = vld [vmem:[%s4 + $0x170] sm:$0xff]
    %v1031 = vld [vmem:[%s4 + $0x178] sm:$0xff]
    %v1032 = vld [vmem:[%s4 + $0x180] sm:$0xff]
    %v1033 = vld [vmem:[%s4 + $0x188] sm:$0xff]
    %v1034 = vld [vmem:[%s4 + $0x190] sm:$0xff]
    %v1035 = vld [vmem:[%s4 + $0x198] sm:$0xff]
    %v1036 = vld [vmem:[%s4 + $0x1a0] sm:$0xff]
    %v1037 = vld [vmem:[%s4 + $0x1a8] sm:$0xff]
    %v1038 = vld [vmem:[%s4 + $0x1b0] sm:$0xff]
    %v1039 = vld [vmem:[%s4 + $0x1b8] sm:$0xff]
    %v1040 = vld [vmem:[%s4 + $0x1c0] sm:$0xff]
    %v1041 = vld [vmem:[%s4 + $0x1c8] sm:$0xff]
    %v1042 = vld [vmem:[%s4 + $0x1d0] sm:$0xff]
    %v1043 = vld [vmem:[%s4 + $0x1d8] sm:$0xff]
    %v1044 = vld [vmem:[%s4 + $0x1e0] sm:$0xff]
    %v1045 = vld [vmem:[%s4 + $0x1e8] sm:$0xff]
    %v1046 = vld [vmem:[%s4 + $0x1f0] sm:$0xff]
    %v1047 = vld [vmem:[%s4 + $0x1f8] sm:$0xff]
    %v1048 = vld [vmem:[%s4 + $0x200] sm:$0xff]
    %v1049 = vld [vmem:[%s4 + $0x208] sm:$0xff]
    %v1050 = vld [vmem:[%s4 + $0x210] sm:$0xff]
    %v1051 = vld [vmem:[%s4 + $0x218] sm:$0xff]
    %v1052 = vld [vmem:[%s4 + $0x220] sm:$0xff]
    %v1053 = vld [vmem:[%s4 + $0x228] sm:$0xff]
    %v1054 = vld [vmem:[%s4 + $0x230] sm:$0xff]
    %v1055 = vld [vmem:[%s4 + $0x238] sm:$0xff]
    %v1056 = vld [vmem:[%s4 + $0x240] sm:$0xff]
    %v1057 = vld [vmem:[%s4 + $0x248] sm:$0xff]
    %v1058 = vld [vmem:[%s4 + $0x250] sm:$0xff]
    %v1059 = vld [vmem:[%s4 + $0x258] sm:$0xff]
    %v1060 = vld [vmem:[%s4 + $0x260] sm:$0xff]
    %v1061 = vld [vmem:[%s4 + $0x268] sm:$0xff]
    %v1062 = vld [vmem:[%s4 + $0x270] sm:$0xff]
    %v1063 = vld [vmem:[%s4 + $0x278] sm:$0xff]
    %v1064 = vld [vmem:[%s4 + $0x280] sm:$0xff]
    %v1065 = vld [vmem:[%s4 + $0x288] sm:$0xff]
    %v1066 = vld [vmem:[%s4 + $0x290] sm:$0xff]
    %v1067 = vld [vmem:[%s4 + $0x298] sm:$0xff]
    %v1068 = vld [vmem:[%s4 + $0x2a0] sm:$0xff]
    %v1069 = vld [vmem:[%s4 + $0x2a8] sm:$0xff]
    %v1070 = vld [vmem:[%s4 + $0x2b0] sm:$0xff]
    %v1071 = vld [vmem:[%s4 + $0x2b8] sm:$0xff]
    %v1072 = vld [vmem:[%s4 + $0x2c0] sm:$0xff]
    %v1073 = vld [vmem:[%s4 + $0x2c8] sm:$0xff]
    %v1074 = vld [vmem:[%s4 + $0x2d0] sm:$0xff]
    %v1075 = vld [vmem:[%s4 + $0x2d8] sm:$0xff]
    %v1076 = vld [vmem:[%s4 + $0x2e0] sm:$0xff]
    %v1077 = vld [vmem:[%s4 + $0x2e8] sm:$0xff]
    %v1078 = vld [vmem:[%s4 + $0x2f0] sm:$0xff]
    %v1079 = vld [vmem:[%s4 + $0x2f8] sm:$0xff]
    %v1080 = vld [vmem:[%s4 + $0x300] sm:$0xff]
    %v1081 = vld [vmem:[%s4 + $0x308] sm:$0xff]
    %v1082 = vld [vmem:[%s4 + $0x310] sm:$0xff]
    %v1083 = vld [vmem:[%s4 + $0x318] sm:$0xff]
    %v1084 = vld [vmem:[%s4 + $0x320] sm:$0xff]
    %v1085 = vld [vmem:[%s4 + $0x328] sm:$0xff]
    %v1086 = vld [vmem:[%s4 + $0x330] sm:$0xff]
    %v1087 = vld [vmem:[%s4 + $0x338] sm:$0xff]
    %v1088 = vld [vmem:[%s4 + $0x340] sm:$0xff]
    %v1089 = vld [vmem:[%s4 + $0x348] sm:$0xff]
    %v1090 = vld [vmem:[%s4 + $0x350] sm:$0xff]
    %v1091 = vld [vmem:[%s4 + $0x358] sm:$0xff]
    %v1092 = vld [vmem:[%s4 + $0x360] sm:$0xff]
    %v1093 = vld [vmem:[%s4 + $0x368] sm:$0xff]
    %v1094 = vld [vmem:[%s4 + $0x370] sm:$0xff]
    %v1095 = vld [vmem:[%s4 + $0x378] sm:$0xff]
    %v1096 = vld [vmem:[%s4 + $0x380] sm:$0xff]
    %v1097 = vld [vmem:[%s4 + $0x388] sm:$0xff]
    %v1098 = vld [vmem:[%s4 + $0x390] sm:$0xff]
    %v1099 = vld [vmem:[%s4 + $0x398] sm:$0xff]
    %v1100 = vld [vmem:[%s4 + $0x3a0] sm:$0xff]
    %v1101 = vld [vmem:[%s4 + $0x3a8] sm:$0xff]
    %v1102 = vld [vmem:[%s4 + $0x3b0] sm:$0xff]
    %v1103 = vld [vmem:[%s4 + $0x3b8] sm:$0xff]
    %v1104 = vld [vmem:[%s4 + $0x3c0] sm:$0xff]
    %v1105 = vld [vmem:[%s4 + $0x3c8] sm:$0xff]
    %v1106 = vld [vmem:[%s4 + $0x3d0] sm:$0xff]
    %v1107 = vld [vmem:[%s4 + $0x3d8] sm:$0xff]
    %v1108 = vld [vmem:[%s4 + $0x3e0] sm:$0xff]
    %v1109 = vld [vmem:[%s4 + $0x3e8] sm:$0xff]
    %v1110 = vld [vmem:[%s4 + $0x3f0] sm:$0xff]
    %v1111 = vld [vmem:[%s4 + $0x3f8] sm:$0xff]
    %1113 = vset.pattern.permute.xlu0 0
    %1114 = vperm.xlu0 %1113, %v984
    %v1115 = vpop.permute.xlu0 %1114
    %1118 = vset.pattern.permute.xlu0 0
    %1119 = vperm.xlu0 %1118, %v985
    %v1120 = vpop.permute.xlu0 %1119
    %1123 = vset.pattern.permute.xlu0 0
    %1124 = vperm.xlu0 %1123, %v986
    %v1125 = vpop.permute.xlu0 %1124
    %1128 = vset.pattern.permute.xlu0 0
    %1129 = vperm.xlu0 %1128, %v987
    %v1130 = vpop.permute.xlu0 %1129
    %1133 = vset.pattern.permute.xlu0 0
    %1134 = vperm.xlu0 %1133, %v988
    %v1135 = vpop.permute.xlu0 %1134
    %1138 = vset.pattern.permute.xlu0 0
    %1139 = vperm.xlu0 %1138, %v989
    %v1140 = vpop.permute.xlu0 %1139
    %1143 = vset.pattern.permute.xlu0 0
    %1144 = vperm.xlu0 %1143, %v990
    %v1145 = vpop.permute.xlu0 %1144
    %1148 = vset.pattern.permute.xlu0 0
    %1149 = vperm.xlu0 %1148, %v991
    %v1150 = vpop.permute.xlu0 %1149
    %1153 = vset.pattern.permute.xlu0 0
    %1154 = vperm.xlu0 %1153, %v992
    %v1155 = vpop.permute.xlu0 %1154
    %1158 = vset.pattern.permute.xlu0 0
    %1159 = vperm.xlu0 %1158, %v993
    %v1160 = vpop.permute.xlu0 %1159
    %1163 = vset.pattern.permute.xlu0 0
    %1164 = vperm.xlu0 %1163, %v994
    %v1165 = vpop.permute.xlu0 %1164
    %1168 = vset.pattern.permute.xlu0 0
    %1169 = vperm.xlu0 %1168, %v995
    %v1170 = vpop.permute.xlu0 %1169
    %1173 = vset.pattern.permute.xlu0 0
    %1174 = vperm.xlu0 %1173, %v996
    %v1175 = vpop.permute.xlu0 %1174
    %1178 = vset.pattern.permute.xlu0 0
    %1179 = vperm.xlu0 %1178, %v997
    %v1180 = vpop.permute.xlu0 %1179
    %1183 = vset.pattern.permute.xlu0 0
    %1184 = vperm.xlu0 %1183, %v998
    %v1185 = vpop.permute.xlu0 %1184
    %1188 = vset.pattern.permute.xlu0 0
    %1189 = vperm.xlu0 %1188, %v999
    %v1190 = vpop.permute.xlu0 %1189
    %1193 = vset.pattern.permute.xlu0 0
    %1194 = vperm.xlu0 %1193, %v1000
    %v1195 = vpop.permute.xlu0 %1194
    %1198 = vset.pattern.permute.xlu0 0
    %1199 = vperm.xlu0 %1198, %v1001
    %v1200 = vpop.permute.xlu0 %1199
    %1203 = vset.pattern.permute.xlu0 0
    %1204 = vperm.xlu0 %1203, %v1002
    %v1205 = vpop.permute.xlu0 %1204
    %1208 = vset.pattern.permute.xlu0 0
    %1209 = vperm.xlu0 %1208, %v1003
    %v1210 = vpop.permute.xlu0 %1209
    %1213 = vset.pattern.permute.xlu0 0
    %1214 = vperm.xlu0 %1213, %v1004
    %v1215 = vpop.permute.xlu0 %1214
    %1218 = vset.pattern.permute.xlu0 0
    %1219 = vperm.xlu0 %1218, %v1005
    %v1220 = vpop.permute.xlu0 %1219
    %1223 = vset.pattern.permute.xlu0 0
    %1224 = vperm.xlu0 %1223, %v1006
    %v1225 = vpop.permute.xlu0 %1224
    %1228 = vset.pattern.permute.xlu0 0
    %1229 = vperm.xlu0 %1228, %v1007
    %v1230 = vpop.permute.xlu0 %1229
    %1233 = vset.pattern.permute.xlu0 0
    %1234 = vperm.xlu0 %1233, %v1008
    %v1235 = vpop.permute.xlu0 %1234
    %1238 = vset.pattern.permute.xlu0 0
    %1239 = vperm.xlu0 %1238, %v1009
    %v1240 = vpop.permute.xlu0 %1239
    %1243 = vset.pattern.permute.xlu0 0
    %1244 = vperm.xlu0 %1243, %v1010
    %v1245 = vpop.permute.xlu0 %1244
    %1248 = vset.pattern.permute.xlu0 0
    %1249 = vperm.xlu0 %1248, %v1011
    %v1250 = vpop.permute.xlu0 %1249
    %1253 = vset.pattern.permute.xlu0 0
    %1254 = vperm.xlu0 %1253, %v1012
    %v1255 = vpop.permute.xlu0 %1254
    %1258 = vset.pattern.permute.xlu0 0
    %1259 = vperm.xlu0 %1258, %v1013
    %v1260 = vpop.permute.xlu0 %1259
    %1263 = vset.pattern.permute.xlu0 0
    %1264 = vperm.xlu0 %1263, %v1014
    %v1265 = vpop.permute.xlu0 %1264
    %1268 = vset.pattern.permute.xlu0 0
    %1269 = vperm.xlu0 %1268, %v1015
    %v1270 = vpop.permute.xlu0 %1269
    %1273 = vset.pattern.permute.xlu0 0
    %1274 = vperm.xlu0 %1273, %v1016
    %v1275 = vpop.permute.xlu0 %1274
    %1278 = vset.pattern.permute.xlu0 0
    %1279 = vperm.xlu0 %1278, %v1017
    %v1280 = vpop.permute.xlu0 %1279
    %1283 = vset.pattern.permute.xlu0 0
    %1284 = vperm.xlu0 %1283, %v1018
    %v1285 = vpop.permute.xlu0 %1284
    %1288 = vset.pattern.permute.xlu0 0
    %1289 = vperm.xlu0 %1288, %v1019
    %v1290 = vpop.permute.xlu0 %1289
    %1293 = vset.pattern.permute.xlu0 0
    %1294 = vperm.xlu0 %1293, %v1020
    %v1295 = vpop.permute.xlu0 %1294
    %1298 = vset.pattern.permute.xlu0 0
    %1299 = vperm.xlu0 %1298, %v1021
    %v1300 = vpop.permute.xlu0 %1299
    %1303 = vset.pattern.permute.xlu0 0
    %1304 = vperm.xlu0 %1303, %v1022
    %v1305 = vpop.permute.xlu0 %1304
    %1308 = vset.pattern.permute.xlu0 0
    %1309 = vperm.xlu0 %1308, %v1023
    %v1310 = vpop.permute.xlu0 %1309
    %1313 = vset.pattern.permute.xlu0 0
    %1314 = vperm.xlu0 %1313, %v1024
    %v1315 = vpop.permute.xlu0 %1314
    %1318 = vset.pattern.permute.xlu0 0
    %1319 = vperm.xlu0 %1318, %v1025
    %v1320 = vpop.permute.xlu0 %1319
    %1323 = vset.pattern.permute.xlu0 0
    %1324 = vperm.xlu0 %1323, %v1026
    %v1325 = vpop.permute.xlu0 %1324
    %1328 = vset.pattern.permute.xlu0 0
    %1329 = vperm.xlu0 %1328, %v1027
    %v1330 = vpop.permute.xlu0 %1329
    %1333 = vset.pattern.permute.xlu0 0
    %1334 = vperm.xlu0 %1333, %v1028
    %v1335 = vpop.permute.xlu0 %1334
    %1338 = vset.pattern.permute.xlu0 0
    %1339 = vperm.xlu0 %1338, %v1029
    %v1340 = vpop.permute.xlu0 %1339
    %1343 = vset.pattern.permute.xlu0 0
    %1344 = vperm.xlu0 %1343, %v1030
    %v1345 = vpop.permute.xlu0 %1344
    %1348 = vset.pattern.permute.xlu0 0
    %1349 = vperm.xlu0 %1348, %v1031
    %v1350 = vpop.permute.xlu0 %1349
    %1353 = vset.pattern.permute.xlu0 0
    %1354 = vperm.xlu0 %1353, %v1032
    %v1355 = vpop.permute.xlu0 %1354
    %1358 = vset.pattern.permute.xlu0 0
    %1359 = vperm.xlu0 %1358, %v1033
    %v1360 = vpop.permute.xlu0 %1359
    %1363 = vset.pattern.permute.xlu0 0
    %1364 = vperm.xlu0 %1363, %v1034
    %v1365 = vpop.permute.xlu0 %1364
    %1368 = vset.pattern.permute.xlu0 0
    %1369 = vperm.xlu0 %1368, %v1035
    %v1370 = vpop.permute.xlu0 %1369
    %1373 = vset.pattern.permute.xlu0 0
    %1374 = vperm.xlu0 %1373, %v1036
    %v1375 = vpop.permute.xlu0 %1374
    %1378 = vset.pattern.permute.xlu0 0
    %1379 = vperm.xlu0 %1378, %v1037
    %v1380 = vpop.permute.xlu0 %1379
    %1383 = vset.pattern.permute.xlu0 0
    %1384 = vperm.xlu0 %1383, %v1038
    %v1385 = vpop.permute.xlu0 %1384
    %1388 = vset.pattern.permute.xlu0 0
    %1389 = vperm.xlu0 %1388, %v1039
    %v1390 = vpop.permute.xlu0 %1389
    %1393 = vset.pattern.permute.xlu0 0
    %1394 = vperm.xlu0 %1393, %v1040
    %v1395 = vpop.permute.xlu0 %1394
    %1398 = vset.pattern.permute.xlu0 0
    %1399 = vperm.xlu0 %1398, %v1041
    %v1400 = vpop.permute.xlu0 %1399
    %1403 = vset.pattern.permute.xlu0 0
    %1404 = vperm.xlu0 %1403, %v1042
    %v1405 = vpop.permute.xlu0 %1404
    %1408 = vset.pattern.permute.xlu0 0
    %1409 = vperm.xlu0 %1408, %v1043
    %v1410 = vpop.permute.xlu0 %1409
    %1413 = vset.pattern.permute.xlu0 0
    %1414 = vperm.xlu0 %1413, %v1044
    %v1415 = vpop.permute.xlu0 %1414
    %1418 = vset.pattern.permute.xlu0 0
    %1419 = vperm.xlu0 %1418, %v1045
    %v1420 = vpop.permute.xlu0 %1419
    %1423 = vset.pattern.permute.xlu0 0
    %1424 = vperm.xlu0 %1423, %v1046
    %v1425 = vpop.permute.xlu0 %1424
    %1428 = vset.pattern.permute.xlu0 0
    %1429 = vperm.xlu0 %1428, %v1047
    %v1430 = vpop.permute.xlu0 %1429
    %1433 = vset.pattern.permute.xlu0 0
    %1434 = vperm.xlu0 %1433, %v1048
    %v1435 = vpop.permute.xlu0 %1434
    %1438 = vset.pattern.permute.xlu0 0
    %1439 = vperm.xlu0 %1438, %v1049
    %v1440 = vpop.permute.xlu0 %1439
    %1443 = vset.pattern.permute.xlu0 0
    %1444 = vperm.xlu0 %1443, %v1050
    %v1445 = vpop.permute.xlu0 %1444
    %1448 = vset.pattern.permute.xlu0 0
    %1449 = vperm.xlu0 %1448, %v1051
    %v1450 = vpop.permute.xlu0 %1449
    %1453 = vset.pattern.permute.xlu0 0
    %1454 = vperm.xlu0 %1453, %v1052
    %v1455 = vpop.permute.xlu0 %1454
    %1458 = vset.pattern.permute.xlu0 0
    %1459 = vperm.xlu0 %1458, %v1053
    %v1460 = vpop.permute.xlu0 %1459
    %1463 = vset.pattern.permute.xlu0 0
    %1464 = vperm.xlu0 %1463, %v1054
    %v1465 = vpop.permute.xlu0 %1464
    %1468 = vset.pattern.permute.xlu0 0
    %1469 = vperm.xlu0 %1468, %v1055
    %v1470 = vpop.permute.xlu0 %1469
    %1473 = vset.pattern.permute.xlu0 0
    %1474 = vperm.xlu0 %1473, %v1056
    %v1475 = vpop.permute.xlu0 %1474
    %1478 = vset.pattern.permute.xlu0 0
    %1479 = vperm.xlu0 %1478, %v1057
    %v1480 = vpop.permute.xlu0 %1479
    %1483 = vset.pattern.permute.xlu0 0
    %1484 = vperm.xlu0 %1483, %v1058
    %v1485 = vpop.permute.xlu0 %1484
    %1488 = vset.pattern.permute.xlu0 0
    %1489 = vperm.xlu0 %1488, %v1059
    %v1490 = vpop.permute.xlu0 %1489
    %1493 = vset.pattern.permute.xlu0 0
    %1494 = vperm.xlu0 %1493, %v1060
    %v1495 = vpop.permute.xlu0 %1494
    %1498 = vset.pattern.permute.xlu0 0
    %1499 = vperm.xlu0 %1498, %v1061
    %v1500 = vpop.permute.xlu0 %1499
    %1503 = vset.pattern.permute.xlu0 0
    %1504 = vperm.xlu0 %1503, %v1062
    %v1505 = vpop.permute.xlu0 %1504
    %1508 = vset.pattern.permute.xlu0 0
    %1509 = vperm.xlu0 %1508, %v1063
    %v1510 = vpop.permute.xlu0 %1509
    %1513 = vset.pattern.permute.xlu0 0
    %1514 = vperm.xlu0 %1513, %v1064
    %v1515 = vpop.permute.xlu0 %1514
    %1518 = vset.pattern.permute.xlu0 0
    %1519 = vperm.xlu0 %1518, %v1065
    %v1520 = vpop.permute.xlu0 %1519
    %1523 = vset.pattern.permute.xlu0 0
    %1524 = vperm.xlu0 %1523, %v1066
    %v1525 = vpop.permute.xlu0 %1524
    %1528 = vset.pattern.permute.xlu0 0
    %1529 = vperm.xlu0 %1528, %v1067
    %v1530 = vpop.permute.xlu0 %1529
    %1533 = vset.pattern.permute.xlu0 0
    %1534 = vperm.xlu0 %1533, %v1068
    %v1535 = vpop.permute.xlu0 %1534
    %1538 = vset.pattern.permute.xlu0 0
    %1539 = vperm.xlu0 %1538, %v1069
    %v1540 = vpop.permute.xlu0 %1539
    %1543 = vset.pattern.permute.xlu0 0
    %1544 = vperm.xlu0 %1543, %v1070
    %v1545 = vpop.permute.xlu0 %1544
    %1548 = vset.pattern.permute.xlu0 0
    %1549 = vperm.xlu0 %1548, %v1071
    %v1550 = vpop.permute.xlu0 %1549
    %1553 = vset.pattern.permute.xlu0 0
    %1554 = vperm.xlu0 %1553, %v1072
    %v1555 = vpop.permute.xlu0 %1554
    %1558 = vset.pattern.permute.xlu0 0
    %1559 = vperm.xlu0 %1558, %v1073
    %v1560 = vpop.permute.xlu0 %1559
    %1563 = vset.pattern.permute.xlu0 0
    %1564 = vperm.xlu0 %1563, %v1074
    %v1565 = vpop.permute.xlu0 %1564
    %1568 = vset.pattern.permute.xlu0 0
    %1569 = vperm.xlu0 %1568, %v1075
    %v1570 = vpop.permute.xlu0 %1569
    %1573 = vset.pattern.permute.xlu0 0
    %1574 = vperm.xlu0 %1573, %v1076
    %v1575 = vpop.permute.xlu0 %1574
    %1578 = vset.pattern.permute.xlu0 0
    %1579 = vperm.xlu0 %1578, %v1077
    %v1580 = vpop.permute.xlu0 %1579
    %1583 = vset.pattern.permute.xlu0 0
    %1584 = vperm.xlu0 %1583, %v1078
    %v1585 = vpop.permute.xlu0 %1584
    %1588 = vset.pattern.permute.xlu0 0
    %1589 = vperm.xlu0 %1588, %v1079
    %v1590 = vpop.permute.xlu0 %1589
    %1593 = vset.pattern.permute.xlu0 0
    %1594 = vperm.xlu0 %1593, %v1080
    %v1595 = vpop.permute.xlu0 %1594
    %1598 = vset.pattern.permute.xlu0 0
    %1599 = vperm.xlu0 %1598, %v1081
    %v1600 = vpop.permute.xlu0 %1599
    %1603 = vset.pattern.permute.xlu0 0
    %1604 = vperm.xlu0 %1603, %v1082
    %v1605 = vpop.permute.xlu0 %1604
    %1608 = vset.pattern.permute.xlu0 0
    %1609 = vperm.xlu0 %1608, %v1083
    %v1610 = vpop.permute.xlu0 %1609
    %1613 = vset.pattern.permute.xlu0 0
    %1614 = vperm.xlu0 %1613, %v1084
    %v1615 = vpop.permute.xlu0 %1614
    %1618 = vset.pattern.permute.xlu0 0
    %1619 = vperm.xlu0 %1618, %v1085
    %v1620 = vpop.permute.xlu0 %1619
    %1623 = vset.pattern.permute.xlu0 0
    %1624 = vperm.xlu0 %1623, %v1086
    %v1625 = vpop.permute.xlu0 %1624
    %1628 = vset.pattern.permute.xlu0 0
    %1629 = vperm.xlu0 %1628, %v1087
    %v1630 = vpop.permute.xlu0 %1629
    %1633 = vset.pattern.permute.xlu0 0
    %1634 = vperm.xlu0 %1633, %v1088
    %v1635 = vpop.permute.xlu0 %1634
    %1638 = vset.pattern.permute.xlu0 0
    %1639 = vperm.xlu0 %1638, %v1089
    %v1640 = vpop.permute.xlu0 %1639
    %1643 = vset.pattern.permute.xlu0 0
    %1644 = vperm.xlu0 %1643, %v1090
    %v1645 = vpop.permute.xlu0 %1644
    %1648 = vset.pattern.permute.xlu0 0
    %1649 = vperm.xlu0 %1648, %v1091
    %v1650 = vpop.permute.xlu0 %1649
    %1653 = vset.pattern.permute.xlu0 0
    %1654 = vperm.xlu0 %1653, %v1092
    %v1655 = vpop.permute.xlu0 %1654
    %1658 = vset.pattern.permute.xlu0 0
    %1659 = vperm.xlu0 %1658, %v1093
    %v1660 = vpop.permute.xlu0 %1659
    %1663 = vset.pattern.permute.xlu0 0
    %1664 = vperm.xlu0 %1663, %v1094
    %v1665 = vpop.permute.xlu0 %1664
    %1668 = vset.pattern.permute.xlu0 0
    %1669 = vperm.xlu0 %1668, %v1095
    %v1670 = vpop.permute.xlu0 %1669
    %1673 = vset.pattern.permute.xlu0 0
    %1674 = vperm.xlu0 %1673, %v1096
    %v1675 = vpop.permute.xlu0 %1674
    %1678 = vset.pattern.permute.xlu0 0
    %1679 = vperm.xlu0 %1678, %v1097
    %v1680 = vpop.permute.xlu0 %1679
    %1683 = vset.pattern.permute.xlu0 0
    %1684 = vperm.xlu0 %1683, %v1098
    %v1685 = vpop.permute.xlu0 %1684
    %1688 = vset.pattern.permute.xlu0 0
    %1689 = vperm.xlu0 %1688, %v1099
    %v1690 = vpop.permute.xlu0 %1689
    %1693 = vset.pattern.permute.xlu0 0
    %1694 = vperm.xlu0 %1693, %v1100
    %v1695 = vpop.permute.xlu0 %1694
    %1698 = vset.pattern.permute.xlu0 0
    %1699 = vperm.xlu0 %1698, %v1101
    %v1700 = vpop.permute.xlu0 %1699
    %1703 = vset.pattern.permute.xlu0 0
    %1704 = vperm.xlu0 %1703, %v1102
    %v1705 = vpop.permute.xlu0 %1704
    %1708 = vset.pattern.permute.xlu0 0
    %1709 = vperm.xlu0 %1708, %v1103
    %v1710 = vpop.permute.xlu0 %1709
    %1713 = vset.pattern.permute.xlu0 0
    %1714 = vperm.xlu0 %1713, %v1104
    %v1715 = vpop.permute.xlu0 %1714
    %1718 = vset.pattern.permute.xlu0 0
    %1719 = vperm.xlu0 %1718, %v1105
    %v1720 = vpop.permute.xlu0 %1719
    %1723 = vset.pattern.permute.xlu0 0
    %1724 = vperm.xlu0 %1723, %v1106
    %v1725 = vpop.permute.xlu0 %1724
    %1728 = vset.pattern.permute.xlu0 0
    %1729 = vperm.xlu0 %1728, %v1107
    %v1730 = vpop.permute.xlu0 %1729
    %1733 = vset.pattern.permute.xlu0 0
    %1734 = vperm.xlu0 %1733, %v1108
    %v1735 = vpop.permute.xlu0 %1734
    %1738 = vset.pattern.permute.xlu0 0
    %1739 = vperm.xlu0 %1738, %v1109
    %v1740 = vpop.permute.xlu0 %1739
    %1743 = vset.pattern.permute.xlu0 0
    %1744 = vperm.xlu0 %1743, %v1110
    %v1745 = vpop.permute.xlu0 %1744
    %1748 = vset.pattern.permute.xlu0 0
    %1749 = vperm.xlu0 %1748, %v1111
    %v1750 = vpop.permute.xlu0 %1749
    %1752 = vmatprep.subr.mxu0 0.0
    %1753 = vmatpush1.msra.mxu0 %v840
    %1754 = vmatprep.subr.mxu0 0.0
    %1755 = vmatpush1.msra.mxu0 %v841
    %1756 = vmatprep.subr.mxu0 0.0
    %1757 = vmatpush1.msra.mxu0 %v842
    %1758 = vmatprep.subr.mxu0 0.0
    %1759 = vmatpush1.msra.mxu0 %v843
    %1760 = vmatprep.subr.mxu0 0.0
    %1761 = vmatpush1.msra.mxu0 %v844
    %1762 = vmatprep.subr.mxu0 0.0
    %1763 = vmatpush1.msra.mxu0 %v845
    %1764 = vmatprep.subr.mxu0 0.0
    %1765 = vmatpush1.msra.mxu0 %v846
    %1766 = vmatprep.subr.mxu0 0.0
    %1767 = vmatpush1.msra.mxu0 %v847
    %1768 = vmatprep.subr.mxu0 0.0
    %1769 = vmatpush1.msra.mxu0 %v848
    %1770 = vmatprep.subr.mxu0 0.0
    %1771 = vmatpush1.msra.mxu0 %v849
    %1772 = vmatprep.subr.mxu0 0.0
    %1773 = vmatpush1.msra.mxu0 %v850
    %1774 = vmatprep.subr.mxu0 0.0
    %1775 = vmatpush1.msra.mxu0 %v851
    %1776 = vmatprep.subr.mxu0 0.0
    %1777 = vmatpush1.msra.mxu0 %v852
    %1778 = vmatprep.subr.mxu0 0.0
    %1779 = vmatpush1.msra.mxu0 %v853
    %1780 = vmatprep.subr.mxu0 0.0
    %1781 = vmatpush1.msra.mxu0 %v854
    %1782 = vmatprep.subr.mxu0 0.0
    %1783 = vmatpush1.msra.mxu0 %v855
    %1784 = vmatprep.subr.mxu0 0.0
    %1785 = vmatpush1.msra.mxu0 0.0
    %1786 = vmatprep.subr.mxu0 0.0
    %1787 = vmatpush1.msra.mxu0 0.0
    %1788 = vmatprep.subr.mxu0 0.0
    %1789 = vmatpush1.msra.mxu0 0.0
    %1790 = vmatprep.subr.mxu0 0.0
    %1791 = vmatpush1.msra.mxu0 0.0
    %1792 = vmatprep.subr.mxu0 0.0
    %1793 = vmatpush1.msra.mxu0 0.0
    %1794 = vmatprep.subr.mxu0 0.0
    %1795 = vmatpush1.msra.mxu0 0.0
    %1796 = vmatprep.subr.mxu0 0.0
    %1797 = vmatpush1.msra.mxu0 0.0
    %1798 = vmatprep.subr.mxu0 0.0
    %1799 = vmatpush1.msra.mxu0 0.0
    %1800 = vmatprep.subr.mxu0 0.0
    %1801 = vmatpush1.msra.mxu0 0.0
    %1802 = vmatprep.subr.mxu0 0.0
    %1803 = vmatpush1.msra.mxu0 0.0
    %1804 = vmatprep.subr.mxu0 0.0
    %1805 = vmatpush1.msra.mxu0 0.0
    %1806 = vmatprep.subr.mxu0 0.0
    %1807 = vmatpush1.msra.mxu0 0.0
    %1808 = vmatprep.subr.mxu0 0.0
    %1809 = vmatpush1.msra.mxu0 0.0
    %1810 = vmatprep.subr.mxu0 0.0
    %1811 = vmatpush1.msra.mxu0 0.0
    %1812 = vmatprep.subr.mxu0 0.0
    %1813 = vmatpush1.msra.mxu0 0.0
    %1814 = vmatprep.subr.mxu0 0.0
    %1815 = vmatpush1.msra.mxu0 0.0
    %1816 = vmatprep.mubr.f32.mxu0 0.0
    %1817 = vmatmul.mubr.f32.gmra.mrb[0].mxu0 %v856
    %v1818 = vpop.f32.mrb[0].mxu0
    %v1819 = vadd.f32 %v1115, %v1818
    %v1820 = vpop.f32.mrb[0].mxu0
    %1821 = vmatprep.mubr.f32.mxu0 0.0
    %1822 = vmatmul.mubr.f32.gmra.mrb[0].mxu0 %v857
    %v1823 = vpop.f32.mrb[0].mxu0
    %v1824 = vadd.f32 %v1120, %v1823
    %v1825 = vpop.f32.mrb[0].mxu0
    %1826 = vmatprep.mubr.f32.mxu0 0.0
    %1827 = vmatmul.mubr.f32.gmra.mrb[0].mxu0 %v858
    %v1828 = vpop.f32.mrb[0].mxu0
    %v1829 = vadd.f32 %v1125, %v1828
    %v1830 = vpop.f32.mrb[0].mxu0
    %1831 = vmatprep.mubr.f32.mxu0 0.0
    %1832 = vmatmul.mubr.f32.gmra.mrb[0].mxu0 %v859
    %v1833 = vpop.f32.mrb[0].mxu0
    %v1834 = vadd.f32 %v1130, %v1833
    %v1835 = vpop.f32.mrb[0].mxu0
    %1836 = vmatprep.mubr.f32.mxu0 0.0
    %1837 = vmatmul.mubr.f32.gmra.mrb[0].mxu0 %v860
    %v1838 = vpop.f32.mrb[0].mxu0
    %v1839 = vadd.f32 %v1135, %v1838
    %v1840 = vpop.f32.mrb[0].mxu0
    %1841 = vmatprep.mubr.f32.mxu0 0.0
    %1842 = vmatmul.mubr.f32.gmra.mrb[0].mxu0 %v861
    %v1843 = vpop.f32.mrb[0].mxu0
    %v1844 = vadd.f32 %v1140, %v1843
    %v1845 = vpop.f32.mrb[0].mxu0
    %1846 = vmatprep.mubr.f32.mxu0 0.0
    %1847 = vmatmul.mubr.f32.gmra.mrb[0].mxu0 %v862
    %v1848 = vpop.f32.mrb[0].mxu0
    %v1849 = vadd.f32 %v1145, %v1848
    %v1850 = vpop.f32.mrb[0].mxu0
    %1851 = vmatprep.mubr.f32.mxu0 0.0
    %1852 = vmatmul.mubr.f32.gmra.mrb[0].mxu0 %v863
    %v1853 = vpop.f32.mrb[0].mxu0
    %v1854 = vadd.f32 %v1150, %v1853
    %v1855 = vpop.f32.mrb[0].mxu0
    %1856 = vmatprep.mubr.f32.mxu0 0.0
    %1857 = vmatmul.mubr.f32.gmra.mrb[0].mxu0 %v864
    %v1858 = vpop.f32.mrb[0].mxu0
    %v1859 = vadd.f32 %v1155, %v1858
    %v1860 = vpop.f32.mrb[0].mxu0
    %1861 = vmatprep.mubr.f32.mxu0 0.0
    %1862 = vmatmul.mubr.f32.gmra.mrb[0].mxu0 %v865
    %v1863 = vpop.f32.mrb[0].mxu0
    %v1864 = vadd.f32 %v1160, %v1863
    %v1865 = vpop.f32.mrb[0].mxu0
    %1866 = vmatprep.mubr.f32.mxu0 0.0
    %1867 = vmatmul.mubr.f32.gmra.mrb[0].mxu0 %v866
    %v1868 = vpop.f32.mrb[0].mxu0
    %v1869 = vadd.f32 %v1165, %v1868
    %v1870 = vpop.f32.mrb[0].mxu0
    %1871 = vmatprep.mubr.f32.mxu0 0.0
    %1872 = vmatmul.mubr.f32.gmra.mrb[0].mxu0 %v867
    %v1873 = vpop.f32.mrb[0].mxu0
    %v1874 = vadd.f32 %v1170, %v1873
    %v1875 = vpop.f32.mrb[0].mxu0
    %1876 = vmatprep.mubr.f32.mxu0 0.0
    %1877 = vmatmul.mubr.f32.gmra.mrb[0].mxu0 %v868
    %v1878 = vpop.f32.mrb[0].mxu0
    %v1879 = vadd.f32 %v1175, %v1878
    %v1880 = vpop.f32.mrb[0].mxu0
    %1881 = vmatprep.mubr.f32.mxu0 0.0
    %1882 = vmatmul.mubr.f32.gmra.mrb[0].mxu0 %v869
    %v1883 = vpop.f32.mrb[0].mxu0
    %v1884 = vadd.f32 %v1180, %v1883
    %v1885 = vpop.f32.mrb[0].mxu0
    %1886 = vmatprep.mubr.f32.mxu0 0.0
    %1887 = vmatmul.mubr.f32.gmra.mrb[0].mxu0 %v870
    %v1888 = vpop.f32.mrb[0].mxu0
    %v1889 = vadd.f32 %v1185, %v1888
    %v1890 = vpop.f32.mrb[0].mxu0
    %1891 = vmatprep.mubr.f32.mxu0 0.0
    %1892 = vmatmul.mubr.f32.gmra.mrb[0].mxu0 %v871
    %v1893 = vpop.f32.mrb[0].mxu0
    %v1894 = vadd.f32 %v1190, %v1893
    %v1895 = vpop.f32.mrb[0].mxu0
    %1896 = vmatprep.mubr.f32.mxu0 0.0
    %1897 = vmatmul.mubr.f32.gmra.mrb[0].mxu0 %v872
    %v1898 = vpop.f32.mrb[0].mxu0
    %v1899 = vadd.f32 %v1195, %v1898
    %v1900 = vpop.f32.mrb[0].mxu0
    %1901 = vmatprep.mubr.f32.mxu0 0.0
    %1902 = vmatmul.mubr.f32.gmra.mrb[0].mxu0 %v873
    %v1903 = vpop.f32.mrb[0].mxu0
    %v1904 = vadd.f32 %v1200, %v1903
    %v1905 = vpop.f32.mrb[0].mxu0
    %1906 = vmatprep.mubr.f32.mxu0 0.0
    %1907 = vmatmul.mubr.f32.gmra.mrb[0].mxu0 %v874
    %v1908 = vpop.f32.mrb[0].mxu0
    %v1909 = vadd.f32 %v1205, %v1908
    %v1910 = vpop.f32.mrb[0].mxu0
    %1911 = vmatprep.mubr.f32.mxu0 0.0
    %1912 = vmatmul.mubr.f32.gmra.mrb[0].mxu0 %v875
    %v1913 = vpop.f32.mrb[0].mxu0
    %v1914 = vadd.f32 %v1210, %v1913
    %v1915 = vpop.f32.mrb[0].mxu0
    %1916 = vmatprep.mubr.f32.mxu0 0.0
    %1917 = vmatmul.mubr.f32.gmra.mrb[0].mxu0 %v876
    %v1918 = vpop.f32.mrb[0].mxu0
    %v1919 = vadd.f32 %v1215, %v1918
    %v1920 = vpop.f32.mrb[0].mxu0
    %1921 = vmatprep.mubr.f32.mxu0 0.0
    %1922 = vmatmul.mubr.f32.gmra.mrb[0].mxu0 %v877
    %v1923 = vpop.f32.mrb[0].mxu0
    %v1924 = vadd.f32 %v1220, %v1923
    %v1925 = vpop.f32.mrb[0].mxu0
    %1926 = vmatprep.mubr.f32.mxu0 0.0
    %1927 = vmatmul.mubr.f32.gmra.mrb[0].mxu0 %v878
    %v1928 = vpop.f32.mrb[0].mxu0
    %v1929 = vadd.f32 %v1225, %v1928
    %v1930 = vpop.f32.mrb[0].mxu0
    %1931 = vmatprep.mubr.f32.mxu0 0.0
    %1932 = vmatmul.mubr.f32.gmra.mrb[0].mxu0 %v879
    %v1933 = vpop.f32.mrb[0].mxu0
    %v1934 = vadd.f32 %v1230, %v1933
    %v1935 = vpop.f32.mrb[0].mxu0
    %1936 = vmatprep.mubr.f32.mxu0 0.0
    %1937 = vmatmul.mubr.f32.gmra.mrb[0].mxu0 %v880
    %v1938 = vpop.f32.mrb[0].mxu0
    %v1939 = vadd.f32 %v1235, %v1938
    %v1940 = vpop.f32.mrb[0].mxu0
    %1941 = vmatprep.mubr.f32.mxu0 0.0
    %1942 = vmatmul.mubr.f32.gmra.mrb[0].mxu0 %v881
    %v1943 = vpop.f32.mrb[0].mxu0
    %v1944 = vadd.f32 %v1240, %v1943
    %v1945 = vpop.f32.mrb[0].mxu0
    %1946 = vmatprep.mubr.f32.mxu0 0.0
    %1947 = vmatmul.mubr.f32.gmra.mrb[0].mxu0 %v882
    %v1948 = vpop.f32.mrb[0].mxu0
    %v1949 = vadd.f32 %v1245, %v1948
    %v1950 = vpop.f32.mrb[0].mxu0
    %1951 = vmatprep.mubr.f32.mxu0 0.0
    %1952 = vmatmul.mubr.f32.gmra.mrb[0].mxu0 %v883
    %v1953 = vpop.f32.mrb[0].mxu0
    %v1954 = vadd.f32 %v1250, %v1953
    %v1955 = vpop.f32.mrb[0].mxu0
    %1956 = vmatprep.mubr.f32.mxu0 0.0
    %1957 = vmatmul.mubr.f32.gmra.mrb[0].mxu0 %v884
    %v1958 = vpop.f32.mrb[0].mxu0
    %v1959 = vadd.f32 %v1255, %v1958
    %v1960 = vpop.f32.mrb[0].mxu0
    %1961 = vmatprep.mubr.f32.mxu0 0.0
    %1962 = vmatmul.mubr.f32.gmra.mrb[0].mxu0 %v885
    %v1963 = vpop.f32.mrb[0].mxu0
    %v1964 = vadd.f32 %v1260, %v1963
    %v1965 = vpop.f32.mrb[0].mxu0
    %1966 = vmatprep.mubr.f32.mxu0 0.0
    %1967 = vmatmul.mubr.f32.gmra.mrb[0].mxu0 %v886
    %v1968 = vpop.f32.mrb[0].mxu0
    %v1969 = vadd.f32 %v1265, %v1968
    %v1970 = vpop.f32.mrb[0].mxu0
    %1971 = vmatprep.mubr.f32.mxu0 0.0
    %1972 = vmatmul.mubr.f32.gmra.mrb[0].mxu0 %v887
    %v1973 = vpop.f32.mrb[0].mxu0
    %v1974 = vadd.f32 %v1270, %v1973
    %v1975 = vpop.f32.mrb[0].mxu0
    %1976 = vmatprep.mubr.f32.mxu0 0.0
    %1977 = vmatmul.mubr.f32.gmra.mrb[0].mxu0 %v888
    %v1978 = vpop.f32.mrb[0].mxu0
    %v1979 = vadd.f32 %v1275, %v1978
    %v1980 = vpop.f32.mrb[0].mxu0
    %1981 = vmatprep.mubr.f32.mxu0 0.0
    %1982 = vmatmul.mubr.f32.gmra.mrb[0].mxu0 %v889
    %v1983 = vpop.f32.mrb[0].mxu0
    %v1984 = vadd.f32 %v1280, %v1983
    %v1985 = vpop.f32.mrb[0].mxu0
    %1986 = vmatprep.mubr.f32.mxu0 0.0
    %1987 = vmatmul.mubr.f32.gmra.mrb[0].mxu0 %v890
    %v1988 = vpop.f32.mrb[0].mxu0
    %v1989 = vadd.f32 %v1285, %v1988
    %v1990 = vpop.f32.mrb[0].mxu0
    %1991 = vmatprep.mubr.f32.mxu0 0.0
    %1992 = vmatmul.mubr.f32.gmra.mrb[0].mxu0 %v891
    %v1993 = vpop.f32.mrb[0].mxu0
    %v1994 = vadd.f32 %v1290, %v1993
    %v1995 = vpop.f32.mrb[0].mxu0
    %1996 = vmatprep.mubr.f32.mxu0 0.0
    %1997 = vmatmul.mubr.f32.gmra.mrb[0].mxu0 %v892
    %v1998 = vpop.f32.mrb[0].mxu0
    %v1999 = vadd.f32 %v1295, %v1998
    %v2000 = vpop.f32.mrb[0].mxu0
    %2001 = vmatprep.mubr.f32.mxu0 0.0
    %2002 = vmatmul.mubr.f32.gmra.mrb[0].mxu0 %v893
    %v2003 = vpop.f32.mrb[0].mxu0
    %v2004 = vadd.f32 %v1300, %v2003
    %v2005 = vpop.f32.mrb[0].mxu0
    %2006 = vmatprep.mubr.f32.mxu0 0.0
    %2007 = vmatmul.mubr.f32.gmra.mrb[0].mxu0 %v894
    %v2008 = vpop.f32.mrb[0].mxu0
    %v2009 = vadd.f32 %v1305, %v2008
    %v2010 = vpop.f32.mrb[0].mxu0
    %2011 = vmatprep.mubr.f32.mxu0 0.0
    %2012 = vmatmul.mubr.f32.gmra.mrb[0].mxu0 %v895
    %v2013 = vpop.f32.mrb[0].mxu0
    %v2014 = vadd.f32 %v1310, %v2013
    %v2015 = vpop.f32.mrb[0].mxu0
    %2016 = vmatprep.mubr.f32.mxu0 0.0
    %2017 = vmatmul.mubr.f32.gmra.mrb[0].mxu0 %v896
    %v2018 = vpop.f32.mrb[0].mxu0
    %v2019 = vadd.f32 %v1315, %v2018
    %v2020 = vpop.f32.mrb[0].mxu0
    %2021 = vmatprep.mubr.f32.mxu0 0.0
    %2022 = vmatmul.mubr.f32.gmra.mrb[0].mxu0 %v897
    %v2023 = vpop.f32.mrb[0].mxu0
    %v2024 = vadd.f32 %v1320, %v2023
    %v2025 = vpop.f32.mrb[0].mxu0
    %2026 = vmatprep.mubr.f32.mxu0 0.0
    %2027 = vmatmul.mubr.f32.gmra.mrb[0].mxu0 %v898
    %v2028 = vpop.f32.mrb[0].mxu0
    %v2029 = vadd.f32 %v1325, %v2028
    %v2030 = vpop.f32.mrb[0].mxu0
    %2031 = vmatprep.mubr.f32.mxu0 0.0
    %2032 = vmatmul.mubr.f32.gmra.mrb[0].mxu0 %v899
    %v2033 = vpop.f32.mrb[0].mxu0
    %v2034 = vadd.f32 %v1330, %v2033
    %v2035 = vpop.f32.mrb[0].mxu0
    %2036 = vmatprep.mubr.f32.mxu0 0.0
    %2037 = vmatmul.mubr.f32.gmra.mrb[0].mxu0 %v900
    %v2038 = vpop.f32.mrb[0].mxu0
    %v2039 = vadd.f32 %v1335, %v2038
    %v2040 = vpop.f32.mrb[0].mxu0
    %2041 = vmatprep.mubr.f32.mxu0 0.0
    %2042 = vmatmul.mubr.f32.gmra.mrb[0].mxu0 %v901
    %v2043 = vpop.f32.mrb[0].mxu0
    %v2044 = vadd.f32 %v1340, %v2043
    %v2045 = vpop.f32.mrb[0].mxu0
    %2046 = vmatprep.mubr.f32.mxu0 0.0
    %2047 = vmatmul.mubr.f32.gmra.mrb[0].mxu0 %v902
    %v2048 = vpop.f32.mrb[0].mxu0
    %v2049 = vadd.f32 %v1345, %v2048
    %v2050 = vpop.f32.mrb[0].mxu0
    %2051 = vmatprep.mubr.f32.mxu0 0.0
    %2052 = vmatmul.mubr.f32.gmra.mrb[0].mxu0 %v903
    %v2053 = vpop.f32.mrb[0].mxu0
    %v2054 = vadd.f32 %v1350, %v2053
    %v2055 = vpop.f32.mrb[0].mxu0
    %2056 = vmatprep.mubr.f32.mxu0 0.0
    %2057 = vmatmul.mubr.f32.gmra.mrb[0].mxu0 %v904
    %v2058 = vpop.f32.mrb[0].mxu0
    %v2059 = vadd.f32 %v1355, %v2058
    %v2060 = vpop.f32.mrb[0].mxu0
    %2061 = vmatprep.mubr.f32.mxu0 0.0
    %2062 = vmatmul.mubr.f32.gmra.mrb[0].mxu0 %v905
    %v2063 = vpop.f32.mrb[0].mxu0
    %v2064 = vadd.f32 %v1360, %v2063
    %v2065 = vpop.f32.mrb[0].mxu0
    %2066 = vmatprep.mubr.f32.mxu0 0.0
    %2067 = vmatmul.mubr.f32.gmra.mrb[0].mxu0 %v906
    %v2068 = vpop.f32.mrb[0].mxu0
    %v2069 = vadd.f32 %v1365, %v2068
    %v2070 = vpop.f32.mrb[0].mxu0
    %2071 = vmatprep.mubr.f32.mxu0 0.0
    %2072 = vmatmul.mubr.f32.gmra.mrb[0].mxu0 %v907
    %v2073 = vpop.f32.mrb[0].mxu0
    %v2074 = vadd.f32 %v1370, %v2073
    %v2075 = vpop.f32.mrb[0].mxu0
    %2076 = vmatprep.mubr.f32.mxu0 0.0
    %2077 = vmatmul.mubr.f32.gmra.mrb[0].mxu0 %v908
    %v2078 = vpop.f32.mrb[0].mxu0
    %v2079 = vadd.f32 %v1375, %v2078
    %v2080 = vpop.f32.mrb[0].mxu0
    %2081 = vmatprep.mubr.f32.mxu0 0.0
    %2082 = vmatmul.mubr.f32.gmra.mrb[0].mxu0 %v909
    %v2083 = vpop.f32.mrb[0].mxu0
    %v2084 = vadd.f32 %v1380, %v2083
    %v2085 = vpop.f32.mrb[0].mxu0
    %2086 = vmatprep.mubr.f32.mxu0 0.0
    %2087 = vmatmul.mubr.f32.gmra.mrb[0].mxu0 %v910
    %v2088 = vpop.f32.mrb[0].mxu0
    %v2089 = vadd.f32 %v1385, %v2088
    %v2090 = vpop.f32.mrb[0].mxu0
    %2091 = vmatprep.mubr.f32.mxu0 0.0
    %2092 = vmatmul.mubr.f32.gmra.mrb[0].mxu0 %v911
    %v2093 = vpop.f32.mrb[0].mxu0
    %v2094 = vadd.f32 %v1390, %v2093
    %v2095 = vpop.f32.mrb[0].mxu0
    %2096 = vmatprep.mubr.f32.mxu0 0.0
    %2097 = vmatmul.mubr.f32.gmra.mrb[0].mxu0 %v912
    %v2098 = vpop.f32.mrb[0].mxu0
    %v2099 = vadd.f32 %v1395, %v2098
    %v2100 = vpop.f32.mrb[0].mxu0
    %2101 = vmatprep.mubr.f32.mxu0 0.0
    %2102 = vmatmul.mubr.f32.gmra.mrb[0].mxu0 %v913
    %v2103 = vpop.f32.mrb[0].mxu0
    %v2104 = vadd.f32 %v1400, %v2103
    %v2105 = vpop.f32.mrb[0].mxu0
    %2106 = vmatprep.mubr.f32.mxu0 0.0
    %2107 = vmatmul.mubr.f32.gmra.mrb[0].mxu0 %v914
    %v2108 = vpop.f32.mrb[0].mxu0
    %v2109 = vadd.f32 %v1405, %v2108
    %v2110 = vpop.f32.mrb[0].mxu0
    %2111 = vmatprep.mubr.f32.mxu0 0.0
    %2112 = vmatmul.mubr.f32.gmra.mrb[0].mxu0 %v915
    %v2113 = vpop.f32.mrb[0].mxu0
    %v2114 = vadd.f32 %v1410, %v2113
    %v2115 = vpop.f32.mrb[0].mxu0
    %2116 = vmatprep.mubr.f32.mxu0 0.0
    %2117 = vmatmul.mubr.f32.gmra.mrb[0].mxu0 %v916
    %v2118 = vpop.f32.mrb[0].mxu0
    %v2119 = vadd.f32 %v1415, %v2118
    %v2120 = vpop.f32.mrb[0].mxu0
    %2121 = vmatprep.mubr.f32.mxu0 0.0
    %2122 = vmatmul.mubr.f32.gmra.mrb[0].mxu0 %v917
    %v2123 = vpop.f32.mrb[0].mxu0
    %v2124 = vadd.f32 %v1420, %v2123
    %v2125 = vpop.f32.mrb[0].mxu0
    %2126 = vmatprep.mubr.f32.mxu0 0.0
    %2127 = vmatmul.mubr.f32.gmra.mrb[0].mxu0 %v918
    %v2128 = vpop.f32.mrb[0].mxu0
    %v2129 = vadd.f32 %v1425, %v2128
    %v2130 = vpop.f32.mrb[0].mxu0
    %2131 = vmatprep.mubr.f32.mxu0 0.0
    %2132 = vmatmul.mubr.f32.gmra.mrb[0].mxu0 %v919
    %v2133 = vpop.f32.mrb[0].mxu0
    %v2134 = vadd.f32 %v1430, %v2133
    %v2135 = vpop.f32.mrb[0].mxu0
    %2136 = vmatprep.mubr.f32.mxu0 0.0
    %2137 = vmatmul.mubr.f32.gmra.mrb[0].mxu0 %v920
    %v2138 = vpop.f32.mrb[0].mxu0
    %v2139 = vadd.f32 %v1435, %v2138
    %v2140 = vpop.f32.mrb[0].mxu0
    %2141 = vmatprep.mubr.f32.mxu0 0.0
    %2142 = vmatmul.mubr.f32.gmra.mrb[0].mxu0 %v921
    %v2143 = vpop.f32.mrb[0].mxu0
    %v2144 = vadd.f32 %v1440, %v2143
    %v2145 = vpop.f32.mrb[0].mxu0
    %2146 = vmatprep.mubr.f32.mxu0 0.0
    %2147 = vmatmul.mubr.f32.gmra.mrb[0].mxu0 %v922
    %v2148 = vpop.f32.mrb[0].mxu0
    %v2149 = vadd.f32 %v1445, %v2148
    %v2150 = vpop.f32.mrb[0].mxu0
    %2151 = vmatprep.mubr.f32.mxu0 0.0
    %2152 = vmatmul.mubr.f32.gmra.mrb[0].mxu0 %v923
    %v2153 = vpop.f32.mrb[0].mxu0
    %v2154 = vadd.f32 %v1450, %v2153
    %v2155 = vpop.f32.mrb[0].mxu0
    %2156 = vmatprep.mubr.f32.mxu0 0.0
    %2157 = vmatmul.mubr.f32.gmra.mrb[0].mxu0 %v924
    %v2158 = vpop.f32.mrb[0].mxu0
    %v2159 = vadd.f32 %v1455, %v2158
    %v2160 = vpop.f32.mrb[0].mxu0
    %2161 = vmatprep.mubr.f32.mxu0 0.0
    %2162 = vmatmul.mubr.f32.gmra.mrb[0].mxu0 %v925
    %v2163 = vpop.f32.mrb[0].mxu0
    %v2164 = vadd.f32 %v1460, %v2163
    %v2165 = vpop.f32.mrb[0].mxu0
    %2166 = vmatprep.mubr.f32.mxu0 0.0
    %2167 = vmatmul.mubr.f32.gmra.mrb[0].mxu0 %v926
    %v2168 = vpop.f32.mrb[0].mxu0
    %v2169 = vadd.f32 %v1465, %v2168
    %v2170 = vpop.f32.mrb[0].mxu0
    %2171 = vmatprep.mubr.f32.mxu0 0.0
    %2172 = vmatmul.mubr.f32.gmra.mrb[0].mxu0 %v927
    %v2173 = vpop.f32.mrb[0].mxu0
    %v2174 = vadd.f32 %v1470, %v2173
    %v2175 = vpop.f32.mrb[0].mxu0
    %2176 = vmatprep.mubr.f32.mxu0 0.0
    %2177 = vmatmul.mubr.f32.gmra.mrb[0].mxu0 %v928
    %v2178 = vpop.f32.mrb[0].mxu0
    %v2179 = vadd.f32 %v1475, %v2178
    %v2180 = vpop.f32.mrb[0].mxu0
    %2181 = vmatprep.mubr.f32.mxu0 0.0
    %2182 = vmatmul.mubr.f32.gmra.mrb[0].mxu0 %v929
    %v2183 = vpop.f32.mrb[0].mxu0
    %v2184 = vadd.f32 %v1480, %v2183
    %v2185 = vpop.f32.mrb[0].mxu0
    %2186 = vmatprep.mubr.f32.mxu0 0.0
    %2187 = vmatmul.mubr.f32.gmra.mrb[0].mxu0 %v930
    %v2188 = vpop.f32.mrb[0].mxu0
    %v2189 = vadd.f32 %v1485, %v2188
    %v2190 = vpop.f32.mrb[0].mxu0
    %2191 = vmatprep.mubr.f32.mxu0 0.0
    %2192 = vmatmul.mubr.f32.gmra.mrb[0].mxu0 %v931
    %v2193 = vpop.f32.mrb[0].mxu0
    %v2194 = vadd.f32 %v1490, %v2193
    %v2195 = vpop.f32.mrb[0].mxu0
    %2196 = vmatprep.mubr.f32.mxu0 0.0
    %2197 = vmatmul.mubr.f32.gmra.mrb[0].mxu0 %v932
    %v2198 = vpop.f32.mrb[0].mxu0
    %v2199 = vadd.f32 %v1495, %v2198
    %v2200 = vpop.f32.mrb[0].mxu0
    %2201 = vmatprep.mubr.f32.mxu0 0.0
    %2202 = vmatmul.mubr.f32.gmra.mrb[0].mxu0 %v933
    %v2203 = vpop.f32.mrb[0].mxu0
    %v2204 = vadd.f32 %v1500, %v2203
    %v2205 = vpop.f32.mrb[0].mxu0
    %2206 = vmatprep.mubr.f32.mxu0 0.0
    %2207 = vmatmul.mubr.f32.gmra.mrb[0].mxu0 %v934
    %v2208 = vpop.f32.mrb[0].mxu0
    %v2209 = vadd.f32 %v1505, %v2208
    %v2210 = vpop.f32.mrb[0].mxu0
    %2211 = vmatprep.mubr.f32.mxu0 0.0
    %2212 = vmatmul.mubr.f32.gmra.mrb[0].mxu0 %v935
    %v2213 = vpop.f32.mrb[0].mxu0
    %v2214 = vadd.f32 %v1510, %v2213
    %v2215 = vpop.f32.mrb[0].mxu0
    %2216 = vmatprep.mubr.f32.mxu0 0.0
    %2217 = vmatmul.mubr.f32.gmra.mrb[0].mxu0 %v936
    %v2218 = vpop.f32.mrb[0].mxu0
    %v2219 = vadd.f32 %v1515, %v2218
    %v2220 = vpop.f32.mrb[0].mxu0
    %2221 = vmatprep.mubr.f32.mxu0 0.0
    %2222 = vmatmul.mubr.f32.gmra.mrb[0].mxu0 %v937
    %v2223 = vpop.f32.mrb[0].mxu0
    %v2224 = vadd.f32 %v1520, %v2223
    %v2225 = vpop.f32.mrb[0].mxu0
    %2226 = vmatprep.mubr.f32.mxu0 0.0
    %2227 = vmatmul.mubr.f32.gmra.mrb[0].mxu0 %v938
    %v2228 = vpop.f32.mrb[0].mxu0
    %v2229 = vadd.f32 %v1525, %v2228
    %v2230 = vpop.f32.mrb[0].mxu0
    %2231 = vmatprep.mubr.f32.mxu0 0.0
    %2232 = vmatmul.mubr.f32.gmra.mrb[0].mxu0 %v939
    %v2233 = vpop.f32.mrb[0].mxu0
    %v2234 = vadd.f32 %v1530, %v2233
    %v2235 = vpop.f32.mrb[0].mxu0
    %2236 = vmatprep.mubr.f32.mxu0 0.0
    %2237 = vmatmul.mubr.f32.gmra.mrb[0].mxu0 %v940
    %v2238 = vpop.f32.mrb[0].mxu0
    %v2239 = vadd.f32 %v1535, %v2238
    %v2240 = vpop.f32.mrb[0].mxu0
    %2241 = vmatprep.mubr.f32.mxu0 0.0
    %2242 = vmatmul.mubr.f32.gmra.mrb[0].mxu0 %v941
    %v2243 = vpop.f32.mrb[0].mxu0
    %v2244 = vadd.f32 %v1540, %v2243
    %v2245 = vpop.f32.mrb[0].mxu0
    %2246 = vmatprep.mubr.f32.mxu0 0.0
    %2247 = vmatmul.mubr.f32.gmra.mrb[0].mxu0 %v942
    %v2248 = vpop.f32.mrb[0].mxu0
    %v2249 = vadd.f32 %v1545, %v2248
    %v2250 = vpop.f32.mrb[0].mxu0
    %2251 = vmatprep.mubr.f32.mxu0 0.0
    %2252 = vmatmul.mubr.f32.gmra.mrb[0].mxu0 %v943
    %v2253 = vpop.f32.mrb[0].mxu0
    %v2254 = vadd.f32 %v1550, %v2253
    %v2255 = vpop.f32.mrb[0].mxu0
    %2256 = vmatprep.mubr.f32.mxu0 0.0
    %2257 = vmatmul.mubr.f32.gmra.mrb[0].mxu0 %v944
    %v2258 = vpop.f32.mrb[0].mxu0
    %v2259 = vadd.f32 %v1555, %v2258
    %v2260 = vpop.f32.mrb[0].mxu0
    %2261 = vmatprep.mubr.f32.mxu0 0.0
    %2262 = vmatmul.mubr.f32.gmra.mrb[0].mxu0 %v945
    %v2263 = vpop.f32.mrb[0].mxu0
    %v2264 = vadd.f32 %v1560, %v2263
    %v2265 = vpop.f32.mrb[0].mxu0
    %2266 = vmatprep.mubr.f32.mxu0 0.0
    %2267 = vmatmul.mubr.f32.gmra.mrb[0].mxu0 %v946
    %v2268 = vpop.f32.mrb[0].mxu0
    %v2269 = vadd.f32 %v1565, %v2268
    %v2270 = vpop.f32.mrb[0].mxu0
    %2271 = vmatprep.mubr.f32.mxu0 0.0
    %2272 = vmatmul.mubr.f32.gmra.mrb[0].mxu0 %v947
    %v2273 = vpop.f32.mrb[0].mxu0
    %v2274 = vadd.f32 %v1570, %v2273
    %v2275 = vpop.f32.mrb[0].mxu0
    %2276 = vmatprep.mubr.f32.mxu0 0.0
    %2277 = vmatmul.mubr.f32.gmra.mrb[0].mxu0 %v948
    %v2278 = vpop.f32.mrb[0].mxu0
    %v2279 = vadd.f32 %v1575, %v2278
    %v2280 = vpop.f32.mrb[0].mxu0
    %2281 = vmatprep.mubr.f32.mxu0 0.0
    %2282 = vmatmul.mubr.f32.gmra.mrb[0].mxu0 %v949
    %v2283 = vpop.f32.mrb[0].mxu0
    %v2284 = vadd.f32 %v1580, %v2283
    %v2285 = vpop.f32.mrb[0].mxu0
    %2286 = vmatprep.mubr.f32.mxu0 0.0
    %2287 = vmatmul.mubr.f32.gmra.mrb[0].mxu0 %v950
    %v2288 = vpop.f32.mrb[0].mxu0
    %v2289 = vadd.f32 %v1585, %v2288
    %v2290 = vpop.f32.mrb[0].mxu0
    %2291 = vmatprep.mubr.f32.mxu0 0.0
    %2292 = vmatmul.mubr.f32.gmra.mrb[0].mxu0 %v951
    %v2293 = vpop.f32.mrb[0].mxu0
    %v2294 = vadd.f32 %v1590, %v2293
    %v2295 = vpop.f32.mrb[0].mxu0
    %2296 = vmatprep.mubr.f32.mxu0 0.0
    %2297 = vmatmul.mubr.f32.gmra.mrb[0].mxu0 %v952
    %v2298 = vpop.f32.mrb[0].mxu0
    %v2299 = vadd.f32 %v1595, %v2298
    %v2300 = vpop.f32.mrb[0].mxu0
    %2301 = vmatprep.mubr.f32.mxu0 0.0
    %2302 = vmatmul.mubr.f32.gmra.mrb[0].mxu0 %v953
    %v2303 = vpop.f32.mrb[0].mxu0
    %v2304 = vadd.f32 %v1600, %v2303
    %v2305 = vpop.f32.mrb[0].mxu0
    %2306 = vmatprep.mubr.f32.mxu0 0.0
    %2307 = vmatmul.mubr.f32.gmra.mrb[0].mxu0 %v954
    %v2308 = vpop.f32.mrb[0].mxu0
    %v2309 = vadd.f32 %v1605, %v2308
    %v2310 = vpop.f32.mrb[0].mxu0
    %2311 = vmatprep.mubr.f32.mxu0 0.0
    %2312 = vmatmul.mubr.f32.gmra.mrb[0].mxu0 %v955
    %v2313 = vpop.f32.mrb[0].mxu0
    %v2314 = vadd.f32 %v1610, %v2313
    %v2315 = vpop.f32.mrb[0].mxu0
    %2316 = vmatprep.mubr.f32.mxu0 0.0
    %2317 = vmatmul.mubr.f32.gmra.mrb[0].mxu0 %v956
    %v2318 = vpop.f32.mrb[0].mxu0
    %v2319 = vadd.f32 %v1615, %v2318
    %v2320 = vpop.f32.mrb[0].mxu0
    %2321 = vmatprep.mubr.f32.mxu0 0.0
    %2322 = vmatmul.mubr.f32.gmra.mrb[0].mxu0 %v957
    %v2323 = vpop.f32.mrb[0].mxu0
    %v2324 = vadd.f32 %v1620, %v2323
    %v2325 = vpop.f32.mrb[0].mxu0
    %2326 = vmatprep.mubr.f32.mxu0 0.0
    %2327 = vmatmul.mubr.f32.gmra.mrb[0].mxu0 %v958
    %v2328 = vpop.f32.mrb[0].mxu0
    %v2329 = vadd.f32 %v1625, %v2328
    %v2330 = vpop.f32.mrb[0].mxu0
    %2331 = vmatprep.mubr.f32.mxu0 0.0
    %2332 = vmatmul.mubr.f32.gmra.mrb[0].mxu0 %v959
    %v2333 = vpop.f32.mrb[0].mxu0
    %v2334 = vadd.f32 %v1630, %v2333
    %v2335 = vpop.f32.mrb[0].mxu0
    %2336 = vmatprep.mubr.f32.mxu0 0.0
    %2337 = vmatmul.mubr.f32.gmra.mrb[0].mxu0 %v960
    %v2338 = vpop.f32.mrb[0].mxu0
    %v2339 = vadd.f32 %v1635, %v2338
    %v2340 = vpop.f32.mrb[0].mxu0
    %2341 = vmatprep.mubr.f32.mxu0 0.0
    %2342 = vmatmul.mubr.f32.gmra.mrb[0].mxu0 %v961
    %v2343 = vpop.f32.mrb[0].mxu0
    %v2344 = vadd.f32 %v1640, %v2343
    %v2345 = vpop.f32.mrb[0].mxu0
    %2346 = vmatprep.mubr.f32.mxu0 0.0
    %2347 = vmatmul.mubr.f32.gmra.mrb[0].mxu0 %v962
    %v2348 = vpop.f32.mrb[0].mxu0
    %v2349 = vadd.f32 %v1645, %v2348
    %v2350 = vpop.f32.mrb[0].mxu0
    %2351 = vmatprep.mubr.f32.mxu0 0.0
    %2352 = vmatmul.mubr.f32.gmra.mrb[0].mxu0 %v963
    %v2353 = vpop.f32.mrb[0].mxu0
    %v2354 = vadd.f32 %v1650, %v2353
    %v2355 = vpop.f32.mrb[0].mxu0
    %2356 = vmatprep.mubr.f32.mxu0 0.0
    %2357 = vmatmul.mubr.f32.gmra.mrb[0].mxu0 %v964
    %v2358 = vpop.f32.mrb[0].mxu0
    %v2359 = vadd.f32 %v1655, %v2358
    %v2360 = vpop.f32.mrb[0].mxu0
    %2361 = vmatprep.mubr.f32.mxu0 0.0
    %2362 = vmatmul.mubr.f32.gmra.mrb[0].mxu0 %v965
    %v2363 = vpop.f32.mrb[0].mxu0
    %v2364 = vadd.f32 %v1660, %v2363
    %v2365 = vpop.f32.mrb[0].mxu0
    %2366 = vmatprep.mubr.f32.mxu0 0.0
    %2367 = vmatmul.mubr.f32.gmra.mrb[0].mxu0 %v966
    %v2368 = vpop.f32.mrb[0].mxu0
    %v2369 = vadd.f32 %v1665, %v2368
    %v2370 = vpop.f32.mrb[0].mxu0
    %2371 = vmatprep.mubr.f32.mxu0 0.0
    %2372 = vmatmul.mubr.f32.gmra.mrb[0].mxu0 %v967
    %v2373 = vpop.f32.mrb[0].mxu0
    %v2374 = vadd.f32 %v1670, %v2373
    %v2375 = vpop.f32.mrb[0].mxu0
    %2376 = vmatprep.mubr.f32.mxu0 0.0
    %2377 = vmatmul.mubr.f32.gmra.mrb[0].mxu0 %v968
    %v2378 = vpop.f32.mrb[0].mxu0
    %v2379 = vadd.f32 %v1675, %v2378
    %v2380 = vpop.f32.mrb[0].mxu0
    %2381 = vmatprep.mubr.f32.mxu0 0.0
    %2382 = vmatmul.mubr.f32.gmra.mrb[0].mxu0 %v969
    %v2383 = vpop.f32.mrb[0].mxu0
    %v2384 = vadd.f32 %v1680, %v2383
    %v2385 = vpop.f32.mrb[0].mxu0
    %2386 = vmatprep.mubr.f32.mxu0 0.0
    %2387 = vmatmul.mubr.f32.gmra.mrb[0].mxu0 %v970
    %v2388 = vpop.f32.mrb[0].mxu0
    %v2389 = vadd.f32 %v1685, %v2388
    %v2390 = vpop.f32.mrb[0].mxu0
    %2391 = vmatprep.mubr.f32.mxu0 0.0
    %2392 = vmatmul.mubr.f32.gmra.mrb[0].mxu0 %v971
    %v2393 = vpop.f32.mrb[0].mxu0
    %v2394 = vadd.f32 %v1690, %v2393
    %v2395 = vpop.f32.mrb[0].mxu0
    %2396 = vmatprep.mubr.f32.mxu0 0.0
    %2397 = vmatmul.mubr.f32.gmra.mrb[0].mxu0 %v972
    %v2398 = vpop.f32.mrb[0].mxu0
    %v2399 = vadd.f32 %v1695, %v2398
    %v2400 = vpop.f32.mrb[0].mxu0
    %2401 = vmatprep.mubr.f32.mxu0 0.0
    %2402 = vmatmul.mubr.f32.gmra.mrb[0].mxu0 %v973
    %v2403 = vpop.f32.mrb[0].mxu0
    %v2404 = vadd.f32 %v1700, %v2403
    %v2405 = vpop.f32.mrb[0].mxu0
    %2406 = vmatprep.mubr.f32.mxu0 0.0
    %2407 = vmatmul.mubr.f32.gmra.mrb[0].mxu0 %v974
    %v2408 = vpop.f32.mrb[0].mxu0
    %v2409 = vadd.f32 %v1705, %v2408
    %v2410 = vpop.f32.mrb[0].mxu0
    %2411 = vmatprep.mubr.f32.mxu0 0.0
    %2412 = vmatmul.mubr.f32.gmra.mrb[0].mxu0 %v975
    %v2413 = vpop.f32.mrb[0].mxu0
    %v2414 = vadd.f32 %v1710, %v2413
    %v2415 = vpop.f32.mrb[0].mxu0
    %2416 = vmatprep.mubr.f32.mxu0 0.0
    %2417 = vmatmul.mubr.f32.gmra.mrb[0].mxu0 %v976
    %v2418 = vpop.f32.mrb[0].mxu0
    %v2419 = vadd.f32 %v1715, %v2418
    %v2420 = vpop.f32.mrb[0].mxu0
    %2421 = vmatprep.mubr.f32.mxu0 0.0
    %2422 = vmatmul.mubr.f32.gmra.mrb[0].mxu0 %v977
    %v2423 = vpop.f32.mrb[0].mxu0
    %v2424 = vadd.f32 %v1720, %v2423
    %v2425 = vpop.f32.mrb[0].mxu0
    %2426 = vmatprep.mubr.f32.mxu0 0.0
    %2427 = vmatmul.mubr.f32.gmra.mrb[0].mxu0 %v978
    %v2428 = vpop.f32.mrb[0].mxu0
    %v2429 = vadd.f32 %v1725, %v2428
    %v2430 = vpop.f32.mrb[0].mxu0
    %2431 = vmatprep.mubr.f32.mxu0 0.0
    %2432 = vmatmul.mubr.f32.gmra.mrb[0].mxu0 %v979
    %v2433 = vpop.f32.mrb[0].mxu0
    %v2434 = vadd.f32 %v1730, %v2433
    %v2435 = vpop.f32.mrb[0].mxu0
    %2436 = vmatprep.mubr.f32.mxu0 0.0
    %2437 = vmatmul.mubr.f32.gmra.mrb[0].mxu0 %v980
    %v2438 = vpop.f32.mrb[0].mxu0
    %v2439 = vadd.f32 %v1735, %v2438
    %v2440 = vpop.f32.mrb[0].mxu0
    %2441 = vmatprep.mubr.f32.mxu0 0.0
    %2442 = vmatmul.mubr.f32.gmra.mrb[0].mxu0 %v981
    %v2443 = vpop.f32.mrb[0].mxu0
    %v2444 = vadd.f32 %v1740, %v2443
    %v2445 = vpop.f32.mrb[0].mxu0
    %2446 = vmatprep.mubr.f32.mxu0 0.0
    %2447 = vmatmul.mubr.f32.gmra.mrb[0].mxu0 %v982
    %v2448 = vpop.f32.mrb[0].mxu0
    %v2449 = vadd.f32 %v1745, %v2448
    %v2450 = vpop.f32.mrb[0].mxu0
    %2451 = vmatprep.mubr.f32.mxu0 0.0
    %2452 = vmatmul.mubr.f32.gmra.mrb[0].mxu0 %v983
    %v2453 = vpop.f32.mrb[0].mxu0
    %v2454 = vadd.f32 %v1750, %v2453
    %v2455 = vpop.f32.mrb[0].mxu0
    %2456 = vdwg.mxu0
    %v2457 = vmax.f32 %v1819, 0.0
    %v2458 = vmax.f32 %v1824, 0.0
    %v2459 = vmax.f32 %v1829, 0.0
    %v2460 = vmax.f32 %v1834, 0.0
    %v2461 = vmax.f32 %v1839, 0.0
    %v2462 = vmax.f32 %v1844, 0.0
    %v2463 = vmax.f32 %v1849, 0.0
    %v2464 = vmax.f32 %v1854, 0.0
    %v2465 = vmax.f32 %v1859, 0.0
    %v2466 = vmax.f32 %v1864, 0.0
    %v2467 = vmax.f32 %v1869, 0.0
    %v2468 = vmax.f32 %v1874, 0.0
    %v2469 = vmax.f32 %v1879, 0.0
    %v2470 = vmax.f32 %v1884, 0.0
    %v2471 = vmax.f32 %v1889, 0.0
    %v2472 = vmax.f32 %v1894, 0.0
    %v2473 = vmax.f32 %v1899, 0.0
    %v2474 = vmax.f32 %v1904, 0.0
    %v2475 = vmax.f32 %v1909, 0.0
    %v2476 = vmax.f32 %v1914, 0.0
    %v2477 = vmax.f32 %v1919, 0.0
    %v2478 = vmax.f32 %v1924, 0.0
    %v2479 = vmax.f32 %v1929, 0.0
    %v2480 = vmax.f32 %v1934, 0.0
    %v2481 = vmax.f32 %v1939, 0.0
    %v2482 = vmax.f32 %v1944, 0.0
    %v2483 = vmax.f32 %v1949, 0.0
    %v2484 = vmax.f32 %v1954, 0.0
    %v2485 = vmax.f32 %v1959, 0.0
    %v2486 = vmax.f32 %v1964, 0.0
    %v2487 = vmax.f32 %v1969, 0.0
    %v2488 = vmax.f32 %v1974, 0.0
    %v2489 = vmax.f32 %v1979, 0.0
    %v2490 = vmax.f32 %v1984, 0.0
    %v2491 = vmax.f32 %v1989, 0.0
    %v2492 = vmax.f32 %v1994, 0.0
    %v2493 = vmax.f32 %v1999, 0.0
    %v2494 = vmax.f32 %v2004, 0.0
    %v2495 = vmax.f32 %v2009, 0.0
    %v2496 = vmax.f32 %v2014, 0.0
    %v2497 = vmax.f32 %v2019, 0.0
    %v2498 = vmax.f32 %v2024, 0.0
    %v2499 = vmax.f32 %v2029, 0.0
    %v2500 = vmax.f32 %v2034, 0.0
    %v2501 = vmax.f32 %v2039, 0.0
    %v2502 = vmax.f32 %v2044, 0.0
    %v2503 = vmax.f32 %v2049, 0.0
    %v2504 = vmax.f32 %v2054, 0.0
    %v2505 = vmax.f32 %v2059, 0.0
    %v2506 = vmax.f32 %v2064, 0.0
    %v2507 = vmax.f32 %v2069, 0.0
    %v2508 = vmax.f32 %v2074, 0.0
    %v2509 = vmax.f32 %v2079, 0.0
    %v2510 = vmax.f32 %v2084, 0.0
    %v2511 = vmax.f32 %v2089, 0.0
    %v2512 = vmax.f32 %v2094, 0.0
    %v2513 = vmax.f32 %v2099, 0.0
    %v2514 = vmax.f32 %v2104, 0.0
    %v2515 = vmax.f32 %v2109, 0.0
    %v2516 = vmax.f32 %v2114, 0.0
    %v2517 = vmax.f32 %v2119, 0.0
    %v2518 = vmax.f32 %v2124, 0.0
    %v2519 = vmax.f32 %v2129, 0.0
    %v2520 = vmax.f32 %v2134, 0.0
    %v2521 = vmax.f32 %v2139, 0.0
    %v2522 = vmax.f32 %v2144, 0.0
    %v2523 = vmax.f32 %v2149, 0.0
    %v2524 = vmax.f32 %v2154, 0.0
    %v2525 = vmax.f32 %v2159, 0.0
    %v2526 = vmax.f32 %v2164, 0.0
    %v2527 = vmax.f32 %v2169, 0.0
    %v2528 = vmax.f32 %v2174, 0.0
    %v2529 = vmax.f32 %v2179, 0.0
    %v2530 = vmax.f32 %v2184, 0.0
    %v2531 = vmax.f32 %v2189, 0.0
    %v2532 = vmax.f32 %v2194, 0.0
    %v2533 = vmax.f32 %v2199, 0.0
    %v2534 = vmax.f32 %v2204, 0.0
    %v2535 = vmax.f32 %v2209, 0.0
    %v2536 = vmax.f32 %v2214, 0.0
    %v2537 = vmax.f32 %v2219, 0.0
    %v2538 = vmax.f32 %v2224, 0.0
    %v2539 = vmax.f32 %v2229, 0.0
    %v2540 = vmax.f32 %v2234, 0.0
    %v2541 = vmax.f32 %v2239, 0.0
    %v2542 = vmax.f32 %v2244, 0.0
    %v2543 = vmax.f32 %v2249, 0.0
    %v2544 = vmax.f32 %v2254, 0.0
    %v2545 = vmax.f32 %v2259, 0.0
    %v2546 = vmax.f32 %v2264, 0.0
    %v2547 = vmax.f32 %v2269, 0.0
    %v2548 = vmax.f32 %v2274, 0.0
    %v2549 = vmax.f32 %v2279, 0.0
    %v2550 = vmax.f32 %v2284, 0.0
    %v2551 = vmax.f32 %v2289, 0.0
    %v2552 = vmax.f32 %v2294, 0.0
    %v2553 = vmax.f32 %v2299, 0.0
    %v2554 = vmax.f32 %v2304, 0.0
    %v2555 = vmax.f32 %v2309, 0.0
    %v2556 = vmax.f32 %v2314, 0.0
    %v2557 = vmax.f32 %v2319, 0.0
    %v2558 = vmax.f32 %v2324, 0.0
    %v2559 = vmax.f32 %v2329, 0.0
    %v2560 = vmax.f32 %v2334, 0.0
    %v2561 = vmax.f32 %v2339, 0.0
    %v2562 = vmax.f32 %v2344, 0.0
    %v2563 = vmax.f32 %v2349, 0.0
    %v2564 = vmax.f32 %v2354, 0.0
    %v2565 = vmax.f32 %v2359, 0.0
    %v2566 = vmax.f32 %v2364, 0.0
    %v2567 = vmax.f32 %v2369, 0.0
    %v2568 = vmax.f32 %v2374, 0.0
    %v2569 = vmax.f32 %v2379, 0.0
    %v2570 = vmax.f32 %v2384, 0.0
    %v2571 = vmax.f32 %v2389, 0.0
    %v2572 = vmax.f32 %v2394, 0.0
    %v2573 = vmax.f32 %v2399, 0.0
    %v2574 = vmax.f32 %v2404, 0.0
    %v2575 = vmax.f32 %v2409, 0.0
    %v2576 = vmax.f32 %v2414, 0.0
    %v2577 = vmax.f32 %v2419, 0.0
    %v2578 = vmax.f32 %v2424, 0.0
    %v2579 = vmax.f32 %v2429, 0.0
    %v2580 = vmax.f32 %v2434, 0.0
    %v2581 = vmax.f32 %v2439, 0.0
    %v2582 = vmax.f32 %v2444, 0.0
    %v2583 = vmax.f32 %v2449, 0.0
    %v2584 = vmax.f32 %v2454, 0.0
    %v2585 = vld [vmem:[%s5] sm:$0xff]
    %v2586 = vld [vmem:[%s5 + $0x8] sm:$0xff]
    %v2587 = vld [vmem:[%s5 + $0x10] sm:$0xff]
    %v2588 = vld [vmem:[%s5 + $0x18] sm:$0xff]
    %v2589 = vld [vmem:[%s5 + $0x20] sm:$0xff]
    %v2590 = vld [vmem:[%s5 + $0x28] sm:$0xff]
    %v2591 = vld [vmem:[%s5 + $0x30] sm:$0xff]
    %v2592 = vld [vmem:[%s5 + $0x38] sm:$0xff]
    %v2593 = vld [vmem:[%s5 + $0x40] sm:$0xff]
    %v2594 = vld [vmem:[%s5 + $0x48] sm:$0xff]
    %v2595 = vld [vmem:[%s5 + $0x50] sm:$0xff]
    %v2596 = vld [vmem:[%s5 + $0x58] sm:$0xff]
    %v2597 = vld [vmem:[%s5 + $0x60] sm:$0xff]
    %v2598 = vld [vmem:[%s5 + $0x68] sm:$0xff]
    %v2599 = vld [vmem:[%s5 + $0x70] sm:$0xff]
    %v2600 = vld [vmem:[%s5 + $0x78] sm:$0xff]
    %v2601 = vld [vmem:[%s5 + $0x80] sm:$0xff]
    %v2602 = vld [vmem:[%s5 + $0x88] sm:$0xff]
    %v2603 = vld [vmem:[%s5 + $0x90] sm:$0xff]
    %v2604 = vld [vmem:[%s5 + $0x98] sm:$0xff]
    %v2605 = vld [vmem:[%s5 + $0xa0] sm:$0xff]
    %v2606 = vld [vmem:[%s5 + $0xa8] sm:$0xff]
    %v2607 = vld [vmem:[%s5 + $0xb0] sm:$0xff]
    %v2608 = vld [vmem:[%s5 + $0xb8] sm:$0xff]
    %v2609 = vld [vmem:[%s5 + $0xc0] sm:$0xff]
    %v2610 = vld [vmem:[%s5 + $0xc8] sm:$0xff]
    %v2611 = vld [vmem:[%s5 + $0xd0] sm:$0xff]
    %v2612 = vld [vmem:[%s5 + $0xd8] sm:$0xff]
    %v2613 = vld [vmem:[%s5 + $0xe0] sm:$0xff]
    %v2614 = vld [vmem:[%s5 + $0xe8] sm:$0xff]
    %v2615 = vld [vmem:[%s5 + $0xf0] sm:$0xff]
    %v2616 = vld [vmem:[%s5 + $0xf8] sm:$0xff]
    %v2617 = vld [vmem:[%s5 + $0x100] sm:$0xff]
    %v2618 = vld [vmem:[%s5 + $0x108] sm:$0xff]
    %v2619 = vld [vmem:[%s5 + $0x110] sm:$0xff]
    %v2620 = vld [vmem:[%s5 + $0x118] sm:$0xff]
    %v2621 = vld [vmem:[%s5 + $0x120] sm:$0xff]
    %v2622 = vld [vmem:[%s5 + $0x128] sm:$0xff]
    %v2623 = vld [vmem:[%s5 + $0x130] sm:$0xff]
    %v2624 = vld [vmem:[%s5 + $0x138] sm:$0xff]
    %v2625 = vld [vmem:[%s5 + $0x140] sm:$0xff]
    %v2626 = vld [vmem:[%s5 + $0x148] sm:$0xff]
    %v2627 = vld [vmem:[%s5 + $0x150] sm:$0xff]
    %v2628 = vld [vmem:[%s5 + $0x158] sm:$0xff]
    %v2629 = vld [vmem:[%s5 + $0x160] sm:$0xff]
    %v2630 = vld [vmem:[%s5 + $0x168] sm:$0xff]
    %v2631 = vld [vmem:[%s5 + $0x170] sm:$0xff]
    %v2632 = vld [vmem:[%s5 + $0x178] sm:$0xff]
    %v2633 = vld [vmem:[%s5 + $0x180] sm:$0xff]
    %v2634 = vld [vmem:[%s5 + $0x188] sm:$0xff]
    %v2635 = vld [vmem:[%s5 + $0x190] sm:$0xff]
    %v2636 = vld [vmem:[%s5 + $0x198] sm:$0xff]
    %v2637 = vld [vmem:[%s5 + $0x1a0] sm:$0xff]
    %v2638 = vld [vmem:[%s5 + $0x1a8] sm:$0xff]
    %v2639 = vld [vmem:[%s5 + $0x1b0] sm:$0xff]
    %v2640 = vld [vmem:[%s5 + $0x1b8] sm:$0xff]
    %v2641 = vld [vmem:[%s5 + $0x1c0] sm:$0xff]
    %v2642 = vld [vmem:[%s5 + $0x1c8] sm:$0xff]
    %v2643 = vld [vmem:[%s5 + $0x1d0] sm:$0xff]
    %v2644 = vld [vmem:[%s5 + $0x1d8] sm:$0xff]
    %v2645 = vld [vmem:[%s5 + $0x1e0] sm:$0xff]
    %v2646 = vld [vmem:[%s5 + $0x1e8] sm:$0xff]
    %v2647 = vld [vmem:[%s5 + $0x1f0] sm:$0xff]
    %v2648 = vld [vmem:[%s5 + $0x1f8] sm:$0xff]
    %v2649 = vld [vmem:[%s5 + $0x200] sm:$0xff]
    %v2650 = vld [vmem:[%s5 + $0x208] sm:$0xff]
    %v2651 = vld [vmem:[%s5 + $0x210] sm:$0xff]
    %v2652 = vld [vmem:[%s5 + $0x218] sm:$0xff]
    %v2653 = vld [vmem:[%s5 + $0x220] sm:$0xff]
    %v2654 = vld [vmem:[%s5 + $0x228] sm:$0xff]
    %v2655 = vld [vmem:[%s5 + $0x230] sm:$0xff]
    %v2656 = vld [vmem:[%s5 + $0x238] sm:$0xff]
    %v2657 = vld [vmem:[%s5 + $0x240] sm:$0xff]
    %v2658 = vld [vmem:[%s5 + $0x248] sm:$0xff]
    %v2659 = vld [vmem:[%s5 + $0x250] sm:$0xff]
    %v2660 = vld [vmem:[%s5 + $0x258] sm:$0xff]
    %v2661 = vld [vmem:[%s5 + $0x260] sm:$0xff]
    %v2662 = vld [vmem:[%s5 + $0x268] sm:$0xff]
    %v2663 = vld [vmem:[%s5 + $0x270] sm:$0xff]
    %v2664 = vld [vmem:[%s5 + $0x278] sm:$0xff]
    %v2665 = vld [vmem:[%s5 + $0x280] sm:$0xff]
    %v2666 = vld [vmem:[%s5 + $0x288] sm:$0xff]
    %v2667 = vld [vmem:[%s5 + $0x290] sm:$0xff]
    %v2668 = vld [vmem:[%s5 + $0x298] sm:$0xff]
    %v2669 = vld [vmem:[%s5 + $0x2a0] sm:$0xff]
    %v2670 = vld [vmem:[%s5 + $0x2a8] sm:$0xff]
    %v2671 = vld [vmem:[%s5 + $0x2b0] sm:$0xff]
    %v2672 = vld [vmem:[%s5 + $0x2b8] sm:$0xff]
    %v2673 = vld [vmem:[%s5 + $0x2c0] sm:$0xff]
    %v2674 = vld [vmem:[%s5 + $0x2c8] sm:$0xff]
    %v2675 = vld [vmem:[%s5 + $0x2d0] sm:$0xff]
    %v2676 = vld [vmem:[%s5 + $0x2d8] sm:$0xff]
    %v2677 = vld [vmem:[%s5 + $0x2e0] sm:$0xff]
    %v2678 = vld [vmem:[%s5 + $0x2e8] sm:$0xff]
    %v2679 = vld [vmem:[%s5 + $0x2f0] sm:$0xff]
    %v2680 = vld [vmem:[%s5 + $0x2f8] sm:$0xff]
    %v2681 = vld [vmem:[%s5 + $0x300] sm:$0xff]
    %v2682 = vld [vmem:[%s5 + $0x308] sm:$0xff]
    %v2683 = vld [vmem:[%s5 + $0x310] sm:$0xff]
    %v2684 = vld [vmem:[%s5 + $0x318] sm:$0xff]
    %v2685 = vld [vmem:[%s5 + $0x320] sm:$0xff]
    %v2686 = vld [vmem:[%s5 + $0x328] sm:$0xff]
    %v2687 = vld [vmem:[%s5 + $0x330] sm:$0xff]
    %v2688 = vld [vmem:[%s5 + $0x338] sm:$0xff]
    %v2689 = vld [vmem:[%s5 + $0x340] sm:$0xff]
    %v2690 = vld [vmem:[%s5 + $0x348] sm:$0xff]
    %v2691 = vld [vmem:[%s5 + $0x350] sm:$0xff]
    %v2692 = vld [vmem:[%s5 + $0x358] sm:$0xff]
    %v2693 = vld [vmem:[%s5 + $0x360] sm:$0xff]
    %v2694 = vld [vmem:[%s5 + $0x368] sm:$0xff]
    %v2695 = vld [vmem:[%s5 + $0x370] sm:$0xff]
    %v2696 = vld [vmem:[%s5 + $0x378] sm:$0xff]
    %v2697 = vld [vmem:[%s5 + $0x380] sm:$0xff]
    %v2698 = vld [vmem:[%s5 + $0x388] sm:$0xff]
    %v2699 = vld [vmem:[%s5 + $0x390] sm:$0xff]
    %v2700 = vld [vmem:[%s5 + $0x398] sm:$0xff]
    %v2701 = vld [vmem:[%s5 + $0x3a0] sm:$0xff]
    %v2702 = vld [vmem:[%s5 + $0x3a8] sm:$0xff]
    %v2703 = vld [vmem:[%s5 + $0x3b0] sm:$0xff]
    %v2704 = vld [vmem:[%s5 + $0x3b8] sm:$0xff]
    %v2705 = vld [vmem:[%s5 + $0x3c0] sm:$0xff]
    %v2706 = vld [vmem:[%s5 + $0x3c8] sm:$0xff]
    %v2707 = vld [vmem:[%s5 + $0x3d0] sm:$0xff]
    %v2708 = vld [vmem:[%s5 + $0x3d8] sm:$0xff]
    %v2709 = vld [vmem:[%s5 + $0x3e0] sm:$0xff]
    %v2710 = vld [vmem:[%s5 + $0x3e8] sm:$0xff]
    %v2711 = vld [vmem:[%s5 + $0x3f0] sm:$0xff]
    %v2712 = vld [vmem:[%s5 + $0x3f8] sm:$0xff]
    %v2713 = vld [vmem:[%s6] sm:$0xff]
    %v2714 = vld [vmem:[%s6 + $0x8] sm:$0xff]
    %v2715 = vld [vmem:[%s6 + $0x10] sm:$0xff]
    %v2716 = vld [vmem:[%s6 + $0x18] sm:$0xff]
    %v2717 = vld [vmem:[%s6 + $0x20] sm:$0xff]
    %v2718 = vld [vmem:[%s6 + $0x28] sm:$0xff]
    %v2719 = vld [vmem:[%s6 + $0x30] sm:$0xff]
    %v2720 = vld [vmem:[%s6 + $0x38] sm:$0xff]
    %v2721 = vld [vmem:[%s6 + $0x40] sm:$0xff]
    %v2722 = vld [vmem:[%s6 + $0x48] sm:$0xff]
    %v2723 = vld [vmem:[%s6 + $0x50] sm:$0xff]
    %v2724 = vld [vmem:[%s6 + $0x58] sm:$0xff]
    %v2725 = vld [vmem:[%s6 + $0x60] sm:$0xff]
    %v2726 = vld [vmem:[%s6 + $0x68] sm:$0xff]
    %v2727 = vld [vmem:[%s6 + $0x70] sm:$0xff]
    %v2728 = vld [vmem:[%s6 + $0x78] sm:$0xff]
    %2730 = vset.pattern.permute.xlu0 0
    %2731 = vperm.xlu0 %2730, %v2713
    %v2732 = vpop.permute.xlu0 %2731
    %2735 = vset.pattern.permute.xlu0 0
    %2736 = vperm.xlu0 %2735, %v2714
    %v2737 = vpop.permute.xlu0 %2736
    %2740 = vset.pattern.permute.xlu0 0
    %2741 = vperm.xlu0 %2740, %v2715
    %v2742 = vpop.permute.xlu0 %2741
    %2745 = vset.pattern.permute.xlu0 0
    %2746 = vperm.xlu0 %2745, %v2716
    %v2747 = vpop.permute.xlu0 %2746
    %2750 = vset.pattern.permute.xlu0 0
    %2751 = vperm.xlu0 %2750, %v2717
    %v2752 = vpop.permute.xlu0 %2751
    %2755 = vset.pattern.permute.xlu0 0
    %2756 = vperm.xlu0 %2755, %v2718
    %v2757 = vpop.permute.xlu0 %2756
    %2760 = vset.pattern.permute.xlu0 0
    %2761 = vperm.xlu0 %2760, %v2719
    %v2762 = vpop.permute.xlu0 %2761
    %2765 = vset.pattern.permute.xlu0 0
    %2766 = vperm.xlu0 %2765, %v2720
    %v2767 = vpop.permute.xlu0 %2766
    %2770 = vset.pattern.permute.xlu0 0
    %2771 = vperm.xlu0 %2770, %v2721
    %v2772 = vpop.permute.xlu0 %2771
    %2775 = vset.pattern.permute.xlu0 0
    %2776 = vperm.xlu0 %2775, %v2722
    %v2777 = vpop.permute.xlu0 %2776
    %2780 = vset.pattern.permute.xlu0 0
    %2781 = vperm.xlu0 %2780, %v2723
    %v2782 = vpop.permute.xlu0 %2781
    %2785 = vset.pattern.permute.xlu0 0
    %2786 = vperm.xlu0 %2785, %v2724
    %v2787 = vpop.permute.xlu0 %2786
    %2790 = vset.pattern.permute.xlu0 0
    %2791 = vperm.xlu0 %2790, %v2725
    %v2792 = vpop.permute.xlu0 %2791
    %2795 = vset.pattern.permute.xlu0 0
    %2796 = vperm.xlu0 %2795, %v2726
    %v2797 = vpop.permute.xlu0 %2796
    %2800 = vset.pattern.permute.xlu0 0
    %2801 = vperm.xlu0 %2800, %v2727
    %v2802 = vpop.permute.xlu0 %2801
    %2805 = vset.pattern.permute.xlu0 0
    %2806 = vperm.xlu0 %2805, %v2728
    %v2807 = vpop.permute.xlu0 %2806
    %2809 = vmatprep.subr.mxu0 0.0
    %2810 = vmatpush1.msra.mxu0 %v2457
    %2811 = vmatprep.subr.mxu0 0.0
    %2812 = vmatpush1.msra.mxu0 %v2458
    %2813 = vmatprep.subr.mxu0 0.0
    %2814 = vmatpush1.msra.mxu0 %v2459
    %2815 = vmatprep.subr.mxu0 0.0
    %2816 = vmatpush1.msra.mxu0 %v2460
    %2817 = vmatprep.subr.mxu0 0.0
    %2818 = vmatpush1.msra.mxu0 %v2461
    %2819 = vmatprep.subr.mxu0 0.0
    %2820 = vmatpush1.msra.mxu0 %v2462
    %2821 = vmatprep.subr.mxu0 0.0
    %2822 = vmatpush1.msra.mxu0 %v2463
    %2823 = vmatprep.subr.mxu0 0.0
    %2824 = vmatpush1.msra.mxu0 %v2464
    %2825 = vmatprep.subr.mxu0 0.0
    %2826 = vmatpush1.msra.mxu0 %v2465
    %2827 = vmatprep.subr.mxu0 0.0
    %2828 = vmatpush1.msra.mxu0 %v2466
    %2829 = vmatprep.subr.mxu0 0.0
    %2830 = vmatpush1.msra.mxu0 %v2467
    %2831 = vmatprep.subr.mxu0 0.0
    %2832 = vmatpush1.msra.mxu0 %v2468
    %2833 = vmatprep.subr.mxu0 0.0
    %2834 = vmatpush1.msra.mxu0 %v2469
    %2835 = vmatprep.subr.mxu0 0.0
    %2836 = vmatpush1.msra.mxu0 %v2470
    %2837 = vmatprep.subr.mxu0 0.0
    %2838 = vmatpush1.msra.mxu0 %v2471
    %2839 = vmatprep.subr.mxu0 0.0
    %2840 = vmatpush1.msra.mxu0 %v2472
    %2841 = vmatprep.subr.mxu0 0.0
    %2842 = vmatpush1.msra.mxu0 %v2473
    %2843 = vmatprep.subr.mxu0 0.0
    %2844 = vmatpush1.msra.mxu0 %v2474
    %2845 = vmatprep.subr.mxu0 0.0
    %2846 = vmatpush1.msra.mxu0 %v2475
    %2847 = vmatprep.subr.mxu0 0.0
    %2848 = vmatpush1.msra.mxu0 %v2476
    %2849 = vmatprep.subr.mxu0 0.0
    %2850 = vmatpush1.msra.mxu0 %v2477
    %2851 = vmatprep.subr.mxu0 0.0
    %2852 = vmatpush1.msra.mxu0 %v2478
    %2853 = vmatprep.subr.mxu0 0.0
    %2854 = vmatpush1.msra.mxu0 %v2479
    %2855 = vmatprep.subr.mxu0 0.0
    %2856 = vmatpush1.msra.mxu0 %v2480
    %2857 = vmatprep.subr.mxu0 0.0
    %2858 = vmatpush1.msra.mxu0 %v2481
    %2859 = vmatprep.subr.mxu0 0.0
    %2860 = vmatpush1.msra.mxu0 %v2482
    %2861 = vmatprep.subr.mxu0 0.0
    %2862 = vmatpush1.msra.mxu0 %v2483
    %2863 = vmatprep.subr.mxu0 0.0
    %2864 = vmatpush1.msra.mxu0 %v2484
    %2865 = vmatprep.subr.mxu0 0.0
    %2866 = vmatpush1.msra.mxu0 %v2485
    %2867 = vmatprep.subr.mxu0 0.0
    %2868 = vmatpush1.msra.mxu0 %v2486
    %2869 = vmatprep.subr.mxu0 0.0
    %2870 = vmatpush1.msra.mxu0 %v2487
    %2871 = vmatprep.subr.mxu0 0.0
    %2872 = vmatpush1.msra.mxu0 %v2488
    %2873 = vmatprep.mubr.f32.mxu0 %v2586
    %2874 = vmatmul.mubr.f32.gmra.mrb[0].mxu0 %v2585
    %v2875 = vpop.f32.mrb[0].mxu0
    %v2876 = vadd.f32 %v2732, %v2875
    %v2877 = vpop.f32.mrb[0].mxu0
    %2878 = vmatprep.mubr.f32.mxu0 %v2594
    %2879 = vmatmul.mubr.f32.gmra.mrb[0].mxu0 %v2593
    %v2880 = vpop.f32.mrb[0].mxu0
    %v2881 = vadd.f32 %v2737, %v2880
    %v2882 = vpop.f32.mrb[0].mxu0
    %2883 = vmatprep.mubr.f32.mxu0 %v2602
    %2884 = vmatmul.mubr.f32.gmra.mrb[0].mxu0 %v2601
    %v2885 = vpop.f32.mrb[0].mxu0
    %v2886 = vadd.f32 %v2742, %v2885
    %v2887 = vpop.f32.mrb[0].mxu0
    %2888 = vmatprep.mubr.f32.mxu0 %v2610
    %2889 = vmatmul.mubr.f32.gmra.mrb[0].mxu0 %v2609
    %v2890 = vpop.f32.mrb[0].mxu0
    %v2891 = vadd.f32 %v2747, %v2890
    %v2892 = vpop.f32.mrb[0].mxu0
    %2893 = vmatprep.mubr.f32.mxu0 %v2618
    %2894 = vmatmul.mubr.f32.gmra.mrb[0].mxu0 %v2617
    %v2895 = vpop.f32.mrb[0].mxu0
    %v2896 = vadd.f32 %v2752, %v2895
    %v2897 = vpop.f32.mrb[0].mxu0
    %2898 = vmatprep.mubr.f32.mxu0 %v2626
    %2899 = vmatmul.mubr.f32.gmra.mrb[0].mxu0 %v2625
    %v2900 = vpop.f32.mrb[0].mxu0
    %v2901 = vadd.f32 %v2757, %v2900
    %v2902 = vpop.f32.mrb[0].mxu0
    %2903 = vmatprep.mubr.f32.mxu0 %v2634
    %2904 = vmatmul.mubr.f32.gmra.mrb[0].mxu0 %v2633
    %v2905 = vpop.f32.mrb[0].mxu0
    %v2906 = vadd.f32 %v2762, %v2905
    %v2907 = vpop.f32.mrb[0].mxu0
    %2908 = vmatprep.mubr.f32.mxu0 %v2642
    %2909 = vmatmul.mubr.f32.gmra.mrb[0].mxu0 %v2641
    %v2910 = vpop.f32.mrb[0].mxu0
    %v2911 = vadd.f32 %v2767, %v2910
    %v2912 = vpop.f32.mrb[0].mxu0
    %2913 = vmatprep.mubr.f32.mxu0 %v2650
    %2914 = vmatmul.mubr.f32.gmra.mrb[0].mxu0 %v2649
    %v2915 = vpop.f32.mrb[0].mxu0
    %v2916 = vadd.f32 %v2772, %v2915
    %v2917 = vpop.f32.mrb[0].mxu0
    %2918 = vmatprep.mubr.f32.mxu0 %v2658
    %2919 = vmatmul.mubr.f32.gmra.mrb[0].mxu0 %v2657
    %v2920 = vpop.f32.mrb[0].mxu0
    %v2921 = vadd.f32 %v2777, %v2920
    %v2922 = vpop.f32.mrb[0].mxu0
    %2923 = vmatprep.mubr.f32.mxu0 %v2666
    %2924 = vmatmul.mubr.f32.gmra.mrb[0].mxu0 %v2665
    %v2925 = vpop.f32.mrb[0].mxu0
    %v2926 = vadd.f32 %v2782, %v2925
    %v2927 = vpop.f32.mrb[0].mxu0
    %2928 = vmatprep.mubr.f32.mxu0 %v2674
    %2929 = vmatmul.mubr.f32.gmra.mrb[0].mxu0 %v2673
    %v2930 = vpop.f32.mrb[0].mxu0
    %v2931 = vadd.f32 %v2787, %v2930
    %v2932 = vpop.f32.mrb[0].mxu0
    %2933 = vmatprep.mubr.f32.mxu0 %v2682
    %2934 = vmatmul.mubr.f32.gmra.mrb[0].mxu0 %v2681
    %v2935 = vpop.f32.mrb[0].mxu0
    %v2936 = vadd.f32 %v2792, %v2935
    %v2937 = vpop.f32.mrb[0].mxu0
    %2938 = vmatprep.mubr.f32.mxu0 %v2690
    %2939 = vmatmul.mubr.f32.gmra.mrb[0].mxu0 %v2689
    %v2940 = vpop.f32.mrb[0].mxu0
    %v2941 = vadd.f32 %v2797, %v2940
    %v2942 = vpop.f32.mrb[0].mxu0
    %2943 = vmatprep.mubr.f32.mxu0 %v2698
    %2944 = vmatmul.mubr.f32.gmra.mrb[0].mxu0 %v2697
    %v2945 = vpop.f32.mrb[0].mxu0
    %v2946 = vadd.f32 %v2802, %v2945
    %v2947 = vpop.f32.mrb[0].mxu0
    %2948 = vmatprep.mubr.f32.mxu0 %v2706
    %2949 = vmatmul.mubr.f32.gmra.mrb[0].mxu0 %v2705
    %v2950 = vpop.f32.mrb[0].mxu0
    %v2951 = vadd.f32 %v2807, %v2950
    %v2952 = vpop.f32.mrb[0].mxu0
    %2953 = vdwg.mxu0
    %2954 = vmatprep.subr.mxu0 0.0
    %2955 = vmatpush1.msra.mxu0 %v2489
    %2956 = vmatprep.subr.mxu0 0.0
    %2957 = vmatpush1.msra.mxu0 %v2490
    %2958 = vmatprep.subr.mxu0 0.0
    %2959 = vmatpush1.msra.mxu0 %v2491
    %2960 = vmatprep.subr.mxu0 0.0
    %2961 = vmatpush1.msra.mxu0 %v2492
    %2962 = vmatprep.subr.mxu0 0.0
    %2963 = vmatpush1.msra.mxu0 %v2493
    %2964 = vmatprep.subr.mxu0 0.0
    %2965 = vmatpush1.msra.mxu0 %v2494
    %2966 = vmatprep.subr.mxu0 0.0
    %2967 = vmatpush1.msra.mxu0 %v2495
    %2968 = vmatprep.subr.mxu0 0.0
    %2969 = vmatpush1.msra.mxu0 %v2496
    %2970 = vmatprep.subr.mxu0 0.0
    %2971 = vmatpush1.msra.mxu0 %v2497
    %2972 = vmatprep.subr.mxu0 0.0
    %2973 = vmatpush1.msra.mxu0 %v2498
    %2974 = vmatprep.subr.mxu0 0.0
    %2975 = vmatpush1.msra.mxu0 %v2499
    %2976 = vmatprep.subr.mxu0 0.0
    %2977 = vmatpush1.msra.mxu0 %v2500
    %2978 = vmatprep.subr.mxu0 0.0
    %2979 = vmatpush1.msra.mxu0 %v2501
    %2980 = vmatprep.subr.mxu0 0.0
    %2981 = vmatpush1.msra.mxu0 %v2502
    %2982 = vmatprep.subr.mxu0 0.0
    %2983 = vmatpush1.msra.mxu0 %v2503
    %2984 = vmatprep.subr.mxu0 0.0
    %2985 = vmatpush1.msra.mxu0 %v2504
    %2986 = vmatprep.subr.mxu0 0.0
    %2987 = vmatpush1.msra.mxu0 %v2505
    %2988 = vmatprep.subr.mxu0 0.0
    %2989 = vmatpush1.msra.mxu0 %v2506
    %2990 = vmatprep.subr.mxu0 0.0
    %2991 = vmatpush1.msra.mxu0 %v2507
    %2992 = vmatprep.subr.mxu0 0.0
    %2993 = vmatpush1.msra.mxu0 %v2508
    %2994 = vmatprep.subr.mxu0 0.0
    %2995 = vmatpush1.msra.mxu0 %v2509
    %2996 = vmatprep.subr.mxu0 0.0
    %2997 = vmatpush1.msra.mxu0 %v2510
    %2998 = vmatprep.subr.mxu0 0.0
    %2999 = vmatpush1.msra.mxu0 %v2511
    %3000 = vmatprep.subr.mxu0 0.0
    %3001 = vmatpush1.msra.mxu0 %v2512
    %3002 = vmatprep.subr.mxu0 0.0
    %3003 = vmatpush1.msra.mxu0 %v2513
    %3004 = vmatprep.subr.mxu0 0.0
    %3005 = vmatpush1.msra.mxu0 %v2514
    %3006 = vmatprep.subr.mxu0 0.0
    %3007 = vmatpush1.msra.mxu0 %v2515
    %3008 = vmatprep.subr.mxu0 0.0
    %3009 = vmatpush1.msra.mxu0 %v2516
    %3010 = vmatprep.subr.mxu0 0.0
    %3011 = vmatpush1.msra.mxu0 %v2517
    %3012 = vmatprep.subr.mxu0 0.0
    %3013 = vmatpush1.msra.mxu0 %v2518
    %3014 = vmatprep.subr.mxu0 0.0
    %3015 = vmatpush1.msra.mxu0 %v2519
    %3016 = vmatprep.subr.mxu0 0.0
    %3017 = vmatpush1.msra.mxu0 %v2520
    %3018 = vmatprep.mubr.f32.mxu0 %v2588
    %3019 = vmatmul.mubr.f32.gmra.mrb[0].mxu0 %v2587
    %v3020 = vpop.f32.mrb[0].mxu0
    %v3021 = vadd.f32 %v2876, %v3020
    %v3022 = vpop.f32.mrb[0].mxu0
    %3023 = vmatprep.mubr.f32.mxu0 %v2596
    %3024 = vmatmul.mubr.f32.gmra.mrb[0].mxu0 %v2595
    %v3025 = vpop.f32.mrb[0].mxu0
    %v3026 = vadd.f32 %v2881, %v3025
    %v3027 = vpop.f32.mrb[0].mxu0
    %3028 = vmatprep.mubr.f32.mxu0 %v2604
    %3029 = vmatmul.mubr.f32.gmra.mrb[0].mxu0 %v2603
    %v3030 = vpop.f32.mrb[0].mxu0
    %v3031 = vadd.f32 %v2886, %v3030
    %v3032 = vpop.f32.mrb[0].mxu0
    %3033 = vmatprep.mubr.f32.mxu0 %v2612
    %3034 = vmatmul.mubr.f32.gmra.mrb[0].mxu0 %v2611
    %v3035 = vpop.f32.mrb[0].mxu0
    %v3036 = vadd.f32 %v2891, %v3035
    %v3037 = vpop.f32.mrb[0].mxu0
    %3038 = vmatprep.mubr.f32.mxu0 %v2620
    %3039 = vmatmul.mubr.f32.gmra.mrb[0].mxu0 %v2619
    %v3040 = vpop.f32.mrb[0].mxu0
    %v3041 = vadd.f32 %v2896, %v3040
    %v3042 = vpop.f32.mrb[0].mxu0
    %3043 = vmatprep.mubr.f32.mxu0 %v2628
    %3044 = vmatmul.mubr.f32.gmra.mrb[0].mxu0 %v2627
    %v3045 = vpop.f32.mrb[0].mxu0
    %v3046 = vadd.f32 %v2901, %v3045
    %v3047 = vpop.f32.mrb[0].mxu0
    %3048 = vmatprep.mubr.f32.mxu0 %v2636
    %3049 = vmatmul.mubr.f32.gmra.mrb[0].mxu0 %v2635
    %v3050 = vpop.f32.mrb[0].mxu0
    %v3051 = vadd.f32 %v2906, %v3050
    %v3052 = vpop.f32.mrb[0].mxu0
    %3053 = vmatprep.mubr.f32.mxu0 %v2644
    %3054 = vmatmul.mubr.f32.gmra.mrb[0].mxu0 %v2643
    %v3055 = vpop.f32.mrb[0].mxu0
    %v3056 = vadd.f32 %v2911, %v3055
    %v3057 = vpop.f32.mrb[0].mxu0
    %3058 = vmatprep.mubr.f32.mxu0 %v2652
    %3059 = vmatmul.mubr.f32.gmra.mrb[0].mxu0 %v2651
    %v3060 = vpop.f32.mrb[0].mxu0
    %v3061 = vadd.f32 %v2916, %v3060
    %v3062 = vpop.f32.mrb[0].mxu0
    %3063 = vmatprep.mubr.f32.mxu0 %v2660
    %3064 = vmatmul.mubr.f32.gmra.mrb[0].mxu0 %v2659
    %v3065 = vpop.f32.mrb[0].mxu0
    %v3066 = vadd.f32 %v2921, %v3065
    %v3067 = vpop.f32.mrb[0].mxu0
    %3068 = vmatprep.mubr.f32.mxu0 %v2668
    %3069 = vmatmul.mubr.f32.gmra.mrb[0].mxu0 %v2667
    %v3070 = vpop.f32.mrb[0].mxu0
    %v3071 = vadd.f32 %v2926, %v3070
    %v3072 = vpop.f32.mrb[0].mxu0
    %3073 = vmatprep.mubr.f32.mxu0 %v2676
    %3074 = vmatmul.mubr.f32.gmra.mrb[0].mxu0 %v2675
    %v3075 = vpop.f32.mrb[0].mxu0
    %v3076 = vadd.f32 %v2931, %v3075
    %v3077 = vpop.f32.mrb[0].mxu0
    %3078 = vmatprep.mubr.f32.mxu0 %v2684
    %3079 = vmatmul.mubr.f32.gmra.mrb[0].mxu0 %v2683
    %v3080 = vpop.f32.mrb[0].mxu0
    %v3081 = vadd.f32 %v2936, %v3080
    %v3082 = vpop.f32.mrb[0].mxu0
    %3083 = vmatprep.mubr.f32.mxu0 %v2692
    %3084 = vmatmul.mubr.f32.gmra.mrb[0].mxu0 %v2691
    %v3085 = vpop.f32.mrb[0].mxu0
    %v3086 = vadd.f32 %v2941, %v3085
    %v3087 = vpop.f32.mrb[0].mxu0
    %3088 = vmatprep.mubr.f32.mxu0 %v2700
    %3089 = vmatmul.mubr.f32.gmra.mrb[0].mxu0 %v2699
    %v3090 = vpop.f32.mrb[0].mxu0
    %v3091 = vadd.f32 %v2946, %v3090
    %v3092 = vpop.f32.mrb[0].mxu0
    %3093 = vmatprep.mubr.f32.mxu0 %v2708
    %3094 = vmatmul.mubr.f32.gmra.mrb[0].mxu0 %v2707
    %v3095 = vpop.f32.mrb[0].mxu0
    %v3096 = vadd.f32 %v2951, %v3095
    %v3097 = vpop.f32.mrb[0].mxu0
    %3098 = vdwg.mxu0
    %3099 = vmatprep.subr.mxu0 0.0
    %3100 = vmatpush1.msra.mxu0 %v2521
    %3101 = vmatprep.subr.mxu0 0.0
    %3102 = vmatpush1.msra.mxu0 %v2522
    %3103 = vmatprep.subr.mxu0 0.0
    %3104 = vmatpush1.msra.mxu0 %v2523
    %3105 = vmatprep.subr.mxu0 0.0
    %3106 = vmatpush1.msra.mxu0 %v2524
    %3107 = vmatprep.subr.mxu0 0.0
    %3108 = vmatpush1.msra.mxu0 %v2525
    %3109 = vmatprep.subr.mxu0 0.0
    %3110 = vmatpush1.msra.mxu0 %v2526
    %3111 = vmatprep.subr.mxu0 0.0
    %3112 = vmatpush1.msra.mxu0 %v2527
    %3113 = vmatprep.subr.mxu0 0.0
    %3114 = vmatpush1.msra.mxu0 %v2528
    %3115 = vmatprep.subr.mxu0 0.0
    %3116 = vmatpush1.msra.mxu0 %v2529
    %3117 = vmatprep.subr.mxu0 0.0
    %3118 = vmatpush1.msra.mxu0 %v2530
    %3119 = vmatprep.subr.mxu0 0.0
    %3120 = vmatpush1.msra.mxu0 %v2531
    %3121 = vmatprep.subr.mxu0 0.0
    %3122 = vmatpush1.msra.mxu0 %v2532
    %3123 = vmatprep.subr.mxu0 0.0
    %3124 = vmatpush1.msra.mxu0 %v2533
    %3125 = vmatprep.subr.mxu0 0.0
    %3126 = vmatpush1.msra.mxu0 %v2534
    %3127 = vmatprep.subr.mxu0 0.0
    %3128 = vmatpush1.msra.mxu0 %v2535
    %3129 = vmatprep.subr.mxu0 0.0
    %3130 = vmatpush1.msra.mxu0 %v2536
    %3131 = vmatprep.subr.mxu0 0.0
    %3132 = vmatpush1.msra.mxu0 %v2537
    %3133 = vmatprep.subr.mxu0 0.0
    %3134 = vmatpush1.msra.mxu0 %v2538
    %3135 = vmatprep.subr.mxu0 0.0
    %3136 = vmatpush1.msra.mxu0 %v2539
    %3137 = vmatprep.subr.mxu0 0.0
    %3138 = vmatpush1.msra.mxu0 %v2540
    %3139 = vmatprep.subr.mxu0 0.0
    %3140 = vmatpush1.msra.mxu0 %v2541
    %3141 = vmatprep.subr.mxu0 0.0
    %3142 = vmatpush1.msra.mxu0 %v2542
    %3143 = vmatprep.subr.mxu0 0.0
    %3144 = vmatpush1.msra.mxu0 %v2543
    %3145 = vmatprep.subr.mxu0 0.0
    %3146 = vmatpush1.msra.mxu0 %v2544
    %3147 = vmatprep.subr.mxu0 0.0
    %3148 = vmatpush1.msra.mxu0 %v2545
    %3149 = vmatprep.subr.mxu0 0.0
    %3150 = vmatpush1.msra.mxu0 %v2546
    %3151 = vmatprep.subr.mxu0 0.0
    %3152 = vmatpush1.msra.mxu0 %v2547
    %3153 = vmatprep.subr.mxu0 0.0
    %3154 = vmatpush1.msra.mxu0 %v2548
    %3155 = vmatprep.subr.mxu0 0.0
    %3156 = vmatpush1.msra.mxu0 %v2549
    %3157 = vmatprep.subr.mxu0 0.0
    %3158 = vmatpush1.msra.mxu0 %v2550
    %3159 = vmatprep.subr.mxu0 0.0
    %3160 = vmatpush1.msra.mxu0 %v2551
    %3161 = vmatprep.subr.mxu0 0.0
    %3162 = vmatpush1.msra.mxu0 %v2552
    %3163 = vmatprep.mubr.f32.mxu0 %v2590
    %3164 = vmatmul.mubr.f32.gmra.mrb[0].mxu0 %v2589
    %v3165 = vpop.f32.mrb[0].mxu0
    %v3166 = vadd.f32 %v3021, %v3165
    %v3167 = vpop.f32.mrb[0].mxu0
    %3168 = vmatprep.mubr.f32.mxu0 %v2598
    %3169 = vmatmul.mubr.f32.gmra.mrb[0].mxu0 %v2597
    %v3170 = vpop.f32.mrb[0].mxu0
    %v3171 = vadd.f32 %v3026, %v3170
    %v3172 = vpop.f32.mrb[0].mxu0
    %3173 = vmatprep.mubr.f32.mxu0 %v2606
    %3174 = vmatmul.mubr.f32.gmra.mrb[0].mxu0 %v2605
    %v3175 = vpop.f32.mrb[0].mxu0
    %v3176 = vadd.f32 %v3031, %v3175
    %v3177 = vpop.f32.mrb[0].mxu0
    %3178 = vmatprep.mubr.f32.mxu0 %v2614
    %3179 = vmatmul.mubr.f32.gmra.mrb[0].mxu0 %v2613
    %v3180 = vpop.f32.mrb[0].mxu0
    %v3181 = vadd.f32 %v3036, %v3180
    %v3182 = vpop.f32.mrb[0].mxu0
    %3183 = vmatprep.mubr.f32.mxu0 %v2622
    %3184 = vmatmul.mubr.f32.gmra.mrb[0].mxu0 %v2621
    %v3185 = vpop.f32.mrb[0].mxu0
    %v3186 = vadd.f32 %v3041, %v3185
    %v3187 = vpop.f32.mrb[0].mxu0
    %3188 = vmatprep.mubr.f32.mxu0 %v2630
    %3189 = vmatmul.mubr.f32.gmra.mrb[0].mxu0 %v2629
    %v3190 = vpop.f32.mrb[0].mxu0
    %v3191 = vadd.f32 %v3046, %v3190
    %v3192 = vpop.f32.mrb[0].mxu0
    %3193 = vmatprep.mubr.f32.mxu0 %v2638
    %3194 = vmatmul.mubr.f32.gmra.mrb[0].mxu0 %v2637
    %v3195 = vpop.f32.mrb[0].mxu0
    %v3196 = vadd.f32 %v3051, %v3195
    %v3197 = vpop.f32.mrb[0].mxu0
    %3198 = vmatprep.mubr.f32.mxu0 %v2646
    %3199 = vmatmul.mubr.f32.gmra.mrb[0].mxu0 %v2645
    %v3200 = vpop.f32.mrb[0].mxu0
    %v3201 = vadd.f32 %v3056, %v3200
    %v3202 = vpop.f32.mrb[0].mxu0
    %3203 = vmatprep.mubr.f32.mxu0 %v2654
    %3204 = vmatmul.mubr.f32.gmra.mrb[0].mxu0 %v2653
    %v3205 = vpop.f32.mrb[0].mxu0
    %v3206 = vadd.f32 %v3061, %v3205
    %v3207 = vpop.f32.mrb[0].mxu0
    %3208 = vmatprep.mubr.f32.mxu0 %v2662
    %3209 = vmatmul.mubr.f32.gmra.mrb[0].mxu0 %v2661
    %v3210 = vpop.f32.mrb[0].mxu0
    %v3211 = vadd.f32 %v3066, %v3210
    %v3212 = vpop.f32.mrb[0].mxu0
    %3213 = vmatprep.mubr.f32.mxu0 %v2670
    %3214 = vmatmul.mubr.f32.gmra.mrb[0].mxu0 %v2669
    %v3215 = vpop.f32.mrb[0].mxu0
    %v3216 = vadd.f32 %v3071, %v3215
    %v3217 = vpop.f32.mrb[0].mxu0
    %3218 = vmatprep.mubr.f32.mxu0 %v2678
    %3219 = vmatmul.mubr.f32.gmra.mrb[0].mxu0 %v2677
    %v3220 = vpop.f32.mrb[0].mxu0
    %v3221 = vadd.f32 %v3076, %v3220
    %v3222 = vpop.f32.mrb[0].mxu0
    %3223 = vmatprep.mubr.f32.mxu0 %v2686
    %3224 = vmatmul.mubr.f32.gmra.mrb[0].mxu0 %v2685
    %v3225 = vpop.f32.mrb[0].mxu0
    %v3226 = vadd.f32 %v3081, %v3225
    %v3227 = vpop.f32.mrb[0].mxu0
    %3228 = vmatprep.mubr.f32.mxu0 %v2694
    %3229 = vmatmul.mubr.f32.gmra.mrb[0].mxu0 %v2693
    %v3230 = vpop.f32.mrb[0].mxu0
    %v3231 = vadd.f32 %v3086, %v3230
    %v3232 = vpop.f32.mrb[0].mxu0
    %3233 = vmatprep.mubr.f32.mxu0 %v2702
    %3234 = vmatmul.mubr.f32.gmra.mrb[0].mxu0 %v2701
    %v3235 = vpop.f32.mrb[0].mxu0
    %v3236 = vadd.f32 %v3091, %v3235
    %v3237 = vpop.f32.mrb[0].mxu0
    %3238 = vmatprep.mubr.f32.mxu0 %v2710
    %3239 = vmatmul.mubr.f32.gmra.mrb[0].mxu0 %v2709
    %v3240 = vpop.f32.mrb[0].mxu0
    %v3241 = vadd.f32 %v3096, %v3240
    %v3242 = vpop.f32.mrb[0].mxu0
    %3243 = vdwg.mxu0
    %3244 = vmatprep.subr.mxu0 0.0
    %3245 = vmatpush1.msra.mxu0 %v2553
    %3246 = vmatprep.subr.mxu0 0.0
    %3247 = vmatpush1.msra.mxu0 %v2554
    %3248 = vmatprep.subr.mxu0 0.0
    %3249 = vmatpush1.msra.mxu0 %v2555
    %3250 = vmatprep.subr.mxu0 0.0
    %3251 = vmatpush1.msra.mxu0 %v2556
    %3252 = vmatprep.subr.mxu0 0.0
    %3253 = vmatpush1.msra.mxu0 %v2557
    %3254 = vmatprep.subr.mxu0 0.0
    %3255 = vmatpush1.msra.mxu0 %v2558
    %3256 = vmatprep.subr.mxu0 0.0
    %3257 = vmatpush1.msra.mxu0 %v2559
    %3258 = vmatprep.subr.mxu0 0.0
    %3259 = vmatpush1.msra.mxu0 %v2560
    %3260 = vmatprep.subr.mxu0 0.0
    %3261 = vmatpush1.msra.mxu0 %v2561
    %3262 = vmatprep.subr.mxu0 0.0
    %3263 = vmatpush1.msra.mxu0 %v2562
    %3264 = vmatprep.subr.mxu0 0.0
    %3265 = vmatpush1.msra.mxu0 %v2563
    %3266 = vmatprep.subr.mxu0 0.0
    %3267 = vmatpush1.msra.mxu0 %v2564
    %3268 = vmatprep.subr.mxu0 0.0
    %3269 = vmatpush1.msra.mxu0 %v2565
    %3270 = vmatprep.subr.mxu0 0.0
    %3271 = vmatpush1.msra.mxu0 %v2566
    %3272 = vmatprep.subr.mxu0 0.0
    %3273 = vmatpush1.msra.mxu0 %v2567
    %3274 = vmatprep.subr.mxu0 0.0
    %3275 = vmatpush1.msra.mxu0 %v2568
    %3276 = vmatprep.subr.mxu0 0.0
    %3277 = vmatpush1.msra.mxu0 %v2569
    %3278 = vmatprep.subr.mxu0 0.0
    %3279 = vmatpush1.msra.mxu0 %v2570
    %3280 = vmatprep.subr.mxu0 0.0
    %3281 = vmatpush1.msra.mxu0 %v2571
    %3282 = vmatprep.subr.mxu0 0.0
    %3283 = vmatpush1.msra.mxu0 %v2572
    %3284 = vmatprep.subr.mxu0 0.0
    %3285 = vmatpush1.msra.mxu0 %v2573
    %3286 = vmatprep.subr.mxu0 0.0
    %3287 = vmatpush1.msra.mxu0 %v2574
    %3288 = vmatprep.subr.mxu0 0.0
    %3289 = vmatpush1.msra.mxu0 %v2575
    %3290 = vmatprep.subr.mxu0 0.0
    %3291 = vmatpush1.msra.mxu0 %v2576
    %3292 = vmatprep.subr.mxu0 0.0
    %3293 = vmatpush1.msra.mxu0 %v2577
    %3294 = vmatprep.subr.mxu0 0.0
    %3295 = vmatpush1.msra.mxu0 %v2578
    %3296 = vmatprep.subr.mxu0 0.0
    %3297 = vmatpush1.msra.mxu0 %v2579
    %3298 = vmatprep.subr.mxu0 0.0
    %3299 = vmatpush1.msra.mxu0 %v2580
    %3300 = vmatprep.subr.mxu0 0.0
    %3301 = vmatpush1.msra.mxu0 %v2581
    %3302 = vmatprep.subr.mxu0 0.0
    %3303 = vmatpush1.msra.mxu0 %v2582
    %3304 = vmatprep.subr.mxu0 0.0
    %3305 = vmatpush1.msra.mxu0 %v2583
    %3306 = vmatprep.subr.mxu0 0.0
    %3307 = vmatpush1.msra.mxu0 %v2584
    %3308 = vmatprep.mubr.f32.mxu0 %v2592
    %3309 = vmatmul.mubr.f32.gmra.mrb[0].mxu0 %v2591
    %v3310 = vpop.f32.mrb[0].mxu0
    %v3311 = vadd.f32 %v3166, %v3310
    %v3312 = vpop.f32.mrb[0].mxu0
    %3313 = vmatprep.mubr.f32.mxu0 %v2600
    %3314 = vmatmul.mubr.f32.gmra.mrb[0].mxu0 %v2599
    %v3315 = vpop.f32.mrb[0].mxu0
    %v3316 = vadd.f32 %v3171, %v3315
    %v3317 = vpop.f32.mrb[0].mxu0
    %3318 = vmatprep.mubr.f32.mxu0 %v2608
    %3319 = vmatmul.mubr.f32.gmra.mrb[0].mxu0 %v2607
    %v3320 = vpop.f32.mrb[0].mxu0
    %v3321 = vadd.f32 %v3176, %v3320
    %v3322 = vpop.f32.mrb[0].mxu0
    %3323 = vmatprep.mubr.f32.mxu0 %v2616
    %3324 = vmatmul.mubr.f32.gmra.mrb[0].mxu0 %v2615
    %v3325 = vpop.f32.mrb[0].mxu0
    %v3326 = vadd.f32 %v3181, %v3325
    %v3327 = vpop.f32.mrb[0].mxu0
    %3328 = vmatprep.mubr.f32.mxu0 %v2624
    %3329 = vmatmul.mubr.f32.gmra.mrb[0].mxu0 %v2623
    %v3330 = vpop.f32.mrb[0].mxu0
    %v3331 = vadd.f32 %v3186, %v3330
    %v3332 = vpop.f32.mrb[0].mxu0
    %3333 = vmatprep.mubr.f32.mxu0 %v2632
    %3334 = vmatmul.mubr.f32.gmra.mrb[0].mxu0 %v2631
    %v3335 = vpop.f32.mrb[0].mxu0
    %v3336 = vadd.f32 %v3191, %v3335
    %v3337 = vpop.f32.mrb[0].mxu0
    %3338 = vmatprep.mubr.f32.mxu0 %v2640
    %3339 = vmatmul.mubr.f32.gmra.mrb[0].mxu0 %v2639
    %v3340 = vpop.f32.mrb[0].mxu0
    %v3341 = vadd.f32 %v3196, %v3340
    %v3342 = vpop.f32.mrb[0].mxu0
    %3343 = vmatprep.mubr.f32.mxu0 %v2648
    %3344 = vmatmul.mubr.f32.gmra.mrb[0].mxu0 %v2647
    %v3345 = vpop.f32.mrb[0].mxu0
    %v3346 = vadd.f32 %v3201, %v3345
    %v3347 = vpop.f32.mrb[0].mxu0
    %3348 = vmatprep.mubr.f32.mxu0 %v2656
    %3349 = vmatmul.mubr.f32.gmra.mrb[0].mxu0 %v2655
    %v3350 = vpop.f32.mrb[0].mxu0
    %v3351 = vadd.f32 %v3206, %v3350
    %v3352 = vpop.f32.mrb[0].mxu0
    %3353 = vmatprep.mubr.f32.mxu0 %v2664
    %3354 = vmatmul.mubr.f32.gmra.mrb[0].mxu0 %v2663
    %v3355 = vpop.f32.mrb[0].mxu0
    %v3356 = vadd.f32 %v3211, %v3355
    %v3357 = vpop.f32.mrb[0].mxu0
    %3358 = vmatprep.mubr.f32.mxu0 %v2672
    %3359 = vmatmul.mubr.f32.gmra.mrb[0].mxu0 %v2671
    %v3360 = vpop.f32.mrb[0].mxu0
    %v3361 = vadd.f32 %v3216, %v3360
    %v3362 = vpop.f32.mrb[0].mxu0
    %3363 = vmatprep.mubr.f32.mxu0 %v2680
    %3364 = vmatmul.mubr.f32.gmra.mrb[0].mxu0 %v2679
    %v3365 = vpop.f32.mrb[0].mxu0
    %v3366 = vadd.f32 %v3221, %v3365
    %v3367 = vpop.f32.mrb[0].mxu0
    %3368 = vmatprep.mubr.f32.mxu0 %v2688
    %3369 = vmatmul.mubr.f32.gmra.mrb[0].mxu0 %v2687
    %v3370 = vpop.f32.mrb[0].mxu0
    %v3371 = vadd.f32 %v3226, %v3370
    %v3372 = vpop.f32.mrb[0].mxu0
    %3373 = vmatprep.mubr.f32.mxu0 %v2696
    %3374 = vmatmul.mubr.f32.gmra.mrb[0].mxu0 %v2695
    %v3375 = vpop.f32.mrb[0].mxu0
    %v3376 = vadd.f32 %v3231, %v3375
    %v3377 = vpop.f32.mrb[0].mxu0
    %3378 = vmatprep.mubr.f32.mxu0 %v2704
    %3379 = vmatmul.mubr.f32.gmra.mrb[0].mxu0 %v2703
    %v3380 = vpop.f32.mrb[0].mxu0
    %v3381 = vadd.f32 %v3236, %v3380
    %v3382 = vpop.f32.mrb[0].mxu0
    %3383 = vmatprep.mubr.f32.mxu0 %v2712
    %3384 = vmatmul.mubr.f32.gmra.mrb[0].mxu0 %v2711
    %v3385 = vpop.f32.mrb[0].mxu0
    %v3386 = vadd.f32 %v3241, %v3385
    %v3387 = vpop.f32.mrb[0].mxu0
    %3388 = vdwg.mxu0
    %v3389 = vand.u32 2147483647, %v3311
    %v3390 = vand.u32 2147483647, %v3316
    %v3391 = vand.u32 2147483647, %v3321
    %v3392 = vand.u32 2147483647, %v3326
    %v3393 = vand.u32 2147483647, %v3331
    %v3394 = vand.u32 2147483647, %v3336
    %v3395 = vand.u32 2147483647, %v3341
    %v3396 = vand.u32 2147483647, %v3346
    %v3397 = vand.u32 2147483647, %v3351
    %v3398 = vand.u32 2147483647, %v3356
    %v3399 = vand.u32 2147483647, %v3361
    %v3400 = vand.u32 2147483647, %v3366
    %v3401 = vand.u32 2147483647, %v3371
    %v3402 = vand.u32 2147483647, %v3376
    %v3403 = vand.u32 2147483647, %v3381
    %v3404 = vand.u32 2147483647, %v3386
    %v3405 = vsub.f32 0.0, %v3389
    %v3406 = vsub.f32 0.0, %v3390
    %v3407 = vsub.f32 0.0, %v3391
    %v3408 = vsub.f32 0.0, %v3392
    %v3409 = vsub.f32 0.0, %v3393
    %v3410 = vsub.f32 0.0, %v3394
    %v3411 = vsub.f32 0.0, %v3395
    %v3412 = vsub.f32 0.0, %v3396
    %v3413 = vsub.f32 0.0, %v3397
    %v3414 = vsub.f32 0.0, %v3398
    %v3415 = vsub.f32 0.0, %v3399
    %v3416 = vsub.f32 0.0, %v3400
    %v3417 = vsub.f32 0.0, %v3401
    %v3418 = vsub.f32 0.0, %v3402
    %v3419 = vsub.f32 0.0, %v3403
    %v3420 = vsub.f32 0.0, %v3404
    %v3421 = vmul.f32 %v3405, 1.442695
    %v3422 = vpow.pop %v3421
    %v3423 = vmul.f32 %v3406, 1.442695
    %v3424 = vpow.pop %v3423
    %v3425 = vmul.f32 %v3407, 1.442695
    %v3426 = vpow.pop %v3425
    %v3427 = vmul.f32 %v3408, 1.442695
    %v3428 = vpow.pop %v3427
    %v3429 = vmul.f32 %v3409, 1.442695
    %v3430 = vpow.pop %v3429
    %v3431 = vmul.f32 %v3410, 1.442695
    %v3432 = vpow.pop %v3431
    %v3433 = vmul.f32 %v3411, 1.442695
    %v3434 = vpow.pop %v3433
    %v3435 = vmul.f32 %v3412, 1.442695
    %v3436 = vpow.pop %v3435
    %v3437 = vmul.f32 %v3413, 1.442695
    %v3438 = vpow.pop %v3437
    %v3439 = vmul.f32 %v3414, 1.442695
    %v3440 = vpow.pop %v3439
    %v3441 = vmul.f32 %v3415, 1.442695
    %v3442 = vpow.pop %v3441
    %v3443 = vmul.f32 %v3416, 1.442695
    %v3444 = vpow.pop %v3443
    %v3445 = vmul.f32 %v3417, 1.442695
    %v3446 = vpow.pop %v3445
    %v3447 = vmul.f32 %v3418, 1.442695
    %v3448 = vpow.pop %v3447
    %v3449 = vmul.f32 %v3419, 1.442695
    %v3450 = vpow.pop %v3449
    %v3451 = vmul.f32 %v3420, 1.442695
    %v3452 = vpow.pop %v3451
    %v3453 = vadd.f32 %v3422, 1.0
    %v3454 = vadd.f32 %v3424, 1.0
    %v3455 = vadd.f32 %v3426, 1.0
    %v3456 = vadd.f32 %v3428, 1.0
    %v3457 = vadd.f32 %v3430, 1.0
    %v3458 = vadd.f32 %v3432, 1.0
    %v3459 = vadd.f32 %v3434, 1.0
    %v3460 = vadd.f32 %v3436, 1.0
    %v3461 = vadd.f32 %v3438, 1.0
    %v3462 = vadd.f32 %v3440, 1.0
    %v3463 = vadd.f32 %v3442, 1.0
    %v3464 = vadd.f32 %v3444, 1.0
    %v3465 = vadd.f32 %v3446, 1.0
    %v3466 = vadd.f32 %v3448, 1.0
    %v3467 = vadd.f32 %v3450, 1.0
    %v3468 = vadd.f32 %v3452, 1.0
    %v3469 = vrcp.pop %v3453
    %v3470 = vmul.f32 1.0, %v3469
    %v3471 = vrcp.pop %v3454
    %v3472 = vmul.f32 1.0, %v3471
    %v3473 = vrcp.pop %v3455
    %v3474 = vmul.f32 1.0, %v3473
    %v3475 = vrcp.pop %v3456
    %v3476 = vmul.f32 1.0, %v3475
    %v3477 = vrcp.pop %v3457
    %v3478 = vmul.f32 1.0, %v3477
    %v3479 = vrcp.pop %v3458
    %v3480 = vmul.f32 1.0, %v3479
    %v3481 = vrcp.pop %v3459
    %v3482 = vmul.f32 1.0, %v3481
    %v3483 = vrcp.pop %v3460
    %v3484 = vmul.f32 1.0, %v3483
    %v3485 = vrcp.pop %v3461
    %v3486 = vmul.f32 1.0, %v3485
    %v3487 = vrcp.pop %v3462
    %v3488 = vmul.f32 1.0, %v3487
    %v3489 = vrcp.pop %v3463
    %v3490 = vmul.f32 1.0, %v3489
    %v3491 = vrcp.pop %v3464
    %v3492 = vmul.f32 1.0, %v3491
    %v3493 = vrcp.pop %v3465
    %v3494 = vmul.f32 1.0, %v3493
    %v3495 = vrcp.pop %v3466
    %v3496 = vmul.f32 1.0, %v3495
    %v3497 = vrcp.pop %v3467
    %v3498 = vmul.f32 1.0, %v3497
    %v3499 = vrcp.pop %v3468
    %v3500 = vmul.f32 1.0, %v3499
    %vm3501 = vcmp.ge.f32.partialorder %v3311, 0.0
    %vm3502 = vcmp.ge.f32.partialorder %v3316, 0.0
    %vm3503 = vcmp.ge.f32.partialorder %v3321, 0.0
    %vm3504 = vcmp.ge.f32.partialorder %v3326, 0.0
    %vm3505 = vcmp.ge.f32.partialorder %v3331, 0.0
    %vm3506 = vcmp.ge.f32.partialorder %v3336, 0.0
    %vm3507 = vcmp.ge.f32.partialorder %v3341, 0.0
    %vm3508 = vcmp.ge.f32.partialorder %v3346, 0.0
    %vm3509 = vcmp.ge.f32.partialorder %v3351, 0.0
    %vm3510 = vcmp.ge.f32.partialorder %v3356, 0.0
    %vm3511 = vcmp.ge.f32.partialorder %v3361, 0.0
    %vm3512 = vcmp.ge.f32.partialorder %v3366, 0.0
    %vm3513 = vcmp.ge.f32.partialorder %v3371, 0.0
    %vm3514 = vcmp.ge.f32.partialorder %v3376, 0.0
    %vm3515 = vcmp.ge.f32.partialorder %v3381, 0.0
    %vm3516 = vcmp.ge.f32.partialorder %v3386, 0.0
    %v3517 = vmul.f32 %v3422, %v3470
    %v3518 = vmul.f32 %v3424, %v3472
    %v3519 = vmul.f32 %v3426, %v3474
    %v3520 = vmul.f32 %v3428, %v3476
    %v3521 = vmul.f32 %v3430, %v3478
    %v3522 = vmul.f32 %v3432, %v3480
    %v3523 = vmul.f32 %v3434, %v3482
    %v3524 = vmul.f32 %v3436, %v3484
    %v3525 = vmul.f32 %v3438, %v3486
    %v3526 = vmul.f32 %v3440, %v3488
    %v3527 = vmul.f32 %v3442, %v3490
    %v3528 = vmul.f32 %v3444, %v3492
    %v3529 = vmul.f32 %v3446, %v3494
    %v3530 = vmul.f32 %v3448, %v3496
    %v3531 = vmul.f32 %v3450, %v3498
    %v3532 = vmul.f32 %v3452, %v3500
    %v3533 = vsel %vm3501, %v3470, %v3517
    %v3534 = vsel %vm3502, %v3472, %v3518
    %v3535 = vsel %vm3503, %v3474, %v3519
    %v3536 = vsel %vm3504, %v3476, %v3520
    %v3537 = vsel %vm3505, %v3478, %v3521
    %v3538 = vsel %vm3506, %v3480, %v3522
    %v3539 = vsel %vm3507, %v3482, %v3523
    %v3540 = vsel %vm3508, %v3484, %v3524
    %v3541 = vsel %vm3509, %v3486, %v3525
    %v3542 = vsel %vm3510, %v3488, %v3526
    %v3543 = vsel %vm3511, %v3490, %v3527
    %v3544 = vsel %vm3512, %v3492, %v3528
    %v3545 = vsel %vm3513, %v3494, %v3529
    %v3546 = vsel %vm3514, %v3496, %v3530
    %v3547 = vsel %vm3515, %v3498, %v3531
    %v3548 = vsel %vm3516, %v3500, %v3532
    %3549 = vst.msk [vmem:[%s7] sm:$0xff] %vm804, %v3533
    %3550 = vst.msk [vmem:[%s7 + $0x8] sm:$0xff] %vm804, %v3534
    %3551 = vst.msk [vmem:[%s7 + $0x10] sm:$0xff] %vm804, %v3535
    %3552 = vst.msk [vmem:[%s7 + $0x18] sm:$0xff] %vm804, %v3536
    %3553 = vst.msk [vmem:[%s7 + $0x20] sm:$0xff] %vm804, %v3537
    %3554 = vst.msk [vmem:[%s7 + $0x28] sm:$0xff] %vm804, %v3538
    %3555 = vst.msk [vmem:[%s7 + $0x30] sm:$0xff] %vm804, %v3539
    %3556 = vst.msk [vmem:[%s7 + $0x38] sm:$0xff] %vm804, %v3540
    %3557 = vst.msk [vmem:[%s7 + $0x40] sm:$0xff] %vm804, %v3541
    %3558 = vst.msk [vmem:[%s7 + $0x48] sm:$0xff] %vm804, %v3542
    %3559 = vst.msk [vmem:[%s7 + $0x50] sm:$0xff] %vm804, %v3543
    %3560 = vst.msk [vmem:[%s7 + $0x58] sm:$0xff] %vm804, %v3544
    %3561 = vst.msk [vmem:[%s7 + $0x60] sm:$0xff] %vm804, %v3545
    %3562 = vst.msk [vmem:[%s7 + $0x68] sm:$0xff] %vm804, %v3546
    %3563 = vst.msk [vmem:[%s7 + $0x70] sm:$0xff] %vm804, %v3547
    %3564 = vst.msk [vmem:[%s7 + $0x78] sm:$0xff] %vm804, %v3548
  $region37: #{efficientnet_multilabel_forward.1} parent=0 // pred_fallthru
    _
  // Predicated region
  $region38: #{efficientnet_multilabel_forward.1} parent=0 // pred_check
    _
  $region39: #{efficientnet_multilabel_forward.1} parent=0 // pred_check_branch
    %3566 = sbr.rel (0) target = $region41
  $region40: #{efficientnet_multilabel_forward.1} parent=0 // pred_region
    _
  $region41: #{efficientnet_multilabel_forward.1} parent=0 // pred_fallthru
    _
  // Predicated region
  $region42: #{efficientnet_multilabel_forward.1} parent=0 // pred_check
    _
  $region43: #{efficientnet_multilabel_forward.1} parent=0 // pred_check_branch
    %3568 = sbr.rel (0) target = $region45
  $region44: #{efficientnet_multilabel_forward.1} parent=0 // pred_region
    _
  $region45: #{efficientnet_multilabel_forward.1} parent=0 // pred_fallthru
    _

</llo_original>
